<compile_context>
chip_gen: v7x
topology: tpu7x:2x2x1
jax: 0.10.0
libtpu: 0.0.40
codegen_flags: <defaults>
</compile_context>

<pallas_src>
import jax
import jax.numpy as jnp
from jax.experimental import pallas as pl
from jax.experimental.pallas import tpu as pltpu


def _prelu(x, alpha):
    return jnp.where(x > 0, x, alpha * x)


def _sigmoid(x):
    # exp on the EUP; the divide goes to the EUP reciprocal slot
    return pl.reciprocal(1.0 + jnp.exp(-x), approx=True)


def _bce_with_logits_sum(logits, label):
    # numerically-stable BCEWithLogitsLoss (same formula as torch), summed over rows -> (1,1)
    return jnp.sum(
        jnp.maximum(logits, 0.0) - logits * label
        + jnp.log(1.0 + jnp.exp(-jnp.abs(logits))),
        axis=0, keepdims=True)


# ------------------------------ fused forward kernel ------------------------------
def _rgib_fused_kernel(scal_ref, x_ref, adj_ref, adjh_ref,
                       w_ref, b2h_ref, w1_ref, b1_ref, w2_ref, b2_ref,
                       d1wt_ref, d2wt_ref,
                       out_ref, acc_clean_ref, acc_hat_ref):
    k = pl.program_id(0)
    nk = pl.num_programs(0)

    N = adj_ref.shape[0]          # all node rows (output of the aggregation)
    tk = adj_ref.shape[1]         # K-tile (adjacency columns / feature rows this step)
    H = w_ref.shape[1]

    @pl.when(k == 0)
    def _init():
        acc_clean_ref[...] = jnp.zeros_like(acc_clean_ref)
        acc_hat_ref[...] = jnp.zeros_like(acc_hat_ref)

    # ---- shared feature transform: one MXU pass for all four x variants of this K block.
    # x_ref rows (already bf16 from the wrapper): [x_k ; x[idx]_k ; x_hat_k ; x_hat[idx]_k]
    xw = jnp.dot(x_ref[...], w_ref[...], preferred_element_type=jnp.float32)   # [4tk, H] f32

    # lane-stack so each adjacency matmul covers two GCN passes at once (256-wide output)
    mdt = adj_ref.dtype
    rhs_clean = jnp.concatenate([xw[0:tk], xw[tk:2 * tk]], axis=1).astype(mdt)      # [tk, 2H]
    rhs_hat = jnp.concatenate([xw[2 * tk:3 * tk], xw[3 * tk:4 * tk]], axis=1).astype(mdt)

    acc_clean_ref[...] += jnp.dot(adj_ref[...], rhs_clean,
                                  preferred_element_type=jnp.float32)               # [N, 2H]
    acc_hat_ref[...] += jnp.dot(adjh_ref[...], rhs_hat,
                                preferred_element_type=jnp.float32)                 # [N, 2H]

    # -------------------------------- epilogue --------------------------------
    @pl.when(k == nk - 1)
    def _epilogue():
        a_gcn = scal_ref[0]     # learnable PReLU alpha of the GCN layer
        a_proj = scal_ref[1]    # learnable PReLU alpha of the projection head
        d1_b = scal_ref[2]      # bilinear critic biases
        d2_b = scal_ref[3]

        pre_clean = acc_clean_ref[...] + b2h_ref[...]        # adj @ [xW | xW[idx]] + b
        pre_hat = acc_hat_ref[...] + b2h_ref[...]            # adj_hat @ [...]       + b

        h_noact = pre_clean[:, :H]                  # GCN(x, adj) pre-activation (summary path)
        embbed = _prelu(h_noact, a_gcn)             # GCN(x, adj)             == mu
        emb_perm = _prelu(pre_clean[:, H:], a_gcn)  # GCN(x[idx], adj)        (benign negatives)
        polluted = _prelu(pre_hat[:, :H], a_gcn)    # GCN(x_hat, adj_hat)     == mu_polluted
        perm_hat = _prelu(pre_hat[:, H:], a_gcn)    # GCN(x_hat[idx], adj_hat)

        # summary = sigmoid(AvgReadout(mu))                                   : [1, H]
        summary = _sigmoid(jnp.mean(embbed, axis=0, keepdims=True))

        # summary_subgraph = proj(GCN_no_act(x, adj)) : Linear -> PReLU -> Linear : [N, H]
        h1 = _prelu(jnp.dot(h_noact, w1_ref[...],
                            preferred_element_type=jnp.float32) + b1_ref[...], a_proj)
        subg = jnp.dot(h1, w2_ref[...], preferred_element_type=jnp.float32) + b2_ref[...]

        # ---- bilinear critics restructured: sum((h@W)*c) == sum(h * (c @ W^T)) ----
        # disc1: c = summary_subgraph (per node)  -> one [N,H]@[H,H] matmul total
        cw1 = jnp.dot(subg, d1wt_ref[...], preferred_element_type=jnp.float32)      # [N, H]
        sc1_pl = jnp.sum(polluted * cw1, axis=1, keepdims=True) + d1_b              # [N, 1]
        sc1_mi = jnp.sum(perm_hat * cw1, axis=1, keepdims=True) + d1_b              # [N, 1]

        # disc2: c = global summary (shared)      -> one [1,H]@[H,H] matvec total
        ws2 = jnp.dot(summary, d2wt_ref[...], preferred_element_type=jnp.float32)   # [1, H]
        sc2_pl = jnp.sum(embbed * ws2, axis=1, keepdims=True) + d2_b                # [N, 1]
        sc2_mi = jnp.sum(emb_perm * ws2, axis=1, keepdims=True) + d2_b              # [N, 1]

        # ---- losses (labels: positives -> 1, negatives -> 0), mean over 2N ----
        inv2n = 1.0 / (2.0 * N)
        mi = (_bce_with_logits_sum(sc1_pl, 1.0)
              + _bce_with_logits_sum(sc1_mi, 0.0)) * inv2n                          # (1, 1)
        mib = (_bce_with_logits_sum(sc2_pl, 1.0)
               + _bce_with_logits_sum(sc2_mi, 0.0)) * inv2n                         # (1, 1)

        # kl = mean over nodes of sum((mu_polluted - mu)^2, -1)
        d = polluted - embbed
        kl = jnp.sum(jnp.sum(d * d, axis=1, keepdims=True),
                     axis=0, keepdims=True) * (1.0 / N)                             # (1, 1)

        # pack all three scalars into the single (1, 3) output tile
        lane = jax.lax.broadcasted_iota(jnp.int32, (1, 3), 1)
        out_ref[...] = jnp.where(lane == 0, mi, jnp.where(lane == 1, mib, kl))


# ----------------------------------- wrapper -----------------------------------
def rgib_forward(params, x, adj, x_hat, adj_hat, idx, *, block_k=None, mxu_bf16=True):
    """Mirrors RGIB.forward (dense-adjacency path, sparse=False) with one fused kernel.

    x, x_hat : [1, N, F]    adj, adj_hat : [N, N]    idx : [N] permutation
    Returns (mi_loss, mi_loss_benign, kl_loss) scalars.
    """
    assert x.ndim == 3, "features has wrong type"
    x2 = x[0].astype(jnp.float32)
    xh2 = x_hat[0].astype(jnp.float32)
    N, F = x2.shape
    H = params["gcn_w"].shape[1]
    mdt = jnp.bfloat16 if mxu_bf16 else jnp.float32   # MXU-input dtype, cast in the wrapper

    # --- K-tiling of the adjacency reduction dimension ---
    if block_k is None:
        block_k = min(N, 512)
    if N % block_k != 0:
        block_k = N
    num_k = N // block_k

    # All four feature variants [x ; x[idx] ; x_hat ; x_hat[idx]], re-grouped per K block
    # so grid step k reads one contiguous [4*block_k, F] slab (uses (xW)[idx] == x[idx]W).
    x_all = jnp.stack([x2, x2[idx], xh2, xh2[idx]], axis=0)                    # [4, N, F]
    x_all = (x_all.reshape(4, num_k, block_k, F)
             .transpose(1, 0, 2, 3)
             .reshape(4 * N, F)
             .astype(mdt))

    adj_m = adj.astype(mdt)
    adjh_m = adj_hat.astype(mdt)
    gcn_w = params["gcn_w"].astype(mdt)

    # pre-stacked [1, 2H] bias (avoids an in-kernel concat); critic weights pre-transposed
    gcn_b = params["gcn_b"].astype(jnp.float32)
    b2h = jnp.concatenate([gcn_b, gcn_b]).reshape(1, 2 * H)
    d1wT = params["disc1_w"].astype(jnp.float32).T
    d2wT = params["disc2_w"].astype(jnp.float32).T

    scal = jnp.stack([jnp.asarray(params["gcn_alpha"], jnp.float32),
                      jnp.asarray(params["proj_alpha"], jnp.float32),
                      jnp.asarray(params["disc1_b"], jnp.float32),
                      jnp.asarray(params["disc2_b"], jnp.float32)])

    # scoped-VMEM budget: blocked operands (double-buffered) + f32 accumulators + epilogue
    bpe = 2 if mxu_bf16 else 4
    est = ((2 * N * block_k + 4 * block_k * F) * bpe) * 2       # adj/adj_hat/x tiles, 2 bufs
    est += 2 * N * 2 * H * 4                                     # f32 accumulators
    est += (F * H + 4 * H * H) * 4 + 8 * N * H * 4               # weights + epilogue tensors
    vmem_limit = int(min(128 * 1024 * 1024, max(32 * 1024 * 1024, 4 * est)))

    vmem = pl.BlockSpec(memory_space=pltpu.MemorySpace.VMEM)
    smem = pl.BlockSpec(memory_space=pltpu.MemorySpace.SMEM)

    losses = pl.pallas_call(
        _rgib_fused_kernel,
        out_shape=jax.ShapeDtypeStruct((1, 3), jnp.float32),
        grid=(num_k,),
        in_specs=[
            smem,                                                    # scal (4,)
            pl.BlockSpec((4 * block_k, F), lambda k: (k, 0)),        # x_all  [4N, F]
            pl.BlockSpec((N, block_k), lambda k: (0, k)),            # adj    [N, N]
            pl.BlockSpec((N, block_k), lambda k: (0, k)),            # adj_hat[N, N]
            vmem,                                                    # gcn_w
            vmem,                                                    # b2h
            vmem, vmem, vmem, vmem,                                  # proj w1/b1/w2/b2
            vmem, vmem,                                              # disc1_w^T, disc2_w^T
        ],
        out_specs=pl.BlockSpec((1, 3), lambda k: (0, 0)),
        scratch_shapes=[pltpu.VMEM((N, 2 * H), jnp.float32),
                        pltpu.VMEM((N, 2 * H), jnp.float32)],
        compiler_params=pltpu.CompilerParams(
            dimension_semantics=("arbitrary",),
            vmem_limit_bytes=vmem_limit),
    )(scal, x_all, adj_m, adjh_m,
      gcn_w, b2h,
      params["proj_w1"], params["proj_b1"].reshape(1, H),
      params["proj_w2"], params["proj_b2"].reshape(1, H),
      d1wT, d2wT)

    return losses[0, 0], losses[0, 1], losses[0, 2]


# ------------------------------- params & test data -------------------------------
def init_params(key, n_in, n_h):
    ks = jax.random.split(key, 8)

    def xavier(k, fan_in, fan_out):
        lim = (6.0 / (fan_in + fan_out)) ** 0.5
        return jax.random.uniform(k, (fan_in, fan_out), jnp.float32, -lim, lim)

    return {
        # Encoder: single GCN layer (fc weight, additive bias, learnable PReLU alpha)
        "gcn_w": xavier(ks[0], n_in, n_h),
        "gcn_b": jnp.zeros((n_h,), jnp.float32),
        "gcn_alpha": jnp.float32(0.25),
        # Encoder.porj = Linear(n_h, n_h) -> PReLU -> Linear(n_h, n_h)
        "proj_w1": xavier(ks[1], n_h, n_h),
        "proj_b1": jnp.zeros((n_h,), jnp.float32),
        "proj_alpha": jnp.float32(0.25),
        "proj_w2": xavier(ks[2], n_h, n_h),
        "proj_b2": jnp.zeros((n_h,), jnp.float32),
        # Discriminators: nn.Bilinear(n_h, n_h, 1) -> weight [n_h, n_h], scalar bias
        "disc1_w": xavier(ks[3], n_h, n_h),
        "disc1_b": jnp.float32(0.0),
        "disc2_w": xavier(ks[4], n_h, n_h),
        "disc2_b": jnp.float32(0.0),
    }


def _normalized_adj(key, n):
    a = (jax.random.uniform(key, (n, n)) < 0.1).astype(jnp.float32)
    a = jnp.maximum(a, a.T)
    a = a + jnp.eye(n, dtype=jnp.float32)
    d = 1.0 / jnp.sqrt(jnp.sum(a, axis=0))
    return a * d[:, None] * d[None, :]


if __name__ == "__main__":
    key = jax.random.PRNGKey(0)
    k_par, k_x, k_noise, k_a1, k_a2, k_perm = jax.random.split(key, 6)

    B, N, n_in, n_h = 1, 128, 64, 128
    params = init_params(k_par, n_in, n_h)

    x = jax.random.normal(k_x, (B, N, n_in), jnp.float32)
    x_hat = x + 0.05 * jax.random.normal(k_noise, (B, N, n_in), jnp.float32)
    adj = _normalized_adj(k_a1, N)
    adj_hat = _normalized_adj(k_a2, N)
    # TODO(synk): the reference uses np.random.permutation at call time (non-deterministic);
    # a deterministic jax.random.permutation is used here instead.
    idx = jax.random.permutation(k_perm, N)

    fwd = jax.jit(rgib_forward, static_argnames=("block_k", "mxu_bf16"))
    mi_loss, mi_loss_benign, kl_loss = fwd(params, x, adj, x_hat, adj_hat, idx)
    jax.block_until_ready((mi_loss, mi_loss_benign, kl_loss))
    print("KERNEL_OK")
</pallas_src>

<mosaic_0001>
module attributes {stable_mosaic.version = 11 : i64} {
  func.func @_rgib_fused_kernel(%arg0: i32, %arg1: memref<4xf32, #tpu.memory_space<smem>>, %arg2: memref<512x64xbf16, #tpu.memory_space<vmem>>, %arg3: memref<128x128xbf16, #tpu.memory_space<vmem>>, %arg4: memref<128x128xbf16, #tpu.memory_space<vmem>>, %arg5: memref<64x128xbf16, #tpu.memory_space<vmem>>, %arg6: memref<1x256xf32, #tpu.memory_space<vmem>>, %arg7: memref<128x128xf32, #tpu.memory_space<vmem>>, %arg8: memref<1x128xf32, #tpu.memory_space<vmem>>, %arg9: memref<128x128xf32, #tpu.memory_space<vmem>>, %arg10: memref<1x128xf32, #tpu.memory_space<vmem>>, %arg11: memref<128x128xf32, #tpu.memory_space<vmem>>, %arg12: memref<128x128xf32, #tpu.memory_space<vmem>>, %arg13: memref<1x3xf32, #tpu.memory_space<vmem>>, %arg14: memref<128x256xf32, #tpu.memory_space<vmem>>, %arg15: memref<128x256xf32, #tpu.memory_space<vmem>>) attributes {dimension_semantics = [#tpu.dimension_semantics<arbitrary>], iteration_bounds = array<i64: 1>, scalar_prefetch = 0 : i64, scratch_operands = 2 : i64, tpu.core_type = #tpu.core_type<tc>, window_params = [{transform_indices = @transform_0, window_bounds = array<i64: 4>}, {transform_indices = @transform_1, window_bounds = array<i64: 512, 64>}, {transform_indices = @transform_2, window_bounds = array<i64: 128, 128>}, {transform_indices = @transform_3, window_bounds = array<i64: 128, 128>}, {pipeline_mode = #tpu.pipeline_mode<synchronous>, transform_indices = @transform_4, window_bounds = array<i64: 64, 128>}, {pipeline_mode = #tpu.pipeline_mode<synchronous>, transform_indices = @transform_5, window_bounds = array<i64: 1, 256>}, {pipeline_mode = #tpu.pipeline_mode<synchronous>, transform_indices = @transform_6, window_bounds = array<i64: 128, 128>}, {pipeline_mode = #tpu.pipeline_mode<synchronous>, transform_indices = @transform_7, window_bounds = array<i64: 1, 128>}, {pipeline_mode = #tpu.pipeline_mode<synchronous>, transform_indices = @transform_8, window_bounds = array<i64: 128, 128>}, {pipeline_mode = #tpu.pipeline_mode<synchronous>, transform_indices = @transform_9, window_bounds = array<i64: 1, 128>}, {pipeline_mode = #tpu.pipeline_mode<synchronous>, transform_indices = @transform_10, window_bounds = array<i64: 128, 128>}, {pipeline_mode = #tpu.pipeline_mode<synchronous>, transform_indices = @transform_11, window_bounds = array<i64: 128, 128>}, {pipeline_mode = #tpu.pipeline_mode<synchronous>, transform_indices = @transform_12, window_bounds = array<i64: 1, 3>}]} {
    %c0_i32 = arith.constant 0 : i32
    %0 = arith.cmpi eq, %arg0, %c0_i32 : i32
    %1 = arith.extui %0 : i1 to i32
    %c0_i32_0 = arith.constant 0 : i32
    %2 = arith.cmpi ne, %1, %c0_i32_0 : i32
    scf.if %2 {
      %cst_20 = arith.constant 0.000000e+00 : f32
      %27 = vector.broadcast %cst_20 : f32 to vector<128x256xf32>
      %c0_21 = arith.constant 0 : index
      %c0_22 = arith.constant 0 : index
      %28 = vector.load %arg14[%c0_21, %c0_22] : memref<128x256xf32, #tpu.memory_space<vmem>>, vector<128x256xf32>
      tpu.vector_store %arg14[%c0_21, %c0_22], %27 {strides = array<i32>} : memref<128x256xf32, #tpu.memory_space<vmem>>, vector<128x256xf32>,
      %cst_23 = arith.constant 0.000000e+00 : f32
      %29 = vector.broadcast %cst_23 : f32 to vector<128x256xf32>
      %c0_24 = arith.constant 0 : index
      %c0_25 = arith.constant 0 : index
      %30 = vector.load %arg15[%c0_24, %c0_25] : memref<128x256xf32, #tpu.memory_space<vmem>>, vector<128x256xf32>
      tpu.vector_store %arg15[%c0_24, %c0_25], %29 {strides = array<i32>} : memref<128x256xf32, #tpu.memory_space<vmem>>, vector<128x256xf32>,
    } else {
    }
    %c0 = arith.constant 0 : index
    %c0_1 = arith.constant 0 : index
    %3 = vector.load %arg2[%c0, %c0_1] : memref<512x64xbf16, #tpu.memory_space<vmem>>, vector<512x64xbf16>
    %c0_2 = arith.constant 0 : index
    %c0_3 = arith.constant 0 : index
    %4 = vector.load %arg5[%c0_2, %c0_3] : memref<64x128xbf16, #tpu.memory_space<vmem>>, vector<64x128xbf16>
    %cst = arith.constant dense<0.000000e+00> : vector<512x128xf32>
    %5 = tpu.matmul %3, %4, %cst {dimension_numbers = #tpu.dot_dimension_numbers<[1], [0], [0], [1], [0, 0, 1, 1], [], []>} : vector<512x64xbf16>, vector<64x128xbf16>, vector<512x128xf32> -> vector<512x128xf32>
    %6 = vector.extract_strided_slice %5 {offsets = [0, 0], sizes = [128, 128], strides = [1, 1]} : vector<512x128xf32> to vector<128x128xf32>
    %7 = vector.extract_strided_slice %5 {offsets = [128, 0], sizes = [128, 128], strides = [1, 1]} : vector<512x128xf32> to vector<128x128xf32>
    %8 = tpu.concatenate %6, %7 in 1 : vector<128x128xf32>, vector<128x128xf32> -> vector<128x256xf32>
    %9 = arith.truncf %8 : vector<128x256xf32> to vector<128x256xbf16>
    %10 = vector.extract_strided_slice %5 {offsets = [256, 0], sizes = [128, 128], strides = [1, 1]} : vector<512x128xf32> to vector<128x128xf32>
    %11 = vector.extract_strided_slice %5 {offsets = [384, 0], sizes = [128, 128], strides = [1, 1]} : vector<512x128xf32> to vector<128x128xf32>
    %12 = tpu.concatenate %10, %11 in 1 : vector<128x128xf32>, vector<128x128xf32> -> vector<128x256xf32>
    %13 = arith.truncf %12 : vector<128x256xf32> to vector<128x256xbf16>
    %c0_4 = arith.constant 0 : index
    %c0_5 = arith.constant 0 : index
    %14 = vector.load %arg14[%c0_4, %c0_5] : memref<128x256xf32, #tpu.memory_space<vmem>>, vector<128x256xf32>
    %c0_6 = arith.constant 0 : index
    %c0_7 = arith.constant 0 : index
    %15 = vector.load %arg3[%c0_6, %c0_7] : memref<128x128xbf16, #tpu.memory_space<vmem>>, vector<128x128xbf16>
    %cst_8 = arith.constant dense<0.000000e+00> : vector<128x256xf32>
    %16 = tpu.matmul %15, %9, %cst_8 {dimension_numbers = #tpu.dot_dimension_numbers<[1], [0], [0], [1], [0, 0, 1, 1], [], []>} : vector<128x128xbf16>, vector<128x256xbf16>, vector<128x256xf32> -> vector<128x256xf32>
    %17 = arith.addf %14, %16 : vector<128x256xf32>
    %c0_9 = arith.constant 0 : index
    %c0_10 = arith.constant 0 : index
    %18 = vector.load %arg14[%c0_9, %c0_10] : memref<128x256xf32, #tpu.memory_space<vmem>>, vector<128x256xf32>
    tpu.vector_store %arg14[%c0_9, %c0_10], %17 {strides = array<i32>} : memref<128x256xf32, #tpu.memory_space<vmem>>, vector<128x256xf32>,
    %c0_11 = arith.constant 0 : index
    %c0_12 = arith.constant 0 : index
    %19 = vector.load %arg15[%c0_11, %c0_12] : memref<128x256xf32, #tpu.memory_space<vmem>>, vector<128x256xf32>
    %c0_13 = arith.constant 0 : index
    %c0_14 = arith.constant 0 : index
    %20 = vector.load %arg4[%c0_13, %c0_14] : memref<128x128xbf16, #tpu.memory_space<vmem>>, vector<128x128xbf16>
    %cst_15 = arith.constant dense<0.000000e+00> : vector<128x256xf32>
    %21 = tpu.matmul %20, %13, %cst_15 {dimension_numbers = #tpu.dot_dimension_numbers<[1], [0], [0], [1], [0, 0, 1, 1], [], []>} : vector<128x128xbf16>, vector<128x256xbf16>, vector<128x256xf32> -> vector<128x256xf32>
    %22 = arith.addf %19, %21 : vector<128x256xf32>
    %c0_16 = arith.constant 0 : index
    %c0_17 = arith.constant 0 : index
    %23 = vector.load %arg15[%c0_16, %c0_17] : memref<128x256xf32, #tpu.memory_space<vmem>>, vector<128x256xf32>
    tpu.vector_store %arg15[%c0_16, %c0_17], %22 {strides = array<i32>} : memref<128x256xf32, #tpu.memory_space<vmem>>, vector<128x256xf32>,
    %c0_i32_18 = arith.constant 0 : i32
    %24 = arith.cmpi eq, %arg0, %c0_i32_18 : i32
    %25 = arith.extui %24 : i1 to i32
    %c0_i32_19 = arith.constant 0 : i32
    %26 = arith.cmpi ne, %25, %c0_i32_19 : i32
    scf.if %26 {
      %c0_20 = arith.constant 0 : index
      %27 = memref.load %arg1[%c0_20] : memref<4xf32, #tpu.memory_space<smem>>
      %c1 = arith.constant 1 : index
      %28 = memref.load %arg1[%c1] : memref<4xf32, #tpu.memory_space<smem>>
      %c2 = arith.constant 2 : index
      %29 = memref.load %arg1[%c2] : memref<4xf32, #tpu.memory_space<smem>>
      %c3 = arith.constant 3 : index
      %30 = memref.load %arg1[%c3] : memref<4xf32, #tpu.memory_space<smem>>
      %c0_21 = arith.constant 0 : index
      %c0_22 = arith.constant 0 : index
      %31 = vector.load %arg14[%c0_21, %c0_22] : memref<128x256xf32, #tpu.memory_space<vmem>>, vector<128x256xf32>
      %c0_23 = arith.constant 0 : index
      %c0_24 = arith.constant 0 : index
      %32 = vector.load %arg6[%c0_23, %c0_24] : memref<1x256xf32, #tpu.memory_space<vmem>>, vector<1x256xf32>
      %33 = vector.broadcast %32 : vector<1x256xf32> to vector<128x256xf32>
      %34 = arith.addf %31, %33 : vector<128x256xf32>
      %c0_25 = arith.constant 0 : index
      %c0_26 = arith.constant 0 : index
      %35 = vector.load %arg15[%c0_25, %c0_26] : memref<128x256xf32, #tpu.memory_space<vmem>>, vector<128x256xf32>
      %c0_27 = arith.constant 0 : index
      %c0_28 = arith.constant 0 : index
      %36 = vector.load %arg6[%c0_27, %c0_28] : memref<1x256xf32, #tpu.memory_space<vmem>>, vector<1x256xf32>
      %37 = vector.broadcast %36 : vector<1x256xf32> to vector<128x256xf32>
      %38 = arith.addf %35, %37 : vector<128x256xf32>
      %39 = vector.extract_strided_slice %34 {offsets = [0, 0], sizes = [128, 128], strides = [1, 1]} : vector<128x256xf32> to vector<128x128xf32>
      %cst_29 = arith.constant 0.000000e+00 : f32
      %40 = vector.broadcast %cst_29 : f32 to vector<128x128xf32>
      %41 = arith.cmpf ogt, %39, %40 : vector<128x128xf32>
      %42 = vector.broadcast %27 : f32 to vector<128x128xf32>
      %43 = arith.mulf %42, %39 : vector<128x128xf32>
      %44 = arith.select %41, %39, %43 : vector<128x128xi1>, vector<128x128xf32>
      %45 = vector.extract_strided_slice %34 {offsets = [0, 128], sizes = [128, 128], strides = [1, 1]} : vector<128x256xf32> to vector<128x128xf32>
      %cst_30 = arith.constant 0.000000e+00 : f32
      %46 = vector.broadcast %cst_30 : f32 to vector<128x128xf32>
      %47 = arith.cmpf ogt, %45, %46 : vector<128x128xf32>
      %48 = vector.broadcast %27 : f32 to vector<128x128xf32>
      %49 = arith.mulf %48, %45 : vector<128x128xf32>
      %50 = arith.select %47, %45, %49 : vector<128x128xi1>, vector<128x128xf32>
      %51 = vector.extract_strided_slice %38 {offsets = [0, 0], sizes = [128, 128], strides = [1, 1]} : vector<128x256xf32> to vector<128x128xf32>
      %cst_31 = arith.constant 0.000000e+00 : f32
      %52 = vector.broadcast %cst_31 : f32 to vector<128x128xf32>
      %53 = arith.cmpf ogt, %51, %52 : vector<128x128xf32>
      %54 = vector.broadcast %27 : f32 to vector<128x128xf32>
      %55 = arith.mulf %54, %51 : vector<128x128xf32>
      %56 = arith.select %53, %51, %55 : vector<128x128xi1>, vector<128x128xf32>
      %57 = vector.extract_strided_slice %38 {offsets = [0, 128], sizes = [128, 128], strides = [1, 1]} : vector<128x256xf32> to vector<128x128xf32>
      %cst_32 = arith.constant 0.000000e+00 : f32
      %58 = vector.broadcast %cst_32 : f32 to vector<128x128xf32>
      %59 = arith.cmpf ogt, %57, %58 : vector<128x128xf32>
      %60 = vector.broadcast %27 : f32 to vector<128x128xf32>
      %61 = arith.mulf %60, %57 : vector<128x128xf32>
      %62 = arith.select %59, %57, %61 : vector<128x128xi1>, vector<128x128xf32>
      %cst_33 = arith.constant dense<0.000000e+00> : vector<128xf32>
      %63 = vector.multi_reduction <add>, %44, %cst_33 [0] : vector<128x128xf32> to vector<128xf32>
      %64 = vector.shape_cast %63 : vector<128xf32> to vector<1x128xf32>
      %cst_34 = arith.constant 1.280000e+02 : f32
      %65 = vector.broadcast %cst_34 : f32 to vector<1x128xf32>
      %66 = arith.divf %64, %65 : vector<1x128xf32>
      %cst_35 = arith.constant 0.000000e+00 : f32
      %67 = vector.broadcast %cst_35 : f32 to vector<1x128xf32>
      %68 = arith.subf %67, %66 : vector<1x128xf32>
      %69 = math.exp %68 : vector<1x128xf32>
      %cst_36 = arith.constant 1.000000e+00 : f32
      %70 = vector.broadcast %cst_36 : f32 to vector<1x128xf32>
      %71 = arith.addf %70, %69 : vector<1x128xf32>
      %72 = tpu.reciprocal %71 {approx = true} : vector<1x128xf32> -> vector<1x128xf32>
      %c0_37 = arith.constant 0 : index
      %c0_38 = arith.constant 0 : index
      %73 = vector.load %arg7[%c0_37, %c0_38] : memref<128x128xf32, #tpu.memory_space<vmem>>, vector<128x128xf32>
      %cst_39 = arith.constant dense<0.000000e+00> : vector<128x128xf32>
      %74 = tpu.matmul %39, %73, %cst_39 {dimension_numbers = #tpu.dot_dimension_numbers<[1], [0], [0], [1], [0, 0, 1, 1], [], []>} : vector<128x128xf32>, vector<128x128xf32>, vector<128x128xf32> -> vector<128x128xf32>
      %c0_40 = arith.constant 0 : index
      %c0_41 = arith.constant 0 : index
      %75 = vector.load %arg8[%c0_40, %c0_41] : memref<1x128xf32, #tpu.memory_space<vmem>>, vector<1x128xf32>
      %76 = vector.broadcast %75 : vector<1x128xf32> to vector<128x128xf32>
      %77 = arith.addf %74, %76 : vector<128x128xf32>
      %cst_42 = arith.constant 0.000000e+00 : f32
      %78 = vector.broadcast %cst_42 : f32 to vector<128x128xf32>
      %79 = arith.cmpf ogt, %77, %78 : vector<128x128xf32>
      %80 = vector.broadcast %28 : f32 to vector<128x128xf32>
      %81 = arith.mulf %80, %77 : vector<128x128xf32>
      %82 = arith.select %79, %77, %81 : vector<128x128xi1>, vector<128x128xf32>
      %c0_43 = arith.constant 0 : index
      %c0_44 = arith.constant 0 : index
      %83 = vector.load %arg9[%c0_43, %c0_44] : memref<128x128xf32, #tpu.memory_space<vmem>>, vector<128x128xf32>
      %cst_45 = arith.constant dense<0.000000e+00> : vector<128x128xf32>
      %84 = tpu.matmul %82, %83, %cst_45 {dimension_numbers = #tpu.dot_dimension_numbers<[1], [0], [0], [1], [0, 0, 1, 1], [], []>} : vector<128x128xf32>, vector<128x128xf32>, vector<128x128xf32> -> vector<128x128xf32>
      %c0_46 = arith.constant 0 : index
      %c0_47 = arith.constant 0 : index
      %85 = vector.load %arg10[%c0_46, %c0_47] : memref<1x128xf32, #tpu.memory_space<vmem>>, vector<1x128xf32>
      %86 = vector.broadcast %85 : vector<1x128xf32> to vector<128x128xf32>
      %87 = arith.addf %84, %86 : vector<128x128xf32>
      %c0_48 = arith.constant 0 : index
      %c0_49 = arith.constant 0 : index
      %88 = vector.load %arg11[%c0_48, %c0_49] : memref<128x128xf32, #tpu.memory_space<vmem>>, vector<128x128xf32>
      %cst_50 = arith.constant dense<0.000000e+00> : vector<128x128xf32>
      %89 = tpu.matmul %87, %88, %cst_50 {dimension_numbers = #tpu.dot_dimension_numbers<[1], [0], [0], [1], [0, 0, 1, 1], [], []>} : vector<128x128xf32>, vector<128x128xf32>, vector<128x128xf32> -> vector<128x128xf32>
      %90 = arith.mulf %56, %89 : vector<128x128xf32>
      %cst_51 = arith.constant dense<0.000000e+00> : vector<128xf32>
      %91 = vector.multi_reduction <add>, %90, %cst_51 [1] : vector<128x128xf32> to vector<128xf32>
      %92 = vector.shape_cast %91 : vector<128xf32> to vector<128x1xf32>
      %93 = vector.broadcast %29 : f32 to vector<128x1xf32>
      %94 = arith.addf %92, %93 : vector<128x1xf32>
      %95 = arith.mulf %62, %89 : vector<128x128xf32>
      %cst_52 = arith.constant dense<0.000000e+00> : vector<128xf32>
      %96 = vector.multi_reduction <add>, %95, %cst_52 [1] : vector<128x128xf32> to vector<128xf32>
      %97 = vector.shape_cast %96 : vector<128xf32> to vector<128x1xf32>
      %98 = vector.broadcast %29 : f32 to vector<128x1xf32>
      %99 = arith.addf %97, %98 : vector<128x1xf32>
      %c0_53 = arith.constant 0 : index
      %c0_54 = arith.constant 0 : index
      %100 = vector.load %arg12[%c0_53, %c0_54] : memref<128x128xf32, #tpu.memory_space<vmem>>, vector<128x128xf32>
      %cst_55 = arith.constant dense<0.000000e+00> : vector<1x128xf32>
      %101 = tpu.matmul %72, %100, %cst_55 {dimension_numbers = #tpu.dot_dimension_numbers<[1], [0], [0], [1], [0, 0, 1, 1], [], []>} : vector<1x128xf32>, vector<128x128xf32>, vector<1x128xf32> -> vector<1x128xf32>
      %102 = vector.broadcast %101 : vector<1x128xf32> to vector<128x128xf32>
      %103 = arith.mulf %44, %102 : vector<128x128xf32>
      %cst_56 = arith.constant dense<0.000000e+00> : vector<128xf32>
      %104 = vector.multi_reduction <add>, %103, %cst_56 [1] : vector<128x128xf32> to vector<128xf32>
      %105 = vector.shape_cast %104 : vector<128xf32> to vector<128x1xf32>
      %106 = vector.broadcast %30 : f32 to vector<128x1xf32>
      %107 = arith.addf %105, %106 : vector<128x1xf32>
      %108 = vector.broadcast %101 : vector<1x128xf32> to vector<128x128xf32>
      %109 = arith.mulf %50, %108 : vector<128x128xf32>
      %cst_57 = arith.constant dense<0.000000e+00> : vector<128xf32>
      %110 = vector.multi_reduction <add>, %109, %cst_57 [1] : vector<128x128xf32> to vector<128xf32>
      %111 = vector.shape_cast %110 : vector<128xf32> to vector<128x1xf32>
      %112 = vector.broadcast %30 : f32 to vector<128x1xf32>
      %113 = arith.addf %111, %112 : vector<128x1xf32>
      %cst_58 = arith.constant 0.000000e+00 : f32
      %114 = vector.broadcast %cst_58 : f32 to vector<128x1xf32>
      %115 = arith.maximumf %94, %114 : vector<128x1xf32>
      %cst_59 = arith.constant 1.000000e+00 : f32
      %116 = vector.broadcast %cst_59 : f32 to vector<128x1xf32>
      %117 = arith.mulf %94, %116 : vector<128x1xf32>
      %118 = arith.subf %115, %117 : vector<128x1xf32>
      %119 = math.absf %94 : vector<128x1xf32>
      %cst_60 = arith.constant 0.000000e+00 : f32
      %120 = vector.broadcast %cst_60 : f32 to vector<128x1xf32>
      %121 = arith.subf %120, %119 : vector<128x1xf32>
      %122 = math.exp %121 : vector<128x1xf32>
      %cst_61 = arith.constant 1.000000e+00 : f32
      %123 = vector.broadcast %cst_61 : f32 to vector<128x1xf32>
      %124 = arith.addf %123, %122 : vector<128x1xf32>
      %125 = math.log %124 : vector<128x1xf32>
      %126 = arith.addf %118, %125 : vector<128x1xf32>
      %cst_62 = arith.constant dense<0.000000e+00> : vector<1xf32>
      %127 = vector.multi_reduction <add>, %126, %cst_62 [0] : vector<128x1xf32> to vector<1xf32>
      %128 = vector.shape_cast %127 : vector<1xf32> to vector<1x1xf32>
      %cst_63 = arith.constant 0.000000e+00 : f32
      %129 = vector.broadcast %cst_63 : f32 to vector<128x1xf32>
      %130 = arith.maximumf %99, %129 : vector<128x1xf32>
      %cst_64 = arith.constant 0.000000e+00 : f32
      %131 = vector.broadcast %cst_64 : f32 to vector<128x1xf32>
      %132 = arith.mulf %99, %131 : vector<128x1xf32>
      %133 = arith.subf %130, %132 : vector<128x1xf32>
      %134 = math.absf %99 : vector<128x1xf32>
      %cst_65 = arith.constant 0.000000e+00 : f32
      %135 = vector.broadcast %cst_65 : f32 to vector<128x1xf32>
      %136 = arith.subf %135, %134 : vector<128x1xf32>
      %137 = math.exp %136 : vector<128x1xf32>
      %cst_66 = arith.constant 1.000000e+00 : f32
      %138 = vector.broadcast %cst_66 : f32 to vector<128x1xf32>
      %139 = arith.addf %138, %137 : vector<128x1xf32>
      %140 = math.log %139 : vector<128x1xf32>
      %141 = arith.addf %133, %140 : vector<128x1xf32>
      %cst_67 = arith.constant dense<0.000000e+00> : vector<1xf32>
      %142 = vector.multi_reduction <add>, %141, %cst_67 [0] : vector<128x1xf32> to vector<1xf32>
      %143 = vector.shape_cast %142 : vector<1xf32> to vector<1x1xf32>
      %144 = arith.addf %128, %143 : vector<1x1xf32>
      %cst_68 = arith.constant 3.906250e-03 : f32
      %145 = vector.broadcast %cst_68 : f32 to vector<1x1xf32>
      %146 = arith.mulf %144, %145 : vector<1x1xf32>
      %cst_69 = arith.constant 0.000000e+00 : f32
      %147 = vector.broadcast %cst_69 : f32 to vector<128x1xf32>
      %148 = arith.maximumf %107, %147 : vector<128x1xf32>
      %cst_70 = arith.constant 1.000000e+00 : f32
      %149 = vector.broadcast %cst_70 : f32 to vector<128x1xf32>
      %150 = arith.mulf %107, %149 : vector<128x1xf32>
      %151 = arith.subf %148, %150 : vector<128x1xf32>
      %152 = math.absf %107 : vector<128x1xf32>
      %cst_71 = arith.constant 0.000000e+00 : f32
      %153 = vector.broadcast %cst_71 : f32 to vector<128x1xf32>
      %154 = arith.subf %153, %152 : vector<128x1xf32>
      %155 = math.exp %154 : vector<128x1xf32>
      %cst_72 = arith.constant 1.000000e+00 : f32
      %156 = vector.broadcast %cst_72 : f32 to vector<128x1xf32>
      %157 = arith.addf %156, %155 : vector<128x1xf32>
      %158 = math.log %157 : vector<128x1xf32>
      %159 = arith.addf %151, %158 : vector<128x1xf32>
      %cst_73 = arith.constant dense<0.000000e+00> : vector<1xf32>
      %160 = vector.multi_reduction <add>, %159, %cst_73 [0] : vector<128x1xf32> to vector<1xf32>
      %161 = vector.shape_cast %160 : vector<1xf32> to vector<1x1xf32>
      %cst_74 = arith.constant 0.000000e+00 : f32
      %162 = vector.broadcast %cst_74 : f32 to vector<128x1xf32>
      %163 = arith.maximumf %113, %162 : vector<128x1xf32>
      %cst_75 = arith.constant 0.000000e+00 : f32
      %164 = vector.broadcast %cst_75 : f32 to vector<128x1xf32>
      %165 = arith.mulf %113, %164 : vector<128x1xf32>
      %166 = arith.subf %163, %165 : vector<128x1xf32>
      %167 = math.absf %113 : vector<128x1xf32>
      %cst_76 = arith.constant 0.000000e+00 : f32
      %168 = vector.broadcast %cst_76 : f32 to vector<128x1xf32>
      %169 = arith.subf %168, %167 : vector<128x1xf32>
      %170 = math.exp %169 : vector<128x1xf32>
      %cst_77 = arith.constant 1.000000e+00 : f32
      %171 = vector.broadcast %cst_77 : f32 to vector<128x1xf32>
      %172 = arith.addf %171, %170 : vector<128x1xf32>
      %173 = math.log %172 : vector<128x1xf32>
      %174 = arith.addf %166, %173 : vector<128x1xf32>
      %cst_78 = arith.constant dense<0.000000e+00> : vector<1xf32>
      %175 = vector.multi_reduction <add>, %174, %cst_78 [0] : vector<128x1xf32> to vector<1xf32>
      %176 = vector.shape_cast %175 : vector<1xf32> to vector<1x1xf32>
      %177 = arith.addf %161, %176 : vector<1x1xf32>
      %cst_79 = arith.constant 3.906250e-03 : f32
      %178 = vector.broadcast %cst_79 : f32 to vector<1x1xf32>
      %179 = arith.mulf %177, %178 : vector<1x1xf32>
      %180 = arith.subf %56, %44 : vector<128x128xf32>
      %181 = arith.mulf %180, %180 : vector<128x128xf32>
      %cst_80 = arith.constant dense<0.000000e+00> : vector<128xf32>
      %182 = vector.multi_reduction <add>, %181, %cst_80 [1] : vector<128x128xf32> to vector<128xf32>
      %183 = vector.shape_cast %182 : vector<128xf32> to vector<128x1xf32>
      %cst_81 = arith.constant dense<0.000000e+00> : vector<1xf32>
      %184 = vector.multi_reduction <add>, %183, %cst_81 [0] : vector<128x1xf32> to vector<1xf32>
      %185 = vector.shape_cast %184 : vector<1xf32> to vector<1x1xf32>
      %cst_82 = arith.constant 7.812500e-03 : f32
      %186 = vector.broadcast %cst_82 : f32 to vector<1x1xf32>
      %187 = arith.mulf %185, %186 : vector<1x1xf32>
      %188 = tpu.iota {dimensions = array<i32: 1>} : vector<1x3xi32>
      %c0_i32_83 = arith.constant 0 : i32
      %189 = vector.broadcast %c0_i32_83 : i32 to vector<1x3xi32>
      %190 = arith.cmpi eq, %188, %189 : vector<1x3xi32>
      %c1_i32 = arith.constant 1 : i32
      %191 = vector.broadcast %c1_i32 : i32 to vector<1x3xi32>
      %192 = arith.cmpi eq, %188, %191 : vector<1x3xi32>
      %193 = vector.shape_cast %179 : vector<1x1xf32> to vector<1x1xf32>
      %194 = vector.broadcast %193 : vector<1x1xf32> to vector<1x3xf32>
      %195 = vector.shape_cast %187 : vector<1x1xf32> to vector<1x1xf32>
      %196 = vector.broadcast %195 : vector<1x1xf32> to vector<1x3xf32>
      %197 = arith.select %192, %194, %196 : vector<1x3xi1>, vector<1x3xf32>
      %198 = vector.shape_cast %146 : vector<1x1xf32> to vector<1x1xf32>
      %199 = vector.broadcast %198 : vector<1x1xf32> to vector<1x3xf32>
      %200 = arith.select %190, %199, %197 : vector<1x3xi1>, vector<1x3xf32>
      %c0_84 = arith.constant 0 : index
      %c0_85 = arith.constant 0 : index
      %201 = vector.load %arg13[%c0_84, %c0_85] : memref<1x3xf32, #tpu.memory_space<vmem>>, vector<1x3xf32>
      tpu.vector_store %arg13[%c0_84, %c0_85], %200 {strides = array<i32>} : memref<1x3xf32, #tpu.memory_space<vmem>>, vector<1x3xf32>,
    } else {
    }
    return
  }
  func.func @transform_0(%arg0: i32) -> i32 {
    %c0_i32 = arith.constant 0 : i32
    %c0_i32_0 = arith.constant 0 : i32
    return %c0_i32 : i32
  }
  func.func @transform_1(%arg0: i32) -> (i32, i32) {
    %c0_i32 = arith.constant 0 : i32
    %c0_i32_0 = arith.constant 0 : i32
    return %arg0, %c0_i32 : i32, i32
  }
  func.func @transform_2(%arg0: i32) -> (i32, i32) {
    %c0_i32 = arith.constant 0 : i32
    %c0_i32_0 = arith.constant 0 : i32
    return %c0_i32, %arg0 : i32, i32
  }
  func.func @transform_3(%arg0: i32) -> (i32, i32) {
    %c0_i32 = arith.constant 0 : i32
    %c0_i32_0 = arith.constant 0 : i32
    return %c0_i32, %arg0 : i32, i32
  }
  func.func @transform_4(%arg0: i32) -> (i32, i32) {
    %c0_i32 = arith.constant 0 : i32
    %c0_i32_0 = arith.constant 0 : i32
    %c0_i32_1 = arith.constant 0 : i32
    return %c0_i32, %c0_i32_0 : i32, i32
  }
  func.func @transform_5(%arg0: i32) -> (i32, i32) {
    %c0_i32 = arith.constant 0 : i32
    %c0_i32_0 = arith.constant 0 : i32
    %c0_i32_1 = arith.constant 0 : i32
    return %c0_i32, %c0_i32_0 : i32, i32
  }
  func.func @transform_6(%arg0: i32) -> (i32, i32) {
    %c0_i32 = arith.constant 0 : i32
    %c0_i32_0 = arith.constant 0 : i32
    %c0_i32_1 = arith.constant 0 : i32
    return %c0_i32, %c0_i32_0 : i32, i32
  }
  func.func @transform_7(%arg0: i32) -> (i32, i32) {
    %c0_i32 = arith.constant 0 : i32
    %c0_i32_0 = arith.constant 0 : i32
    %c0_i32_1 = arith.constant 0 : i32
    return %c0_i32, %c0_i32_0 : i32, i32
  }
  func.func @transform_8(%arg0: i32) -> (i32, i32) {
    %c0_i32 = arith.constant 0 : i32
    %c0_i32_0 = arith.constant 0 : i32
    %c0_i32_1 = arith.constant 0 : i32
    return %c0_i32, %c0_i32_0 : i32, i32
  }
  func.func @transform_9(%arg0: i32) -> (i32, i32) {
    %c0_i32 = arith.constant 0 : i32
    %c0_i32_0 = arith.constant 0 : i32
    %c0_i32_1 = arith.constant 0 : i32
    return %c0_i32, %c0_i32_0 : i32, i32
  }
  func.func @transform_10(%arg0: i32) -> (i32, i32) {
    %c0_i32 = arith.constant 0 : i32
    %c0_i32_0 = arith.constant 0 : i32
    %c0_i32_1 = arith.constant 0 : i32
    return %c0_i32, %c0_i32_0 : i32, i32
  }
  func.func @transform_11(%arg0: i32) -> (i32, i32) {
    %c0_i32 = arith.constant 0 : i32
    %c0_i32_0 = arith.constant 0 : i32
    %c0_i32_1 = arith.constant 0 : i32
    return %c0_i32, %c0_i32_0 : i32, i32
  }
  func.func @transform_12(%arg0: i32) -> (i32, i32) {
    %c0_i32 = arith.constant 0 : i32
    %c0_i32_0 = arith.constant 0 : i32
    %c0_i32_1 = arith.constant 0 : i32
    return %c0_i32, %c0_i32_0 : i32, i32
  }
}

</mosaic_0001>

<llo_original>
// kernel: rgib_forward.1
$region0: #{rgib_forward.1}
  #allocation0 [shape = 'u32[]', space=smem, size = 0x4, offset = 0x4, fixed_abs, tag = 'smem constant byte address 0x4 - core index']
  #allocation1 [shape = 'u32[144,128]{1,0:T(1,128)}', space=vmem, size = 0x12000, scoped, tag = 'internal scratch']
  #allocation2 [shape = 'f32[128,256]{1,0:T(8,128)}', space=vmem, size = 0x20000, scoped, tag = 'scratch operand']
  #allocation3 [shape = 'f32[128,256]{1,0:T(8,128)}', space=vmem, size = 0x20000, scoped, tag = 'scratch operand']
  %s0 = inlined_call_operand.vmem [shape: f32[4], index: 0, kind: input, shape index: {}]
  %s1 = inlined_call_operand.vmem [shape: bf16[512,64], index: 1, kind: input, shape index: {}]
  %s2 = inlined_call_operand.vmem [shape: bf16[128,128], index: 2, kind: input, shape index: {}]
  %s3 = inlined_call_operand.vmem [shape: bf16[128,128], index: 3, kind: input, shape index: {}]
  %s4 = inlined_call_operand.vmem [shape: bf16[64,128], index: 4, kind: input, shape index: {}]
  %s5 = inlined_call_operand.vmem [shape: f32[1,256], index: 5, kind: input, shape index: {}]
  %s6 = inlined_call_operand.vmem [shape: f32[128,128], index: 6, kind: input, shape index: {}]
  %s7 = inlined_call_operand.vmem [shape: f32[1,128], index: 7, kind: input, shape index: {}]
  %s8 = inlined_call_operand.vmem [shape: f32[128,128], index: 8, kind: input, shape index: {}]
  %s9 = inlined_call_operand.vmem [shape: f32[1,128], index: 9, kind: input, shape index: {}]
  %s10 = inlined_call_operand.vmem [shape: f32[128,128], index: 10, kind: input, shape index: {}]
  %s11 = inlined_call_operand.vmem [shape: f32[128,128], index: 11, kind: input, shape index: {}]
  %s12 = inlined_call_operand.vmem [shape: f32[1,3], index: 12, kind: output, shape index: {}]
  %s13 = sld [smem:[#allocation0]]
  $region70: #{rgib_forward.1} parent=0
    _
  %s15 = ssub.s32 1, %s13
  %s16 = scalar_select 0, %s15, %s13
  $region1: #{rgib_forward.1} parent=0
    #allocation4 [shape = 'u8[512]{0}', space=smem, size = 0x200, scoped, tag = 'input window, operand 0, single buffered']
    #allocation5 [shape = 's32[1]{0}', space=sflag, size = 0x4, scoped, tag = 'scoped memory for rgib_forward.1']
    %17 = vsyncpa [#allocation5], 0
    // Predicated region
    $region2: #{rgib_forward.1} parent=1 // pred_check
      _
    $region3: #{rgib_forward.1} parent=1 // pred_check_branch
      %19 = sbr.rel (0) target = $region5
    $region4: #{rgib_forward.1} parent=1 // pred_region
      %s21 = ssub.s32 16, 16
      %22 = vsyncadd [#allocation5], %s21
      %s24 = sshll.u32 %s0, 4
      %s25 = int_to_ptr.vmem [resolvable:$true] %s24
      %27 = dma.vmem_to_smem %s25, 16, [#allocation4], [#allocation5]
    $region5: #{rgib_forward.1} parent=1 // pred_fallthru
      _
    // Predicated region
    $region6: #{rgib_forward.1} parent=1 // pred_check
      _
    $region7: #{rgib_forward.1} parent=1 // pred_check_branch
      %29 = sbr.rel (0) target = $region9
    $region8: #{rgib_forward.1} parent=1 // pred_region
      _
    $region9: #{rgib_forward.1} parent=1 // pred_fallthru
      _
    // Predicated region
    $region10: #{rgib_forward.1} parent=1 // pred_check
      _
    $region11: #{rgib_forward.1} parent=1 // pred_check_branch
      %31 = sbr.rel (0) target = $region13
    $region12: #{rgib_forward.1} parent=1 // pred_region
      _
    $region13: #{rgib_forward.1} parent=1 // pred_fallthru
      _
    // Predicated region
    $region14: #{rgib_forward.1} parent=1 // pred_check
      _
    $region15: #{rgib_forward.1} parent=1 // pred_check_branch
      %33 = sbr.rel (0) target = $region17
    $region16: #{rgib_forward.1} parent=1 // pred_region
      _
    $region17: #{rgib_forward.1} parent=1 // pred_fallthru
      _
    // Predicated region
    $region18: #{rgib_forward.1} parent=1 // pred_check
      _
    $region19: #{rgib_forward.1} parent=1 // pred_check_branch
      %35 = sbr.rel (0) target = $region21
    $region20: #{rgib_forward.1} parent=1 // pred_region
      _
    $region21: #{rgib_forward.1} parent=1 // pred_fallthru
      _
    // Predicated region
    $region22: #{rgib_forward.1} parent=1 // pred_check
      _
    $region23: #{rgib_forward.1} parent=1 // pred_check_branch
      %37 = sbr.rel (0) target = $region25
    $region24: #{rgib_forward.1} parent=1 // pred_region
      _
    $region25: #{rgib_forward.1} parent=1 // pred_fallthru
      _
    // Predicated region
    $region26: #{rgib_forward.1} parent=1 // pred_check
      _
    $region27: #{rgib_forward.1} parent=1 // pred_check_branch
      %39 = sbr.rel (0) target = $region29
    $region28: #{rgib_forward.1} parent=1 // pred_region
      _
    $region29: #{rgib_forward.1} parent=1 // pred_fallthru
      _
    // Predicated region
    $region30: #{rgib_forward.1} parent=1 // pred_check
      _
    $region31: #{rgib_forward.1} parent=1 // pred_check_branch
      %41 = sbr.rel (0) target = $region33
    $region32: #{rgib_forward.1} parent=1 // pred_region
      _
    $region33: #{rgib_forward.1} parent=1 // pred_fallthru
      _
    // Predicated region
    $region34: #{rgib_forward.1} parent=1 // pred_check
      _
    $region35: #{rgib_forward.1} parent=1 // pred_check_branch
      %43 = sbr.rel (0) target = $region37
    $region36: #{rgib_forward.1} parent=1 // pred_region
      _
    $region37: #{rgib_forward.1} parent=1 // pred_fallthru
      _
    // Predicated region
    $region38: #{rgib_forward.1} parent=1 // pred_check
      _
    $region39: #{rgib_forward.1} parent=1 // pred_check_branch
      %45 = sbr.rel (0) target = $region41
    $region40: #{rgib_forward.1} parent=1 // pred_region
      _
    $region41: #{rgib_forward.1} parent=1 // pred_fallthru
      _
    // Predicated region
    $region42: #{rgib_forward.1} parent=1 // pred_check
      _
    $region43: #{rgib_forward.1} parent=1 // pred_check_branch
      %47 = sbr.rel (0) target = $region45
    $region44: #{rgib_forward.1} parent=1 // pred_region
      _
    $region45: #{rgib_forward.1} parent=1 // pred_fallthru
      _
    // Predicated region
    $region46: #{rgib_forward.1} parent=1 // pred_check
      _
    $region47: #{rgib_forward.1} parent=1 // pred_check_branch
      %49 = sbr.rel (0) target = $region49
    $region48: #{rgib_forward.1} parent=1 // pred_region
      _
    $region49: #{rgib_forward.1} parent=1 // pred_fallthru
      _
    // Predicated region
    $region50: #{rgib_forward.1} parent=1 // pred_check
      _
    $region51: #{rgib_forward.1} parent=1 // pred_check_branch
      %51 = sbr.rel (0) target = $region53
    $region52: #{rgib_forward.1} parent=1 // pred_region
      %52 = dma.done [#allocation5], 16
    $region53: #{rgib_forward.1} parent=1 // pred_fallthru
      _
    %53 = sfence
    %p55 = scmp.eq.s32.totalorder 0, 0
    // Predicated region
    $region54: #{rgib_forward.1} parent=1 // pred_check
      %p56 = pneg %p55
    $region55: #{rgib_forward.1} parent=1 // pred_check_branch
      %58 = sbr.rel (%p56) target = $region57
    $region56: #{rgib_forward.1} parent=1 // pred_region
      %59 = vst [vmem:[#allocation2] sm:$0xff] 0.0
      %60 = vst [vmem:[#allocation2 + $0x8] sm:$0xff] 0.0
      %61 = vst [vmem:[#allocation2 + $0x10] sm:$0xff] 0.0
      %62 = vst [vmem:[#allocation2 + $0x18] sm:$0xff] 0.0
      %63 = vst [vmem:[#allocation2 + $0x20] sm:$0xff] 0.0
      %64 = vst [vmem:[#allocation2 + $0x28] sm:$0xff] 0.0
      %65 = vst [vmem:[#allocation2 + $0x30] sm:$0xff] 0.0
      %66 = vst [vmem:[#allocation2 + $0x38] sm:$0xff] 0.0
      %67 = vst [vmem:[#allocation2 + $0x40] sm:$0xff] 0.0
      %68 = vst [vmem:[#allocation2 + $0x48] sm:$0xff] 0.0
      %69 = vst [vmem:[#allocation2 + $0x50] sm:$0xff] 0.0
      %70 = vst [vmem:[#allocation2 + $0x58] sm:$0xff] 0.0
      %71 = vst [vmem:[#allocation2 + $0x60] sm:$0xff] 0.0
      %72 = vst [vmem:[#allocation2 + $0x68] sm:$0xff] 0.0
      %73 = vst [vmem:[#allocation2 + $0x70] sm:$0xff] 0.0
      %74 = vst [vmem:[#allocation2 + $0x78] sm:$0xff] 0.0
      %75 = vst [vmem:[#allocation2 + $0x80] sm:$0xff] 0.0
      %76 = vst [vmem:[#allocation2 + $0x88] sm:$0xff] 0.0
      %77 = vst [vmem:[#allocation2 + $0x90] sm:$0xff] 0.0
      %78 = vst [vmem:[#allocation2 + $0x98] sm:$0xff] 0.0
      %79 = vst [vmem:[#allocation2 + $0xa0] sm:$0xff] 0.0
      %80 = vst [vmem:[#allocation2 + $0xa8] sm:$0xff] 0.0
      %81 = vst [vmem:[#allocation2 + $0xb0] sm:$0xff] 0.0
      %82 = vst [vmem:[#allocation2 + $0xb8] sm:$0xff] 0.0
      %83 = vst [vmem:[#allocation2 + $0xc0] sm:$0xff] 0.0
      %84 = vst [vmem:[#allocation2 + $0xc8] sm:$0xff] 0.0
      %85 = vst [vmem:[#allocation2 + $0xd0] sm:$0xff] 0.0
      %86 = vst [vmem:[#allocation2 + $0xd8] sm:$0xff] 0.0
      %87 = vst [vmem:[#allocation2 + $0xe0] sm:$0xff] 0.0
      %88 = vst [vmem:[#allocation2 + $0xe8] sm:$0xff] 0.0
      %89 = vst [vmem:[#allocation2 + $0xf0] sm:$0xff] 0.0
      %90 = vst [vmem:[#allocation2 + $0xf8] sm:$0xff] 0.0
      %91 = vst [vmem:[#allocation3] sm:$0xff] 0.0
      %92 = vst [vmem:[#allocation3 + $0x8] sm:$0xff] 0.0
      %93 = vst [vmem:[#allocation3 + $0x10] sm:$0xff] 0.0
      %94 = vst [vmem:[#allocation3 + $0x18] sm:$0xff] 0.0
      %95 = vst [vmem:[#allocation3 + $0x20] sm:$0xff] 0.0
      %96 = vst [vmem:[#allocation3 + $0x28] sm:$0xff] 0.0
      %97 = vst [vmem:[#allocation3 + $0x30] sm:$0xff] 0.0
      %98 = vst [vmem:[#allocation3 + $0x38] sm:$0xff] 0.0
      %99 = vst [vmem:[#allocation3 + $0x40] sm:$0xff] 0.0
      %100 = vst [vmem:[#allocation3 + $0x48] sm:$0xff] 0.0
      %101 = vst [vmem:[#allocation3 + $0x50] sm:$0xff] 0.0
      %102 = vst [vmem:[#allocation3 + $0x58] sm:$0xff] 0.0
      %103 = vst [vmem:[#allocation3 + $0x60] sm:$0xff] 0.0
      %104 = vst [vmem:[#allocation3 + $0x68] sm:$0xff] 0.0
      %105 = vst [vmem:[#allocation3 + $0x70] sm:$0xff] 0.0
      %106 = vst [vmem:[#allocation3 + $0x78] sm:$0xff] 0.0
      %107 = vst [vmem:[#allocation3 + $0x80] sm:$0xff] 0.0
      %108 = vst [vmem:[#allocation3 + $0x88] sm:$0xff] 0.0
      %109 = vst [vmem:[#allocation3 + $0x90] sm:$0xff] 0.0
      %110 = vst [vmem:[#allocation3 + $0x98] sm:$0xff] 0.0
      %111 = vst [vmem:[#allocation3 + $0xa0] sm:$0xff] 0.0
      %112 = vst [vmem:[#allocation3 + $0xa8] sm:$0xff] 0.0
      %113 = vst [vmem:[#allocation3 + $0xb0] sm:$0xff] 0.0
      %114 = vst [vmem:[#allocation3 + $0xb8] sm:$0xff] 0.0
      %115 = vst [vmem:[#allocation3 + $0xc0] sm:$0xff] 0.0
      %116 = vst [vmem:[#allocation3 + $0xc8] sm:$0xff] 0.0
      %117 = vst [vmem:[#allocation3 + $0xd0] sm:$0xff] 0.0
      %118 = vst [vmem:[#allocation3 + $0xd8] sm:$0xff] 0.0
      %119 = vst [vmem:[#allocation3 + $0xe0] sm:$0xff] 0.0
      %120 = vst [vmem:[#allocation3 + $0xe8] sm:$0xff] 0.0
      %121 = vst [vmem:[#allocation3 + $0xf0] sm:$0xff] 0.0
      %122 = vst [vmem:[#allocation3 + $0xf8] sm:$0xff] 0.0
    $region57: #{rgib_forward.1} parent=1 // pred_fallthru
      _
    %v123 = vld [vmem:[%s1] sm:$0xf]
    %v124 = vld [vmem:[%s1 + $0x4] sm:$0xf]
    %v125 = vld [vmem:[%s1 + $0x8] sm:$0xf]
    %v126 = vld [vmem:[%s1 + $0xc] sm:$0xf]
    %v127 = vld [vmem:[%s1 + $0x10] sm:$0xf]
    %v128 = vld [vmem:[%s1 + $0x14] sm:$0xf]
    %v129 = vld [vmem:[%s1 + $0x18] sm:$0xf]
    %v130 = vld [vmem:[%s1 + $0x1c] sm:$0xf]
    %v131 = vld [vmem:[%s1 + $0x20] sm:$0xf]
    %v132 = vld [vmem:[%s1 + $0x24] sm:$0xf]
    %v133 = vld [vmem:[%s1 + $0x28] sm:$0xf]
    %v134 = vld [vmem:[%s1 + $0x2c] sm:$0xf]
    %v135 = vld [vmem:[%s1 + $0x30] sm:$0xf]
    %v136 = vld [vmem:[%s1 + $0x34] sm:$0xf]
    %v137 = vld [vmem:[%s1 + $0x38] sm:$0xf]
    %v138 = vld [vmem:[%s1 + $0x3c] sm:$0xf]
    %v139 = vld [vmem:[%s1 + $0x40] sm:$0xf]
    %v140 = vld [vmem:[%s1 + $0x44] sm:$0xf]
    %v141 = vld [vmem:[%s1 + $0x48] sm:$0xf]
    %v142 = vld [vmem:[%s1 + $0x4c] sm:$0xf]
    %v143 = vld [vmem:[%s1 + $0x50] sm:$0xf]
    %v144 = vld [vmem:[%s1 + $0x54] sm:$0xf]
    %v145 = vld [vmem:[%s1 + $0x58] sm:$0xf]
    %v146 = vld [vmem:[%s1 + $0x5c] sm:$0xf]
    %v147 = vld [vmem:[%s1 + $0x60] sm:$0xf]
    %v148 = vld [vmem:[%s1 + $0x64] sm:$0xf]
    %v149 = vld [vmem:[%s1 + $0x68] sm:$0xf]
    %v150 = vld [vmem:[%s1 + $0x6c] sm:$0xf]
    %v151 = vld [vmem:[%s1 + $0x70] sm:$0xf]
    %v152 = vld [vmem:[%s1 + $0x74] sm:$0xf]
    %v153 = vld [vmem:[%s1 + $0x78] sm:$0xf]
    %v154 = vld [vmem:[%s1 + $0x7c] sm:$0xf]
    %v155 = vld [vmem:[%s1 + $0x80] sm:$0xf]
    %v156 = vld [vmem:[%s1 + $0x84] sm:$0xf]
    %v157 = vld [vmem:[%s1 + $0x88] sm:$0xf]
    %v158 = vld [vmem:[%s1 + $0x8c] sm:$0xf]
    %v159 = vld [vmem:[%s1 + $0x90] sm:$0xf]
    %v160 = vld [vmem:[%s1 + $0x94] sm:$0xf]
    %v161 = vld [vmem:[%s1 + $0x98] sm:$0xf]
    %v162 = vld [vmem:[%s1 + $0x9c] sm:$0xf]
    %v163 = vld [vmem:[%s1 + $0xa0] sm:$0xf]
    %v164 = vld [vmem:[%s1 + $0xa4] sm:$0xf]
    %v165 = vld [vmem:[%s1 + $0xa8] sm:$0xf]
    %v166 = vld [vmem:[%s1 + $0xac] sm:$0xf]
    %v167 = vld [vmem:[%s1 + $0xb0] sm:$0xf]
    %v168 = vld [vmem:[%s1 + $0xb4] sm:$0xf]
    %v169 = vld [vmem:[%s1 + $0xb8] sm:$0xf]
    %v170 = vld [vmem:[%s1 + $0xbc] sm:$0xf]
    %v171 = vld [vmem:[%s1 + $0xc0] sm:$0xf]
    %v172 = vld [vmem:[%s1 + $0xc4] sm:$0xf]
    %v173 = vld [vmem:[%s1 + $0xc8] sm:$0xf]
    %v174 = vld [vmem:[%s1 + $0xcc] sm:$0xf]
    %v175 = vld [vmem:[%s1 + $0xd0] sm:$0xf]
    %v176 = vld [vmem:[%s1 + $0xd4] sm:$0xf]
    %v177 = vld [vmem:[%s1 + $0xd8] sm:$0xf]
    %v178 = vld [vmem:[%s1 + $0xdc] sm:$0xf]
    %v179 = vld [vmem:[%s1 + $0xe0] sm:$0xf]
    %v180 = vld [vmem:[%s1 + $0xe4] sm:$0xf]
    %v181 = vld [vmem:[%s1 + $0xe8] sm:$0xf]
    %v182 = vld [vmem:[%s1 + $0xec] sm:$0xf]
    %v183 = vld [vmem:[%s1 + $0xf0] sm:$0xf]
    %v184 = vld [vmem:[%s1 + $0xf4] sm:$0xf]
    %v185 = vld [vmem:[%s1 + $0xf8] sm:$0xf]
    %v186 = vld [vmem:[%s1 + $0xfc] sm:$0xf]
    %v187 = vld [vmem:[%s4] sm:$0xf]
    %v188 = vld [vmem:[%s4 + $0x4] sm:$0xf]
    %v189 = vld [vmem:[%s4 + $0x8] sm:$0xf]
    %v190 = vld [vmem:[%s4 + $0xc] sm:$0xf]
    %v191 = vld [vmem:[%s4 + $0x10] sm:$0xf]
    %v192 = vld [vmem:[%s4 + $0x14] sm:$0xf]
    %v193 = vld [vmem:[%s4 + $0x18] sm:$0xf]
    %v194 = vld [vmem:[%s4 + $0x1c] sm:$0xf]
    %v259 = vunpack.c.l.b16 %v123
    %v260 = vunpack.c.l.b16 %v124
    %v261 = vunpack.c.l.b16 %v125
    %v262 = vunpack.c.l.b16 %v126
    %v263 = vunpack.c.l.b16 %v127
    %v264 = vunpack.c.l.b16 %v128
    %v265 = vunpack.c.l.b16 %v129
    %v266 = vunpack.c.l.b16 %v130
    %v267 = vunpack.c.l.b16 %v131
    %v268 = vunpack.c.l.b16 %v132
    %v269 = vunpack.c.l.b16 %v133
    %v270 = vunpack.c.l.b16 %v134
    %v271 = vunpack.c.l.b16 %v135
    %v272 = vunpack.c.l.b16 %v136
    %v273 = vunpack.c.l.b16 %v137
    %v274 = vunpack.c.l.b16 %v138
    %v275 = vunpack.c.l.b16 %v139
    %v276 = vunpack.c.l.b16 %v140
    %v277 = vunpack.c.l.b16 %v141
    %v278 = vunpack.c.l.b16 %v142
    %v279 = vunpack.c.l.b16 %v143
    %v280 = vunpack.c.l.b16 %v144
    %v281 = vunpack.c.l.b16 %v145
    %v282 = vunpack.c.l.b16 %v146
    %v283 = vunpack.c.l.b16 %v147
    %v284 = vunpack.c.l.b16 %v148
    %v285 = vunpack.c.l.b16 %v149
    %v286 = vunpack.c.l.b16 %v150
    %v287 = vunpack.c.l.b16 %v151
    %v288 = vunpack.c.l.b16 %v152
    %v289 = vunpack.c.l.b16 %v153
    %v290 = vunpack.c.l.b16 %v154
    %v291 = vunpack.c.l.b16 %v155
    %v292 = vunpack.c.l.b16 %v156
    %v293 = vunpack.c.l.b16 %v157
    %v294 = vunpack.c.l.b16 %v158
    %v295 = vunpack.c.l.b16 %v159
    %v296 = vunpack.c.l.b16 %v160
    %v297 = vunpack.c.l.b16 %v161
    %v298 = vunpack.c.l.b16 %v162
    %v299 = vunpack.c.l.b16 %v163
    %v300 = vunpack.c.l.b16 %v164
    %v301 = vunpack.c.l.b16 %v165
    %v302 = vunpack.c.l.b16 %v166
    %v303 = vunpack.c.l.b16 %v167
    %v304 = vunpack.c.l.b16 %v168
    %v305 = vunpack.c.l.b16 %v169
    %v306 = vunpack.c.l.b16 %v170
    %v307 = vunpack.c.l.b16 %v171
    %v308 = vunpack.c.l.b16 %v172
    %v309 = vunpack.c.l.b16 %v173
    %v310 = vunpack.c.l.b16 %v174
    %v311 = vunpack.c.l.b16 %v175
    %v312 = vunpack.c.l.b16 %v176
    %v313 = vunpack.c.l.b16 %v177
    %v314 = vunpack.c.l.b16 %v178
    %v315 = vunpack.c.l.b16 %v179
    %v316 = vunpack.c.l.b16 %v180
    %v317 = vunpack.c.l.b16 %v181
    %v318 = vunpack.c.l.b16 %v182
    %v319 = vunpack.c.l.b16 %v183
    %v320 = vunpack.c.l.b16 %v184
    %v321 = vunpack.c.l.b16 %v185
    %v322 = vunpack.c.l.b16 %v186
    %v323 = vpack.c.b16 %v260, %v259
    %v324 = vpack.c.b16 %v262, %v261
    %v325 = vpack.c.b16 %v264, %v263
    %v326 = vpack.c.b16 %v266, %v265
    %v327 = vpack.c.b16 %v268, %v267
    %v328 = vpack.c.b16 %v270, %v269
    %v329 = vpack.c.b16 %v272, %v271
    %v330 = vpack.c.b16 %v274, %v273
    %v331 = vpack.c.b16 %v276, %v275
    %v332 = vpack.c.b16 %v278, %v277
    %v333 = vpack.c.b16 %v280, %v279
    %v334 = vpack.c.b16 %v282, %v281
    %v335 = vpack.c.b16 %v284, %v283
    %v336 = vpack.c.b16 %v286, %v285
    %v337 = vpack.c.b16 %v288, %v287
    %v338 = vpack.c.b16 %v290, %v289
    %v339 = vpack.c.b16 %v292, %v291
    %v340 = vpack.c.b16 %v294, %v293
    %v341 = vpack.c.b16 %v296, %v295
    %v342 = vpack.c.b16 %v298, %v297
    %v343 = vpack.c.b16 %v300, %v299
    %v344 = vpack.c.b16 %v302, %v301
    %v345 = vpack.c.b16 %v304, %v303
    %v346 = vpack.c.b16 %v306, %v305
    %v347 = vpack.c.b16 %v308, %v307
    %v348 = vpack.c.b16 %v310, %v309
    %v349 = vpack.c.b16 %v312, %v311
    %v350 = vpack.c.b16 %v314, %v313
    %v351 = vpack.c.b16 %v316, %v315
    %v352 = vpack.c.b16 %v318, %v317
    %v353 = vpack.c.b16 %v320, %v319
    %v354 = vpack.c.b16 %v322, %v321
    %v363 = vunpack.c.l.b16 %v187
    %v364 = vunpack.c.l.b16 %v188
    %v365 = vunpack.c.l.b16 %v189
    %v366 = vunpack.c.l.b16 %v190
    %v367 = vunpack.c.l.b16 %v191
    %v368 = vunpack.c.l.b16 %v192
    %v369 = vunpack.c.l.b16 %v193
    %v370 = vunpack.c.l.b16 %v194
    %v371 = vpack.c.b16 %v364, %v363
    %v372 = vpack.c.b16 %v366, %v365
    %v373 = vpack.c.b16 %v368, %v367
    %v374 = vpack.c.b16 %v370, %v369
    %vm379 = vcmask 523264
    %v381 = vsel %vm379, %v323, 0
    %v384 = vsel %vm379, %v324, 0
    %v387 = vsel %vm379, %v325, 0
    %v390 = vsel %vm379, %v326, 0
    %v393 = vsel %vm379, %v327, 0
    %v396 = vsel %vm379, %v328, 0
    %v399 = vsel %vm379, %v329, 0
    %v402 = vsel %vm379, %v330, 0
    %v405 = vsel %vm379, %v331, 0
    %v408 = vsel %vm379, %v332, 0
    %v411 = vsel %vm379, %v333, 0
    %v414 = vsel %vm379, %v334, 0
    %v417 = vsel %vm379, %v335, 0
    %v420 = vsel %vm379, %v336, 0
    %v423 = vsel %vm379, %v337, 0
    %v426 = vsel %vm379, %v338, 0
    %v429 = vsel %vm379, %v339, 0
    %v432 = vsel %vm379, %v340, 0
    %v435 = vsel %vm379, %v341, 0
    %v438 = vsel %vm379, %v342, 0
    %v441 = vsel %vm379, %v343, 0
    %v444 = vsel %vm379, %v344, 0
    %v447 = vsel %vm379, %v345, 0
    %v450 = vsel %vm379, %v346, 0
    %v453 = vsel %vm379, %v347, 0
    %v456 = vsel %vm379, %v348, 0
    %v459 = vsel %vm379, %v349, 0
    %v462 = vsel %vm379, %v350, 0
    %v465 = vsel %vm379, %v351, 0
    %v468 = vsel %vm379, %v352, 0
    %v471 = vsel %vm379, %v353, 0
    %v474 = vsel %vm379, %v354, 0
    %476 = vmatprep.subr.bf16.mxu0 0
    %477 = vmatpush1.bf16.msra.mxu0 %v371
    %478 = vmatprep.subr.bf16.mxu0 0
    %479 = vmatpush1.bf16.msra.mxu0 %v372
    %480 = vmatprep.subr.bf16.mxu0 0
    %481 = vmatpush1.bf16.msra.mxu0 %v373
    %482 = vmatprep.subr.bf16.mxu0 0
    %483 = vmatpush1.bf16.msra.mxu0 %v374
    %484 = vmatprep.subr.bf16.mxu0 0
    %485 = vmatpush1.bf16.msra.mxu0 0
    %486 = vmatprep.subr.bf16.mxu0 0
    %487 = vmatpush1.bf16.msra.mxu0 0
    %488 = vmatprep.subr.bf16.mxu0 0
    %489 = vmatpush1.bf16.msra.mxu0 0
    %490 = vmatprep.subr.bf16.mxu0 0
    %491 = vmatpush1.bf16.msra.mxu0 0
    %492 = vmatprep.subr.bf16.mxu0 0
    %493 = vmatpush1.bf16.msra.mxu0 0
    %494 = vmatprep.subr.bf16.mxu0 0
    %495 = vmatpush1.bf16.msra.mxu0 0
    %496 = vmatprep.subr.bf16.mxu0 0
    %497 = vmatpush1.bf16.msra.mxu0 0
    %498 = vmatprep.subr.bf16.mxu0 0
    %499 = vmatpush1.bf16.msra.mxu0 0
    %500 = vmatprep.subr.bf16.mxu0 0
    %501 = vmatpush1.bf16.msra.mxu0 0
    %502 = vmatprep.subr.bf16.mxu0 0
    %503 = vmatpush1.bf16.msra.mxu0 0
    %504 = vmatprep.subr.bf16.mxu0 0
    %505 = vmatpush1.bf16.msra.mxu0 0
    %506 = vmatprep.subr.bf16.mxu0 0
    %507 = vmatpush1.bf16.msra.mxu0 0
    %508 = vmatprep.mubr.bf16.mxu0 0
    %509 = vmatmul.mubr.bf16.gmra.mrb[0].mxu0 %v381
    %v510 = vpop.f32.mrb[0].mxu0
    %v511 = vadd.f32 0.0, %v510
    %v512 = vpop.f32.mrb[0].mxu0
    %v513 = vpop.f32.mrb[0].mxu0
    %v514 = vadd.f32 0.0, %v513
    %v515 = vpop.f32.mrb[0].mxu0
    %516 = vmatprep.mubr.bf16.mxu0 0
    %517 = vmatmul.mubr.bf16.gmra.mrb[0].mxu0 %v384
    %v518 = vpop.f32.mrb[0].mxu0
    %v519 = vadd.f32 0.0, %v518
    %v520 = vpop.f32.mrb[0].mxu0
    %v521 = vpop.f32.mrb[0].mxu0
    %v522 = vadd.f32 0.0, %v521
    %v523 = vpop.f32.mrb[0].mxu0
    %524 = vmatprep.mubr.bf16.mxu0 0
    %525 = vmatmul.mubr.bf16.gmra.mrb[0].mxu0 %v387
    %v526 = vpop.f32.mrb[0].mxu0
    %v527 = vadd.f32 0.0, %v526
    %v528 = vpop.f32.mrb[0].mxu0
    %v529 = vpop.f32.mrb[0].mxu0
    %v530 = vadd.f32 0.0, %v529
    %v531 = vpop.f32.mrb[0].mxu0
    %532 = vmatprep.mubr.bf16.mxu0 0
    %533 = vmatmul.mubr.bf16.gmra.mrb[0].mxu0 %v390
    %v534 = vpop.f32.mrb[0].mxu0
    %v535 = vadd.f32 0.0, %v534
    %v536 = vpop.f32.mrb[0].mxu0
    %v537 = vpop.f32.mrb[0].mxu0
    %v538 = vadd.f32 0.0, %v537
    %v539 = vpop.f32.mrb[0].mxu0
    %540 = vmatprep.mubr.bf16.mxu0 0
    %541 = vmatmul.mubr.bf16.gmra.mrb[0].mxu0 %v393
    %v542 = vpop.f32.mrb[0].mxu0
    %v543 = vadd.f32 0.0, %v542
    %v544 = vpop.f32.mrb[0].mxu0
    %v545 = vpop.f32.mrb[0].mxu0
    %v546 = vadd.f32 0.0, %v545
    %v547 = vpop.f32.mrb[0].mxu0
    %548 = vmatprep.mubr.bf16.mxu0 0
    %549 = vmatmul.mubr.bf16.gmra.mrb[0].mxu0 %v396
    %v550 = vpop.f32.mrb[0].mxu0
    %v551 = vadd.f32 0.0, %v550
    %v552 = vpop.f32.mrb[0].mxu0
    %v553 = vpop.f32.mrb[0].mxu0
    %v554 = vadd.f32 0.0, %v553
    %v555 = vpop.f32.mrb[0].mxu0
    %556 = vmatprep.mubr.bf16.mxu0 0
    %557 = vmatmul.mubr.bf16.gmra.mrb[0].mxu0 %v399
    %v558 = vpop.f32.mrb[0].mxu0
    %v559 = vadd.f32 0.0, %v558
    %v560 = vpop.f32.mrb[0].mxu0
    %v561 = vpop.f32.mrb[0].mxu0
    %v562 = vadd.f32 0.0, %v561
    %v563 = vpop.f32.mrb[0].mxu0
    %564 = vmatprep.mubr.bf16.mxu0 0
    %565 = vmatmul.mubr.bf16.gmra.mrb[0].mxu0 %v402
    %v566 = vpop.f32.mrb[0].mxu0
    %v567 = vadd.f32 0.0, %v566
    %v568 = vpop.f32.mrb[0].mxu0
    %v569 = vpop.f32.mrb[0].mxu0
    %v570 = vadd.f32 0.0, %v569
    %v571 = vpop.f32.mrb[0].mxu0
    %572 = vmatprep.mubr.bf16.mxu0 0
    %573 = vmatmul.mubr.bf16.gmra.mrb[0].mxu0 %v405
    %v574 = vpop.f32.mrb[0].mxu0
    %v575 = vadd.f32 0.0, %v574
    %v576 = vpop.f32.mrb[0].mxu0
    %v577 = vpop.f32.mrb[0].mxu0
    %v578 = vadd.f32 0.0, %v577
    %v579 = vpop.f32.mrb[0].mxu0
    %580 = vmatprep.mubr.bf16.mxu0 0
    %581 = vmatmul.mubr.bf16.gmra.mrb[0].mxu0 %v408
    %v582 = vpop.f32.mrb[0].mxu0
    %v583 = vadd.f32 0.0, %v582
    %v584 = vpop.f32.mrb[0].mxu0
    %v585 = vpop.f32.mrb[0].mxu0
    %v586 = vadd.f32 0.0, %v585
    %v587 = vpop.f32.mrb[0].mxu0
    %588 = vmatprep.mubr.bf16.mxu0 0
    %589 = vmatmul.mubr.bf16.gmra.mrb[0].mxu0 %v411
    %v590 = vpop.f32.mrb[0].mxu0
    %v591 = vadd.f32 0.0, %v590
    %v592 = vpop.f32.mrb[0].mxu0
    %v593 = vpop.f32.mrb[0].mxu0
    %v594 = vadd.f32 0.0, %v593
    %v595 = vpop.f32.mrb[0].mxu0
    %596 = vmatprep.mubr.bf16.mxu0 0
    %597 = vmatmul.mubr.bf16.gmra.mrb[0].mxu0 %v414
    %v598 = vpop.f32.mrb[0].mxu0
    %v599 = vadd.f32 0.0, %v598
    %v600 = vpop.f32.mrb[0].mxu0
    %v601 = vpop.f32.mrb[0].mxu0
    %v602 = vadd.f32 0.0, %v601
    %v603 = vpop.f32.mrb[0].mxu0
    %604 = vmatprep.mubr.bf16.mxu0 0
    %605 = vmatmul.mubr.bf16.gmra.mrb[0].mxu0 %v417
    %v606 = vpop.f32.mrb[0].mxu0
    %v607 = vadd.f32 0.0, %v606
    %v608 = vpop.f32.mrb[0].mxu0
    %v609 = vpop.f32.mrb[0].mxu0
    %v610 = vadd.f32 0.0, %v609
    %v611 = vpop.f32.mrb[0].mxu0
    %612 = vmatprep.mubr.bf16.mxu0 0
    %613 = vmatmul.mubr.bf16.gmra.mrb[0].mxu0 %v420
    %v614 = vpop.f32.mrb[0].mxu0
    %v615 = vadd.f32 0.0, %v614
    %v616 = vpop.f32.mrb[0].mxu0
    %v617 = vpop.f32.mrb[0].mxu0
    %v618 = vadd.f32 0.0, %v617
    %v619 = vpop.f32.mrb[0].mxu0
    %620 = vmatprep.mubr.bf16.mxu0 0
    %621 = vmatmul.mubr.bf16.gmra.mrb[0].mxu0 %v423
    %v622 = vpop.f32.mrb[0].mxu0
    %v623 = vadd.f32 0.0, %v622
    %v624 = vpop.f32.mrb[0].mxu0
    %v625 = vpop.f32.mrb[0].mxu0
    %v626 = vadd.f32 0.0, %v625
    %v627 = vpop.f32.mrb[0].mxu0
    %628 = vmatprep.mubr.bf16.mxu0 0
    %629 = vmatmul.mubr.bf16.gmra.mrb[0].mxu0 %v426
    %v630 = vpop.f32.mrb[0].mxu0
    %v631 = vadd.f32 0.0, %v630
    %v632 = vpop.f32.mrb[0].mxu0
    %v633 = vpop.f32.mrb[0].mxu0
    %v634 = vadd.f32 0.0, %v633
    %v635 = vpop.f32.mrb[0].mxu0
    %636 = vmatprep.mubr.bf16.mxu0 0
    %637 = vmatmul.mubr.bf16.gmra.mrb[0].mxu0 %v429
    %v638 = vpop.f32.mrb[0].mxu0
    %v639 = vadd.f32 0.0, %v638
    %v640 = vpop.f32.mrb[0].mxu0
    %v641 = vpop.f32.mrb[0].mxu0
    %v642 = vadd.f32 0.0, %v641
    %v643 = vpop.f32.mrb[0].mxu0
    %644 = vmatprep.mubr.bf16.mxu0 0
    %645 = vmatmul.mubr.bf16.gmra.mrb[0].mxu0 %v432
    %v646 = vpop.f32.mrb[0].mxu0
    %v647 = vadd.f32 0.0, %v646
    %v648 = vpop.f32.mrb[0].mxu0
    %v649 = vpop.f32.mrb[0].mxu0
    %v650 = vadd.f32 0.0, %v649
    %v651 = vpop.f32.mrb[0].mxu0
    %652 = vmatprep.mubr.bf16.mxu0 0
    %653 = vmatmul.mubr.bf16.gmra.mrb[0].mxu0 %v435
    %v654 = vpop.f32.mrb[0].mxu0
    %v655 = vadd.f32 0.0, %v654
    %v656 = vpop.f32.mrb[0].mxu0
    %v657 = vpop.f32.mrb[0].mxu0
    %v658 = vadd.f32 0.0, %v657
    %v659 = vpop.f32.mrb[0].mxu0
    %660 = vmatprep.mubr.bf16.mxu0 0
    %661 = vmatmul.mubr.bf16.gmra.mrb[0].mxu0 %v438
    %v662 = vpop.f32.mrb[0].mxu0
    %v663 = vadd.f32 0.0, %v662
    %v664 = vpop.f32.mrb[0].mxu0
    %v665 = vpop.f32.mrb[0].mxu0
    %v666 = vadd.f32 0.0, %v665
    %v667 = vpop.f32.mrb[0].mxu0
    %668 = vmatprep.mubr.bf16.mxu0 0
    %669 = vmatmul.mubr.bf16.gmra.mrb[0].mxu0 %v441
    %v670 = vpop.f32.mrb[0].mxu0
    %v671 = vadd.f32 0.0, %v670
    %v672 = vpop.f32.mrb[0].mxu0
    %v673 = vpop.f32.mrb[0].mxu0
    %v674 = vadd.f32 0.0, %v673
    %v675 = vpop.f32.mrb[0].mxu0
    %676 = vmatprep.mubr.bf16.mxu0 0
    %677 = vmatmul.mubr.bf16.gmra.mrb[0].mxu0 %v444
    %v678 = vpop.f32.mrb[0].mxu0
    %v679 = vadd.f32 0.0, %v678
    %v680 = vpop.f32.mrb[0].mxu0
    %v681 = vpop.f32.mrb[0].mxu0
    %v682 = vadd.f32 0.0, %v681
    %v683 = vpop.f32.mrb[0].mxu0
    %684 = vmatprep.mubr.bf16.mxu0 0
    %685 = vmatmul.mubr.bf16.gmra.mrb[0].mxu0 %v447
    %v686 = vpop.f32.mrb[0].mxu0
    %v687 = vadd.f32 0.0, %v686
    %v688 = vpop.f32.mrb[0].mxu0
    %v689 = vpop.f32.mrb[0].mxu0
    %v690 = vadd.f32 0.0, %v689
    %v691 = vpop.f32.mrb[0].mxu0
    %692 = vmatprep.mubr.bf16.mxu0 0
    %693 = vmatmul.mubr.bf16.gmra.mrb[0].mxu0 %v450
    %v694 = vpop.f32.mrb[0].mxu0
    %v695 = vadd.f32 0.0, %v694
    %v696 = vpop.f32.mrb[0].mxu0
    %v697 = vpop.f32.mrb[0].mxu0
    %v698 = vadd.f32 0.0, %v697
    %v699 = vpop.f32.mrb[0].mxu0
    %700 = vmatprep.mubr.bf16.mxu0 0
    %701 = vmatmul.mubr.bf16.gmra.mrb[0].mxu0 %v453
    %v702 = vpop.f32.mrb[0].mxu0
    %v703 = vadd.f32 0.0, %v702
    %v704 = vpop.f32.mrb[0].mxu0
    %v705 = vpop.f32.mrb[0].mxu0
    %v706 = vadd.f32 0.0, %v705
    %v707 = vpop.f32.mrb[0].mxu0
    %708 = vmatprep.mubr.bf16.mxu0 0
    %709 = vmatmul.mubr.bf16.gmra.mrb[0].mxu0 %v456
    %v710 = vpop.f32.mrb[0].mxu0
    %v711 = vadd.f32 0.0, %v710
    %v712 = vpop.f32.mrb[0].mxu0
    %v713 = vpop.f32.mrb[0].mxu0
    %v714 = vadd.f32 0.0, %v713
    %v715 = vpop.f32.mrb[0].mxu0
    %716 = vmatprep.mubr.bf16.mxu0 0
    %717 = vmatmul.mubr.bf16.gmra.mrb[0].mxu0 %v459
    %v718 = vpop.f32.mrb[0].mxu0
    %v719 = vadd.f32 0.0, %v718
    %v720 = vpop.f32.mrb[0].mxu0
    %v721 = vpop.f32.mrb[0].mxu0
    %v722 = vadd.f32 0.0, %v721
    %v723 = vpop.f32.mrb[0].mxu0
    %724 = vmatprep.mubr.bf16.mxu0 0
    %725 = vmatmul.mubr.bf16.gmra.mrb[0].mxu0 %v462
    %v726 = vpop.f32.mrb[0].mxu0
    %v727 = vadd.f32 0.0, %v726
    %v728 = vpop.f32.mrb[0].mxu0
    %v729 = vpop.f32.mrb[0].mxu0
    %v730 = vadd.f32 0.0, %v729
    %v731 = vpop.f32.mrb[0].mxu0
    %732 = vmatprep.mubr.bf16.mxu0 0
    %733 = vmatmul.mubr.bf16.gmra.mrb[0].mxu0 %v465
    %v734 = vpop.f32.mrb[0].mxu0
    %v735 = vadd.f32 0.0, %v734
    %v736 = vpop.f32.mrb[0].mxu0
    %v737 = vpop.f32.mrb[0].mxu0
    %v738 = vadd.f32 0.0, %v737
    %v739 = vpop.f32.mrb[0].mxu0
    %740 = vmatprep.mubr.bf16.mxu0 0
    %741 = vmatmul.mubr.bf16.gmra.mrb[0].mxu0 %v468
    %v742 = vpop.f32.mrb[0].mxu0
    %v743 = vadd.f32 0.0, %v742
    %v744 = vpop.f32.mrb[0].mxu0
    %v745 = vpop.f32.mrb[0].mxu0
    %v746 = vadd.f32 0.0, %v745
    %v747 = vpop.f32.mrb[0].mxu0
    %748 = vmatprep.mubr.bf16.mxu0 0
    %749 = vmatmul.mubr.bf16.gmra.mrb[0].mxu0 %v471
    %v750 = vpop.f32.mrb[0].mxu0
    %v751 = vadd.f32 0.0, %v750
    %v752 = vpop.f32.mrb[0].mxu0
    %v753 = vpop.f32.mrb[0].mxu0
    %v754 = vadd.f32 0.0, %v753
    %v755 = vpop.f32.mrb[0].mxu0
    %756 = vmatprep.mubr.bf16.mxu0 0
    %757 = vmatmul.mubr.bf16.gmra.mrb[0].mxu0 %v474
    %v758 = vpop.f32.mrb[0].mxu0
    %v759 = vadd.f32 0.0, %v758
    %v760 = vpop.f32.mrb[0].mxu0
    %v761 = vpop.f32.mrb[0].mxu0
    %v762 = vadd.f32 0.0, %v761
    %v763 = vpop.f32.mrb[0].mxu0
    %764 = vdwg.mxu0
    %v765 = vpack.c.bf16 %v514, %v511
    %v766 = vpack.c.bf16 %v578, %v575
    %v767 = vpack.c.bf16 %v522, %v519
    %v768 = vpack.c.bf16 %v586, %v583
    %v769 = vpack.c.bf16 %v530, %v527
    %v770 = vpack.c.bf16 %v594, %v591
    %v771 = vpack.c.bf16 %v538, %v535
    %v772 = vpack.c.bf16 %v602, %v599
    %v773 = vpack.c.bf16 %v546, %v543
    %v774 = vpack.c.bf16 %v610, %v607
    %v775 = vpack.c.bf16 %v554, %v551
    %v776 = vpack.c.bf16 %v618, %v615
    %v777 = vpack.c.bf16 %v562, %v559
    %v778 = vpack.c.bf16 %v626, %v623
    %v779 = vpack.c.bf16 %v570, %v567
    %v780 = vpack.c.bf16 %v634, %v631
    %v781 = vpack.c.bf16 %v642, %v639
    %v782 = vpack.c.bf16 %v706, %v703
    %v783 = vpack.c.bf16 %v650, %v647
    %v784 = vpack.c.bf16 %v714, %v711
    %v785 = vpack.c.bf16 %v658, %v655
    %v786 = vpack.c.bf16 %v722, %v719
    %v787 = vpack.c.bf16 %v666, %v663
    %v788 = vpack.c.bf16 %v730, %v727
    %v789 = vpack.c.bf16 %v674, %v671
    %v790 = vpack.c.bf16 %v738, %v735
    %v791 = vpack.c.bf16 %v682, %v679
    %v792 = vpack.c.bf16 %v746, %v743
    %v793 = vpack.c.bf16 %v690, %v687
    %v794 = vpack.c.bf16 %v754, %v751
    %v795 = vpack.c.bf16 %v698, %v695
    %v796 = vpack.c.bf16 %v762, %v759
    %v797 = vld [vmem:[#allocation2] sm:$0xff]
    %v798 = vld [vmem:[#allocation2 + $0x8] sm:$0xff]
    %v799 = vld [vmem:[#allocation2 + $0x10] sm:$0xff]
    %v800 = vld [vmem:[#allocation2 + $0x18] sm:$0xff]
    %v801 = vld [vmem:[#allocation2 + $0x20] sm:$0xff]
    %v802 = vld [vmem:[#allocation2 + $0x28] sm:$0xff]
    %v803 = vld [vmem:[#allocation2 + $0x30] sm:$0xff]
    %v804 = vld [vmem:[#allocation2 + $0x38] sm:$0xff]
    %v805 = vld [vmem:[#allocation2 + $0x40] sm:$0xff]
    %v806 = vld [vmem:[#allocation2 + $0x48] sm:$0xff]
    %v807 = vld [vmem:[#allocation2 + $0x50] sm:$0xff]
    %v808 = vld [vmem:[#allocation2 + $0x58] sm:$0xff]
    %v809 = vld [vmem:[#allocation2 + $0x60] sm:$0xff]
    %v810 = vld [vmem:[#allocation2 + $0x68] sm:$0xff]
    %v811 = vld [vmem:[#allocation2 + $0x70] sm:$0xff]
    %v812 = vld [vmem:[#allocation2 + $0x78] sm:$0xff]
    %v813 = vld [vmem:[#allocation2 + $0x80] sm:$0xff]
    %v814 = vld [vmem:[#allocation2 + $0x88] sm:$0xff]
    %v815 = vld [vmem:[#allocation2 + $0x90] sm:$0xff]
    %v816 = vld [vmem:[#allocation2 + $0x98] sm:$0xff]
    %v817 = vld [vmem:[#allocation2 + $0xa0] sm:$0xff]
    %v818 = vld [vmem:[#allocation2 + $0xa8] sm:$0xff]
    %v819 = vld [vmem:[#allocation2 + $0xb0] sm:$0xff]
    %v820 = vld [vmem:[#allocation2 + $0xb8] sm:$0xff]
    %v821 = vld [vmem:[#allocation2 + $0xc0] sm:$0xff]
    %v822 = vld [vmem:[#allocation2 + $0xc8] sm:$0xff]
    %v823 = vld [vmem:[#allocation2 + $0xd0] sm:$0xff]
    %v824 = vld [vmem:[#allocation2 + $0xd8] sm:$0xff]
    %v825 = vld [vmem:[#allocation2 + $0xe0] sm:$0xff]
    %v826 = vld [vmem:[#allocation2 + $0xe8] sm:$0xff]
    %v827 = vld [vmem:[#allocation2 + $0xf0] sm:$0xff]
    %v828 = vld [vmem:[#allocation2 + $0xf8] sm:$0xff]
    %v829 = vld [vmem:[%s2] sm:$0xf]
    %v830 = vld [vmem:[%s2 + $0x4] sm:$0xf]
    %v831 = vld [vmem:[%s2 + $0x8] sm:$0xf]
    %v832 = vld [vmem:[%s2 + $0xc] sm:$0xf]
    %v833 = vld [vmem:[%s2 + $0x10] sm:$0xf]
    %v834 = vld [vmem:[%s2 + $0x14] sm:$0xf]
    %v835 = vld [vmem:[%s2 + $0x18] sm:$0xf]
    %v836 = vld [vmem:[%s2 + $0x1c] sm:$0xf]
    %v837 = vld [vmem:[%s2 + $0x20] sm:$0xf]
    %v838 = vld [vmem:[%s2 + $0x24] sm:$0xf]
    %v839 = vld [vmem:[%s2 + $0x28] sm:$0xf]
    %v840 = vld [vmem:[%s2 + $0x2c] sm:$0xf]
    %v841 = vld [vmem:[%s2 + $0x30] sm:$0xf]
    %v842 = vld [vmem:[%s2 + $0x34] sm:$0xf]
    %v843 = vld [vmem:[%s2 + $0x38] sm:$0xf]
    %v844 = vld [vmem:[%s2 + $0x3c] sm:$0xf]
    %v861 = vunpack.c.l.b16 %v829
    %v862 = vunpack.c.l.b16 %v830
    %v863 = vunpack.c.l.b16 %v831
    %v864 = vunpack.c.l.b16 %v832
    %v865 = vunpack.c.l.b16 %v833
    %v866 = vunpack.c.l.b16 %v834
    %v867 = vunpack.c.l.b16 %v835
    %v868 = vunpack.c.l.b16 %v836
    %v869 = vunpack.c.l.b16 %v837
    %v870 = vunpack.c.l.b16 %v838
    %v871 = vunpack.c.l.b16 %v839
    %v872 = vunpack.c.l.b16 %v840
    %v873 = vunpack.c.l.b16 %v841
    %v874 = vunpack.c.l.b16 %v842
    %v875 = vunpack.c.l.b16 %v843
    %v876 = vunpack.c.l.b16 %v844
    %v877 = vpack.c.b16 %v862, %v861
    %v878 = vpack.c.b16 %v864, %v863
    %v879 = vpack.c.b16 %v866, %v865
    %v880 = vpack.c.b16 %v868, %v867
    %v881 = vpack.c.b16 %v870, %v869
    %v882 = vpack.c.b16 %v872, %v871
    %v883 = vpack.c.b16 %v874, %v873
    %v884 = vpack.c.b16 %v876, %v875
    %893 = vmatprep.subr.bf16.mxu0 %v766
    %894 = vmatpush1.bf16.msra.mxu0 %v765
    %895 = vmatprep.subr.bf16.mxu0 %v768
    %896 = vmatpush1.bf16.msra.mxu0 %v767
    %897 = vmatprep.subr.bf16.mxu0 %v770
    %898 = vmatpush1.bf16.msra.mxu0 %v769
    %899 = vmatprep.subr.bf16.mxu0 %v772
    %900 = vmatpush1.bf16.msra.mxu0 %v771
    %901 = vmatprep.subr.bf16.mxu0 %v774
    %902 = vmatpush1.bf16.msra.mxu0 %v773
    %903 = vmatprep.subr.bf16.mxu0 %v776
    %904 = vmatpush1.bf16.msra.mxu0 %v775
    %905 = vmatprep.subr.bf16.mxu0 %v778
    %906 = vmatpush1.bf16.msra.mxu0 %v777
    %907 = vmatprep.subr.bf16.mxu0 %v780
    %908 = vmatpush1.bf16.msra.mxu0 %v779
    %909 = vmatprep.subr.bf16.mxu0 0
    %910 = vmatpush1.bf16.msra.mxu0 0
    %911 = vmatprep.subr.bf16.mxu0 0
    %912 = vmatpush1.bf16.msra.mxu0 0
    %913 = vmatprep.subr.bf16.mxu0 0
    %914 = vmatpush1.bf16.msra.mxu0 0
    %915 = vmatprep.subr.bf16.mxu0 0
    %916 = vmatpush1.bf16.msra.mxu0 0
    %917 = vmatprep.subr.bf16.mxu0 0
    %918 = vmatpush1.bf16.msra.mxu0 0
    %919 = vmatprep.subr.bf16.mxu0 0
    %920 = vmatpush1.bf16.msra.mxu0 0
    %921 = vmatprep.subr.bf16.mxu0 0
    %922 = vmatpush1.bf16.msra.mxu0 0
    %923 = vmatprep.subr.bf16.mxu0 0
    %924 = vmatpush1.bf16.msra.mxu0 0
    %925 = vmatprep.mubr.bf16.mxu0 0
    %926 = vmatmul.mubr.bf16.gmra.mrb[0].mxu0 %v877
    %v927 = vpop.f32.mrb[0].mxu0
    %v928 = vadd.f32 0.0, %v927
    %v929 = vpop.f32.mrb[0].mxu0
    %v930 = vadd.f32 0.0, %v929
    %v931 = vpop.f32.mrb[0].mxu0
    %v932 = vadd.f32 0.0, %v931
    %v933 = vpop.f32.mrb[0].mxu0
    %v934 = vadd.f32 0.0, %v933
    %935 = vmatprep.mubr.bf16.mxu0 0
    %936 = vmatmul.mubr.bf16.gmra.mrb[0].mxu0 %v878
    %v937 = vpop.f32.mrb[0].mxu0
    %v938 = vadd.f32 0.0, %v937
    %v939 = vpop.f32.mrb[0].mxu0
    %v940 = vadd.f32 0.0, %v939
    %v941 = vpop.f32.mrb[0].mxu0
    %v942 = vadd.f32 0.0, %v941
    %v943 = vpop.f32.mrb[0].mxu0
    %v944 = vadd.f32 0.0, %v943
    %945 = vmatprep.mubr.bf16.mxu0 0
    %946 = vmatmul.mubr.bf16.gmra.mrb[0].mxu0 %v879
    %v947 = vpop.f32.mrb[0].mxu0
    %v948 = vadd.f32 0.0, %v947
    %v949 = vpop.f32.mrb[0].mxu0
    %v950 = vadd.f32 0.0, %v949
    %v951 = vpop.f32.mrb[0].mxu0
    %v952 = vadd.f32 0.0, %v951
    %v953 = vpop.f32.mrb[0].mxu0
    %v954 = vadd.f32 0.0, %v953
    %955 = vmatprep.mubr.bf16.mxu0 0
    %956 = vmatmul.mubr.bf16.gmra.mrb[0].mxu0 %v880
    %v957 = vpop.f32.mrb[0].mxu0
    %v958 = vadd.f32 0.0, %v957
    %v959 = vpop.f32.mrb[0].mxu0
    %v960 = vadd.f32 0.0, %v959
    %v961 = vpop.f32.mrb[0].mxu0
    %v962 = vadd.f32 0.0, %v961
    %v963 = vpop.f32.mrb[0].mxu0
    %v964 = vadd.f32 0.0, %v963
    %965 = vmatprep.mubr.bf16.mxu0 0
    %966 = vmatmul.mubr.bf16.gmra.mrb[0].mxu0 %v881
    %v967 = vpop.f32.mrb[0].mxu0
    %v968 = vadd.f32 0.0, %v967
    %v969 = vpop.f32.mrb[0].mxu0
    %v970 = vadd.f32 0.0, %v969
    %v971 = vpop.f32.mrb[0].mxu0
    %v972 = vadd.f32 0.0, %v971
    %v973 = vpop.f32.mrb[0].mxu0
    %v974 = vadd.f32 0.0, %v973
    %975 = vmatprep.mubr.bf16.mxu0 0
    %976 = vmatmul.mubr.bf16.gmra.mrb[0].mxu0 %v882
    %v977 = vpop.f32.mrb[0].mxu0
    %v978 = vadd.f32 0.0, %v977
    %v979 = vpop.f32.mrb[0].mxu0
    %v980 = vadd.f32 0.0, %v979
    %v981 = vpop.f32.mrb[0].mxu0
    %v982 = vadd.f32 0.0, %v981
    %v983 = vpop.f32.mrb[0].mxu0
    %v984 = vadd.f32 0.0, %v983
    %985 = vmatprep.mubr.bf16.mxu0 0
    %986 = vmatmul.mubr.bf16.gmra.mrb[0].mxu0 %v883
    %v987 = vpop.f32.mrb[0].mxu0
    %v988 = vadd.f32 0.0, %v987
    %v989 = vpop.f32.mrb[0].mxu0
    %v990 = vadd.f32 0.0, %v989
    %v991 = vpop.f32.mrb[0].mxu0
    %v992 = vadd.f32 0.0, %v991
    %v993 = vpop.f32.mrb[0].mxu0
    %v994 = vadd.f32 0.0, %v993
    %995 = vmatprep.mubr.bf16.mxu0 0
    %996 = vmatmul.mubr.bf16.gmra.mrb[0].mxu0 %v884
    %v997 = vpop.f32.mrb[0].mxu0
    %v998 = vadd.f32 0.0, %v997
    %v999 = vpop.f32.mrb[0].mxu0
    %v1000 = vadd.f32 0.0, %v999
    %v1001 = vpop.f32.mrb[0].mxu0
    %v1002 = vadd.f32 0.0, %v1001
    %v1003 = vpop.f32.mrb[0].mxu0
    %v1004 = vadd.f32 0.0, %v1003
    %1005 = vdwg.mxu0
    %v1006 = vadd.f32 %v797, %v928
    %v1007 = vadd.f32 %v798, %v930
    %v1008 = vadd.f32 %v799, %v932
    %v1009 = vadd.f32 %v800, %v934
    %v1010 = vadd.f32 %v801, %v938
    %v1011 = vadd.f32 %v802, %v940
    %v1012 = vadd.f32 %v803, %v942
    %v1013 = vadd.f32 %v804, %v944
    %v1014 = vadd.f32 %v805, %v948
    %v1015 = vadd.f32 %v806, %v950
    %v1016 = vadd.f32 %v807, %v952
    %v1017 = vadd.f32 %v808, %v954
    %v1018 = vadd.f32 %v809, %v958
    %v1019 = vadd.f32 %v810, %v960
    %v1020 = vadd.f32 %v811, %v962
    %v1021 = vadd.f32 %v812, %v964
    %v1022 = vadd.f32 %v813, %v968
    %v1023 = vadd.f32 %v814, %v970
    %v1024 = vadd.f32 %v815, %v972
    %v1025 = vadd.f32 %v816, %v974
    %v1026 = vadd.f32 %v817, %v978
    %v1027 = vadd.f32 %v818, %v980
    %v1028 = vadd.f32 %v819, %v982
    %v1029 = vadd.f32 %v820, %v984
    %v1030 = vadd.f32 %v821, %v988
    %v1031 = vadd.f32 %v822, %v990
    %v1032 = vadd.f32 %v823, %v992
    %v1033 = vadd.f32 %v824, %v994
    %v1034 = vadd.f32 %v825, %v998
    %v1035 = vadd.f32 %v826, %v1000
    %v1036 = vadd.f32 %v827, %v1002
    %v1037 = vadd.f32 %v828, %v1004
    %1038 = vst [vmem:[#allocation2] sm:$0xff] %v1006
    %1039 = vst [vmem:[#allocation2 + $0x8] sm:$0xff] %v1007
    %1040 = vst [vmem:[#allocation2 + $0x10] sm:$0xff] %v1008
    %1041 = vst [vmem:[#allocation2 + $0x18] sm:$0xff] %v1009
    %1042 = vst [vmem:[#allocation2 + $0x20] sm:$0xff] %v1010
    %1043 = vst [vmem:[#allocation2 + $0x28] sm:$0xff] %v1011
    %1044 = vst [vmem:[#allocation2 + $0x30] sm:$0xff] %v1012
    %1045 = vst [vmem:[#allocation2 + $0x38] sm:$0xff] %v1013
    %1046 = vst [vmem:[#allocation2 + $0x40] sm:$0xff] %v1014
    %1047 = vst [vmem:[#allocation2 + $0x48] sm:$0xff] %v1015
    %1048 = vst [vmem:[#allocation2 + $0x50] sm:$0xff] %v1016
    %1049 = vst [vmem:[#allocation2 + $0x58] sm:$0xff] %v1017
    %1050 = vst [vmem:[#allocation2 + $0x60] sm:$0xff] %v1018
    %1051 = vst [vmem:[#allocation2 + $0x68] sm:$0xff] %v1019
    %1052 = vst [vmem:[#allocation2 + $0x70] sm:$0xff] %v1020
    %1053 = vst [vmem:[#allocation2 + $0x78] sm:$0xff] %v1021
    %1054 = vst [vmem:[#allocation2 + $0x80] sm:$0xff] %v1022
    %1055 = vst [vmem:[#allocation2 + $0x88] sm:$0xff] %v1023
    %1056 = vst [vmem:[#allocation2 + $0x90] sm:$0xff] %v1024
    %1057 = vst [vmem:[#allocation2 + $0x98] sm:$0xff] %v1025
    %1058 = vst [vmem:[#allocation2 + $0xa0] sm:$0xff] %v1026
    %1059 = vst [vmem:[#allocation2 + $0xa8] sm:$0xff] %v1027
    %1060 = vst [vmem:[#allocation2 + $0xb0] sm:$0xff] %v1028
    %1061 = vst [vmem:[#allocation2 + $0xb8] sm:$0xff] %v1029
    %1062 = vst [vmem:[#allocation2 + $0xc0] sm:$0xff] %v1030
    %1063 = vst [vmem:[#allocation2 + $0xc8] sm:$0xff] %v1031
    %1064 = vst [vmem:[#allocation2 + $0xd0] sm:$0xff] %v1032
    %1065 = vst [vmem:[#allocation2 + $0xd8] sm:$0xff] %v1033
    %1066 = vst [vmem:[#allocation2 + $0xe0] sm:$0xff] %v1034
    %1067 = vst [vmem:[#allocation2 + $0xe8] sm:$0xff] %v1035
    %1068 = vst [vmem:[#allocation2 + $0xf0] sm:$0xff] %v1036
    %1069 = vst [vmem:[#allocation2 + $0xf8] sm:$0xff] %v1037
    %v1070 = vld [vmem:[#allocation3] sm:$0xff]
    %v1071 = vld [vmem:[#allocation3 + $0x8] sm:$0xff]
    %v1072 = vld [vmem:[#allocation3 + $0x10] sm:$0xff]
    %v1073 = vld [vmem:[#allocation3 + $0x18] sm:$0xff]
    %v1074 = vld [vmem:[#allocation3 + $0x20] sm:$0xff]
    %v1075 = vld [vmem:[#allocation3 + $0x28] sm:$0xff]
    %v1076 = vld [vmem:[#allocation3 + $0x30] sm:$0xff]
    %v1077 = vld [vmem:[#allocation3 + $0x38] sm:$0xff]
    %v1078 = vld [vmem:[#allocation3 + $0x40] sm:$0xff]
    %v1079 = vld [vmem:[#allocation3 + $0x48] sm:$0xff]
    %v1080 = vld [vmem:[#allocation3 + $0x50] sm:$0xff]
    %v1081 = vld [vmem:[#allocation3 + $0x58] sm:$0xff]
    %v1082 = vld [vmem:[#allocation3 + $0x60] sm:$0xff]
    %v1083 = vld [vmem:[#allocation3 + $0x68] sm:$0xff]
    %v1084 = vld [vmem:[#allocation3 + $0x70] sm:$0xff]
    %v1085 = vld [vmem:[#allocation3 + $0x78] sm:$0xff]
    %v1086 = vld [vmem:[#allocation3 + $0x80] sm:$0xff]
    %v1087 = vld [vmem:[#allocation3 + $0x88] sm:$0xff]
    %v1088 = vld [vmem:[#allocation3 + $0x90] sm:$0xff]
    %v1089 = vld [vmem:[#allocation3 + $0x98] sm:$0xff]
    %v1090 = vld [vmem:[#allocation3 + $0xa0] sm:$0xff]
    %v1091 = vld [vmem:[#allocation3 + $0xa8] sm:$0xff]
    %v1092 = vld [vmem:[#allocation3 + $0xb0] sm:$0xff]
    %v1093 = vld [vmem:[#allocation3 + $0xb8] sm:$0xff]
    %v1094 = vld [vmem:[#allocation3 + $0xc0] sm:$0xff]
    %v1095 = vld [vmem:[#allocation3 + $0xc8] sm:$0xff]
    %v1096 = vld [vmem:[#allocation3 + $0xd0] sm:$0xff]
    %v1097 = vld [vmem:[#allocation3 + $0xd8] sm:$0xff]
    %v1098 = vld [vmem:[#allocation3 + $0xe0] sm:$0xff]
    %v1099 = vld [vmem:[#allocation3 + $0xe8] sm:$0xff]
    %v1100 = vld [vmem:[#allocation3 + $0xf0] sm:$0xff]
    %v1101 = vld [vmem:[#allocation3 + $0xf8] sm:$0xff]
    %v1102 = vld [vmem:[%s3] sm:$0xf]
    %v1103 = vld [vmem:[%s3 + $0x4] sm:$0xf]
    %v1104 = vld [vmem:[%s3 + $0x8] sm:$0xf]
    %v1105 = vld [vmem:[%s3 + $0xc] sm:$0xf]
    %v1106 = vld [vmem:[%s3 + $0x10] sm:$0xf]
    %v1107 = vld [vmem:[%s3 + $0x14] sm:$0xf]
    %v1108 = vld [vmem:[%s3 + $0x18] sm:$0xf]
    %v1109 = vld [vmem:[%s3 + $0x1c] sm:$0xf]
    %v1110 = vld [vmem:[%s3 + $0x20] sm:$0xf]
    %v1111 = vld [vmem:[%s3 + $0x24] sm:$0xf]
    %v1112 = vld [vmem:[%s3 + $0x28] sm:$0xf]
    %v1113 = vld [vmem:[%s3 + $0x2c] sm:$0xf]
    %v1114 = vld [vmem:[%s3 + $0x30] sm:$0xf]
    %v1115 = vld [vmem:[%s3 + $0x34] sm:$0xf]
    %v1116 = vld [vmem:[%s3 + $0x38] sm:$0xf]
    %v1117 = vld [vmem:[%s3 + $0x3c] sm:$0xf]
    %v1134 = vunpack.c.l.b16 %v1102
    %v1135 = vunpack.c.l.b16 %v1103
    %v1136 = vunpack.c.l.b16 %v1104
    %v1137 = vunpack.c.l.b16 %v1105
    %v1138 = vunpack.c.l.b16 %v1106
    %v1139 = vunpack.c.l.b16 %v1107
    %v1140 = vunpack.c.l.b16 %v1108
    %v1141 = vunpack.c.l.b16 %v1109
    %v1142 = vunpack.c.l.b16 %v1110
    %v1143 = vunpack.c.l.b16 %v1111
    %v1144 = vunpack.c.l.b16 %v1112
    %v1145 = vunpack.c.l.b16 %v1113
    %v1146 = vunpack.c.l.b16 %v1114
    %v1147 = vunpack.c.l.b16 %v1115
    %v1148 = vunpack.c.l.b16 %v1116
    %v1149 = vunpack.c.l.b16 %v1117
    %v1150 = vpack.c.b16 %v1135, %v1134
    %v1151 = vpack.c.b16 %v1137, %v1136
    %v1152 = vpack.c.b16 %v1139, %v1138
    %v1153 = vpack.c.b16 %v1141, %v1140
    %v1154 = vpack.c.b16 %v1143, %v1142
    %v1155 = vpack.c.b16 %v1145, %v1144
    %v1156 = vpack.c.b16 %v1147, %v1146
    %v1157 = vpack.c.b16 %v1149, %v1148
    %1166 = vmatprep.subr.bf16.mxu0 %v782
    %1167 = vmatpush1.bf16.msra.mxu0 %v781
    %1168 = vmatprep.subr.bf16.mxu0 %v784
    %1169 = vmatpush1.bf16.msra.mxu0 %v783
    %1170 = vmatprep.subr.bf16.mxu0 %v786
    %1171 = vmatpush1.bf16.msra.mxu0 %v785
    %1172 = vmatprep.subr.bf16.mxu0 %v788
    %1173 = vmatpush1.bf16.msra.mxu0 %v787
    %1174 = vmatprep.subr.bf16.mxu0 %v790
    %1175 = vmatpush1.bf16.msra.mxu0 %v789
    %1176 = vmatprep.subr.bf16.mxu0 %v792
    %1177 = vmatpush1.bf16.msra.mxu0 %v791
    %1178 = vmatprep.subr.bf16.mxu0 %v794
    %1179 = vmatpush1.bf16.msra.mxu0 %v793
    %1180 = vmatprep.subr.bf16.mxu0 %v796
    %1181 = vmatpush1.bf16.msra.mxu0 %v795
    %1182 = vmatprep.subr.bf16.mxu0 0
    %1183 = vmatpush1.bf16.msra.mxu0 0
    %1184 = vmatprep.subr.bf16.mxu0 0
    %1185 = vmatpush1.bf16.msra.mxu0 0
    %1186 = vmatprep.subr.bf16.mxu0 0
    %1187 = vmatpush1.bf16.msra.mxu0 0
    %1188 = vmatprep.subr.bf16.mxu0 0
    %1189 = vmatpush1.bf16.msra.mxu0 0
    %1190 = vmatprep.subr.bf16.mxu0 0
    %1191 = vmatpush1.bf16.msra.mxu0 0
    %1192 = vmatprep.subr.bf16.mxu0 0
    %1193 = vmatpush1.bf16.msra.mxu0 0
    %1194 = vmatprep.subr.bf16.mxu0 0
    %1195 = vmatpush1.bf16.msra.mxu0 0
    %1196 = vmatprep.subr.bf16.mxu0 0
    %1197 = vmatpush1.bf16.msra.mxu0 0
    %1198 = vmatprep.mubr.bf16.mxu0 0
    %1199 = vmatmul.mubr.bf16.gmra.mrb[0].mxu0 %v1150
    %v1200 = vpop.f32.mrb[0].mxu0
    %v1201 = vadd.f32 0.0, %v1200
    %v1202 = vpop.f32.mrb[0].mxu0
    %v1203 = vadd.f32 0.0, %v1202
    %v1204 = vpop.f32.mrb[0].mxu0
    %v1205 = vadd.f32 0.0, %v1204
    %v1206 = vpop.f32.mrb[0].mxu0
    %v1207 = vadd.f32 0.0, %v1206
    %1208 = vmatprep.mubr.bf16.mxu0 0
    %1209 = vmatmul.mubr.bf16.gmra.mrb[0].mxu0 %v1151
    %v1210 = vpop.f32.mrb[0].mxu0
    %v1211 = vadd.f32 0.0, %v1210
    %v1212 = vpop.f32.mrb[0].mxu0
    %v1213 = vadd.f32 0.0, %v1212
    %v1214 = vpop.f32.mrb[0].mxu0
    %v1215 = vadd.f32 0.0, %v1214
    %v1216 = vpop.f32.mrb[0].mxu0
    %v1217 = vadd.f32 0.0, %v1216
    %1218 = vmatprep.mubr.bf16.mxu0 0
    %1219 = vmatmul.mubr.bf16.gmra.mrb[0].mxu0 %v1152
    %v1220 = vpop.f32.mrb[0].mxu0
    %v1221 = vadd.f32 0.0, %v1220
    %v1222 = vpop.f32.mrb[0].mxu0
    %v1223 = vadd.f32 0.0, %v1222
    %v1224 = vpop.f32.mrb[0].mxu0
    %v1225 = vadd.f32 0.0, %v1224
    %v1226 = vpop.f32.mrb[0].mxu0
    %v1227 = vadd.f32 0.0, %v1226
    %1228 = vmatprep.mubr.bf16.mxu0 0
    %1229 = vmatmul.mubr.bf16.gmra.mrb[0].mxu0 %v1153
    %v1230 = vpop.f32.mrb[0].mxu0
    %v1231 = vadd.f32 0.0, %v1230
    %v1232 = vpop.f32.mrb[0].mxu0
    %v1233 = vadd.f32 0.0, %v1232
    %v1234 = vpop.f32.mrb[0].mxu0
    %v1235 = vadd.f32 0.0, %v1234
    %v1236 = vpop.f32.mrb[0].mxu0
    %v1237 = vadd.f32 0.0, %v1236
    %1238 = vmatprep.mubr.bf16.mxu0 0
    %1239 = vmatmul.mubr.bf16.gmra.mrb[0].mxu0 %v1154
    %v1240 = vpop.f32.mrb[0].mxu0
    %v1241 = vadd.f32 0.0, %v1240
    %v1242 = vpop.f32.mrb[0].mxu0
    %v1243 = vadd.f32 0.0, %v1242
    %v1244 = vpop.f32.mrb[0].mxu0
    %v1245 = vadd.f32 0.0, %v1244
    %v1246 = vpop.f32.mrb[0].mxu0
    %v1247 = vadd.f32 0.0, %v1246
    %1248 = vmatprep.mubr.bf16.mxu0 0
    %1249 = vmatmul.mubr.bf16.gmra.mrb[0].mxu0 %v1155
    %v1250 = vpop.f32.mrb[0].mxu0
    %v1251 = vadd.f32 0.0, %v1250
    %v1252 = vpop.f32.mrb[0].mxu0
    %v1253 = vadd.f32 0.0, %v1252
    %v1254 = vpop.f32.mrb[0].mxu0
    %v1255 = vadd.f32 0.0, %v1254
    %v1256 = vpop.f32.mrb[0].mxu0
    %v1257 = vadd.f32 0.0, %v1256
    %1258 = vmatprep.mubr.bf16.mxu0 0
    %1259 = vmatmul.mubr.bf16.gmra.mrb[0].mxu0 %v1156
    %v1260 = vpop.f32.mrb[0].mxu0
    %v1261 = vadd.f32 0.0, %v1260
    %v1262 = vpop.f32.mrb[0].mxu0
    %v1263 = vadd.f32 0.0, %v1262
    %v1264 = vpop.f32.mrb[0].mxu0
    %v1265 = vadd.f32 0.0, %v1264
    %v1266 = vpop.f32.mrb[0].mxu0
    %v1267 = vadd.f32 0.0, %v1266
    %1268 = vmatprep.mubr.bf16.mxu0 0
    %1269 = vmatmul.mubr.bf16.gmra.mrb[0].mxu0 %v1157
    %v1270 = vpop.f32.mrb[0].mxu0
    %v1271 = vadd.f32 0.0, %v1270
    %v1272 = vpop.f32.mrb[0].mxu0
    %v1273 = vadd.f32 0.0, %v1272
    %v1274 = vpop.f32.mrb[0].mxu0
    %v1275 = vadd.f32 0.0, %v1274
    %v1276 = vpop.f32.mrb[0].mxu0
    %v1277 = vadd.f32 0.0, %v1276
    %1278 = vdwg.mxu0
    %v1279 = vadd.f32 %v1070, %v1201
    %v1280 = vadd.f32 %v1071, %v1203
    %v1281 = vadd.f32 %v1072, %v1205
    %v1282 = vadd.f32 %v1073, %v1207
    %v1283 = vadd.f32 %v1074, %v1211
    %v1284 = vadd.f32 %v1075, %v1213
    %v1285 = vadd.f32 %v1076, %v1215
    %v1286 = vadd.f32 %v1077, %v1217
    %v1287 = vadd.f32 %v1078, %v1221
    %v1288 = vadd.f32 %v1079, %v1223
    %v1289 = vadd.f32 %v1080, %v1225
    %v1290 = vadd.f32 %v1081, %v1227
    %v1291 = vadd.f32 %v1082, %v1231
    %v1292 = vadd.f32 %v1083, %v1233
    %v1293 = vadd.f32 %v1084, %v1235
    %v1294 = vadd.f32 %v1085, %v1237
    %v1295 = vadd.f32 %v1086, %v1241
    %v1296 = vadd.f32 %v1087, %v1243
    %v1297 = vadd.f32 %v1088, %v1245
    %v1298 = vadd.f32 %v1089, %v1247
    %v1299 = vadd.f32 %v1090, %v1251
    %v1300 = vadd.f32 %v1091, %v1253
    %v1301 = vadd.f32 %v1092, %v1255
    %v1302 = vadd.f32 %v1093, %v1257
    %v1303 = vadd.f32 %v1094, %v1261
    %v1304 = vadd.f32 %v1095, %v1263
    %v1305 = vadd.f32 %v1096, %v1265
    %v1306 = vadd.f32 %v1097, %v1267
    %v1307 = vadd.f32 %v1098, %v1271
    %v1308 = vadd.f32 %v1099, %v1273
    %v1309 = vadd.f32 %v1100, %v1275
    %v1310 = vadd.f32 %v1101, %v1277
    %1311 = vst [vmem:[#allocation3] sm:$0xff] %v1279
    %1312 = vst [vmem:[#allocation3 + $0x8] sm:$0xff] %v1280
    %1313 = vst [vmem:[#allocation3 + $0x10] sm:$0xff] %v1281
    %1314 = vst [vmem:[#allocation3 + $0x18] sm:$0xff] %v1282
    %1315 = vst [vmem:[#allocation3 + $0x20] sm:$0xff] %v1283
    %1316 = vst [vmem:[#allocation3 + $0x28] sm:$0xff] %v1284
    %1317 = vst [vmem:[#allocation3 + $0x30] sm:$0xff] %v1285
    %1318 = vst [vmem:[#allocation3 + $0x38] sm:$0xff] %v1286
    %1319 = vst [vmem:[#allocation3 + $0x40] sm:$0xff] %v1287
    %1320 = vst [vmem:[#allocation3 + $0x48] sm:$0xff] %v1288
    %1321 = vst [vmem:[#allocation3 + $0x50] sm:$0xff] %v1289
    %1322 = vst [vmem:[#allocation3 + $0x58] sm:$0xff] %v1290
    %1323 = vst [vmem:[#allocation3 + $0x60] sm:$0xff] %v1291
    %1324 = vst [vmem:[#allocation3 + $0x68] sm:$0xff] %v1292
    %1325 = vst [vmem:[#allocation3 + $0x70] sm:$0xff] %v1293
    %1326 = vst [vmem:[#allocation3 + $0x78] sm:$0xff] %v1294
    %1327 = vst [vmem:[#allocation3 + $0x80] sm:$0xff] %v1295
    %1328 = vst [vmem:[#allocation3 + $0x88] sm:$0xff] %v1296
    %1329 = vst [vmem:[#allocation3 + $0x90] sm:$0xff] %v1297
    %1330 = vst [vmem:[#allocation3 + $0x98] sm:$0xff] %v1298
    %1331 = vst [vmem:[#allocation3 + $0xa0] sm:$0xff] %v1299
    %1332 = vst [vmem:[#allocation3 + $0xa8] sm:$0xff] %v1300
    %1333 = vst [vmem:[#allocation3 + $0xb0] sm:$0xff] %v1301
    %1334 = vst [vmem:[#allocation3 + $0xb8] sm:$0xff] %v1302
    %1335 = vst [vmem:[#allocation3 + $0xc0] sm:$0xff] %v1303
    %1336 = vst [vmem:[#allocation3 + $0xc8] sm:$0xff] %v1304
    %1337 = vst [vmem:[#allocation3 + $0xd0] sm:$0xff] %v1305
    %1338 = vst [vmem:[#allocation3 + $0xd8] sm:$0xff] %v1306
    %1339 = vst [vmem:[#allocation3 + $0xe0] sm:$0xff] %v1307
    %1340 = vst [vmem:[#allocation3 + $0xe8] sm:$0xff] %v1308
    %1341 = vst [vmem:[#allocation3 + $0xf0] sm:$0xff] %v1309
    %1342 = vst [vmem:[#allocation3 + $0xf8] sm:$0xff] %v1310
    // Predicated region
    $region58: #{rgib_forward.1} parent=1 // pred_check
      %p1343 = pneg %p55
    $region59: #{rgib_forward.1} parent=1 // pred_check_branch
      %1345 = sbr.rel (%p1343) target = $region61
    $region60: #{rgib_forward.1} parent=1 // pred_region
      %s1346 = sld [smem:[#allocation4]]
      %s1347 = sld [smem:[#allocation4 + $0x1]]
      %s1348 = sld [smem:[#allocation4 + $0x2]]
      %s1349 = sld [smem:[#allocation4 + $0x3]]
      %v1350 = vld [vmem:[#allocation2] sm:$0xff]
      %v1351 = vld [vmem:[#allocation2 + $0x8] sm:$0xff]
      %v1352 = vld [vmem:[#allocation2 + $0x10] sm:$0xff]
      %v1353 = vld [vmem:[#allocation2 + $0x18] sm:$0xff]
      %v1354 = vld [vmem:[#allocation2 + $0x20] sm:$0xff]
      %v1355 = vld [vmem:[#allocation2 + $0x28] sm:$0xff]
      %v1356 = vld [vmem:[#allocation2 + $0x30] sm:$0xff]
      %v1357 = vld [vmem:[#allocation2 + $0x38] sm:$0xff]
      %v1358 = vld [vmem:[#allocation2 + $0x40] sm:$0xff]
      %v1359 = vld [vmem:[#allocation2 + $0x48] sm:$0xff]
      %v1360 = vld [vmem:[#allocation2 + $0x50] sm:$0xff]
      %v1361 = vld [vmem:[#allocation2 + $0x58] sm:$0xff]
      %v1362 = vld [vmem:[#allocation2 + $0x60] sm:$0xff]
      %v1363 = vld [vmem:[#allocation2 + $0x68] sm:$0xff]
      %v1364 = vld [vmem:[#allocation2 + $0x70] sm:$0xff]
      %v1365 = vld [vmem:[#allocation2 + $0x78] sm:$0xff]
      %v1366 = vld [vmem:[#allocation2 + $0x80] sm:$0xff]
      %v1367 = vld [vmem:[#allocation2 + $0x88] sm:$0xff]
      %v1368 = vld [vmem:[#allocation2 + $0x90] sm:$0xff]
      %v1369 = vld [vmem:[#allocation2 + $0x98] sm:$0xff]
      %v1370 = vld [vmem:[#allocation2 + $0xa0] sm:$0xff]
      %v1371 = vld [vmem:[#allocation2 + $0xa8] sm:$0xff]
      %v1372 = vld [vmem:[#allocation2 + $0xb0] sm:$0xff]
      %v1373 = vld [vmem:[#allocation2 + $0xb8] sm:$0xff]
      %v1374 = vld [vmem:[#allocation2 + $0xc0] sm:$0xff]
      %v1375 = vld [vmem:[#allocation2 + $0xc8] sm:$0xff]
      %v1376 = vld [vmem:[#allocation2 + $0xd0] sm:$0xff]
      %v1377 = vld [vmem:[#allocation2 + $0xd8] sm:$0xff]
      %v1378 = vld [vmem:[#allocation2 + $0xe0] sm:$0xff]
      %v1379 = vld [vmem:[#allocation2 + $0xe8] sm:$0xff]
      %v1380 = vld [vmem:[#allocation2 + $0xf0] sm:$0xff]
      %v1381 = vld [vmem:[#allocation2 + $0xf8] sm:$0xff]
      %v1382 = vld [vmem:[%s5] sm:$0x3]
      %v1384 = vlaneseq
      %v1385 = vshrl.u32 %v1384, 7
      %v1386 = vsub.s32 0, %v1385
      %v1387 = vrot.slane %v1382, %v1386
      %v1388 = vlaneseq
      %v1389 = vshrl.u32 %v1388, 7
      %v1390 = vsub.s32 1, %v1389
      %v1391 = vrot.slane %v1382, %v1390
      %v1394 = vadd.f32 %v1350, %v1387
      %v1395 = vadd.f32 %v1351, %v1391
      %v1396 = vadd.f32 %v1352, %v1387
      %v1397 = vadd.f32 %v1353, %v1391
      %v1398 = vadd.f32 %v1354, %v1387
      %v1399 = vadd.f32 %v1355, %v1391
      %v1400 = vadd.f32 %v1356, %v1387
      %v1401 = vadd.f32 %v1357, %v1391
      %v1402 = vadd.f32 %v1358, %v1387
      %v1403 = vadd.f32 %v1359, %v1391
      %v1404 = vadd.f32 %v1360, %v1387
      %v1405 = vadd.f32 %v1361, %v1391
      %v1406 = vadd.f32 %v1362, %v1387
      %v1407 = vadd.f32 %v1363, %v1391
      %v1408 = vadd.f32 %v1364, %v1387
      %v1409 = vadd.f32 %v1365, %v1391
      %v1410 = vadd.f32 %v1366, %v1387
      %v1411 = vadd.f32 %v1367, %v1391
      %v1412 = vadd.f32 %v1368, %v1387
      %v1413 = vadd.f32 %v1369, %v1391
      %v1414 = vadd.f32 %v1370, %v1387
      %v1415 = vadd.f32 %v1371, %v1391
      %v1416 = vadd.f32 %v1372, %v1387
      %v1417 = vadd.f32 %v1373, %v1391
      %v1418 = vadd.f32 %v1374, %v1387
      %v1419 = vadd.f32 %v1375, %v1391
      %v1420 = vadd.f32 %v1376, %v1387
      %v1421 = vadd.f32 %v1377, %v1391
      %v1422 = vadd.f32 %v1378, %v1387
      %v1423 = vadd.f32 %v1379, %v1391
      %v1424 = vadd.f32 %v1380, %v1387
      %v1425 = vadd.f32 %v1381, %v1391
      %v1426 = vld [vmem:[#allocation3] sm:$0xff]
      %v1427 = vld [vmem:[#allocation3 + $0x8] sm:$0xff]
      %v1428 = vld [vmem:[#allocation3 + $0x10] sm:$0xff]
      %v1429 = vld [vmem:[#allocation3 + $0x18] sm:$0xff]
      %v1430 = vld [vmem:[#allocation3 + $0x20] sm:$0xff]
      %v1431 = vld [vmem:[#allocation3 + $0x28] sm:$0xff]
      %v1432 = vld [vmem:[#allocation3 + $0x30] sm:$0xff]
      %v1433 = vld [vmem:[#allocation3 + $0x38] sm:$0xff]
      %v1434 = vld [vmem:[#allocation3 + $0x40] sm:$0xff]
      %v1435 = vld [vmem:[#allocation3 + $0x48] sm:$0xff]
      %v1436 = vld [vmem:[#allocation3 + $0x50] sm:$0xff]
      %v1437 = vld [vmem:[#allocation3 + $0x58] sm:$0xff]
      %v1438 = vld [vmem:[#allocation3 + $0x60] sm:$0xff]
      %v1439 = vld [vmem:[#allocation3 + $0x68] sm:$0xff]
      %v1440 = vld [vmem:[#allocation3 + $0x70] sm:$0xff]
      %v1441 = vld [vmem:[#allocation3 + $0x78] sm:$0xff]
      %v1442 = vld [vmem:[#allocation3 + $0x80] sm:$0xff]
      %v1443 = vld [vmem:[#allocation3 + $0x88] sm:$0xff]
      %v1444 = vld [vmem:[#allocation3 + $0x90] sm:$0xff]
      %v1445 = vld [vmem:[#allocation3 + $0x98] sm:$0xff]
      %v1446 = vld [vmem:[#allocation3 + $0xa0] sm:$0xff]
      %v1447 = vld [vmem:[#allocation3 + $0xa8] sm:$0xff]
      %v1448 = vld [vmem:[#allocation3 + $0xb0] sm:$0xff]
      %v1449 = vld [vmem:[#allocation3 + $0xb8] sm:$0xff]
      %v1450 = vld [vmem:[#allocation3 + $0xc0] sm:$0xff]
      %v1451 = vld [vmem:[#allocation3 + $0xc8] sm:$0xff]
      %v1452 = vld [vmem:[#allocation3 + $0xd0] sm:$0xff]
      %v1453 = vld [vmem:[#allocation3 + $0xd8] sm:$0xff]
      %v1454 = vld [vmem:[#allocation3 + $0xe0] sm:$0xff]
      %v1455 = vld [vmem:[#allocation3 + $0xe8] sm:$0xff]
      %v1456 = vld [vmem:[#allocation3 + $0xf0] sm:$0xff]
      %v1457 = vld [vmem:[#allocation3 + $0xf8] sm:$0xff]
      %v1458 = vadd.f32 %v1426, %v1387
      %v1459 = vadd.f32 %v1427, %v1391
      %v1460 = vadd.f32 %v1428, %v1387
      %v1461 = vadd.f32 %v1429, %v1391
      %v1462 = vadd.f32 %v1430, %v1387
      %v1463 = vadd.f32 %v1431, %v1391
      %v1464 = vadd.f32 %v1432, %v1387
      %v1465 = vadd.f32 %v1433, %v1391
      %v1466 = vadd.f32 %v1434, %v1387
      %v1467 = vadd.f32 %v1435, %v1391
      %v1468 = vadd.f32 %v1436, %v1387
      %v1469 = vadd.f32 %v1437, %v1391
      %v1470 = vadd.f32 %v1438, %v1387
      %v1471 = vadd.f32 %v1439, %v1391
      %v1472 = vadd.f32 %v1440, %v1387
      %v1473 = vadd.f32 %v1441, %v1391
      %v1474 = vadd.f32 %v1442, %v1387
      %v1475 = vadd.f32 %v1443, %v1391
      %v1476 = vadd.f32 %v1444, %v1387
      %v1477 = vadd.f32 %v1445, %v1391
      %v1478 = vadd.f32 %v1446, %v1387
      %v1479 = vadd.f32 %v1447, %v1391
      %v1480 = vadd.f32 %v1448, %v1387
      %v1481 = vadd.f32 %v1449, %v1391
      %v1482 = vadd.f32 %v1450, %v1387
      %v1483 = vadd.f32 %v1451, %v1391
      %v1484 = vadd.f32 %v1452, %v1387
      %v1485 = vadd.f32 %v1453, %v1391
      %v1486 = vadd.f32 %v1454, %v1387
      %v1487 = vadd.f32 %v1455, %v1391
      %v1488 = vadd.f32 %v1456, %v1387
      %v1489 = vadd.f32 %v1457, %v1391
      %vm1490 = vcmp.gt.f32.partialorder %v1394, 0.0
      %vm1491 = vcmp.gt.f32.partialorder %v1396, 0.0
      %vm1492 = vcmp.gt.f32.partialorder %v1398, 0.0
      %vm1493 = vcmp.gt.f32.partialorder %v1400, 0.0
      %vm1494 = vcmp.gt.f32.partialorder %v1402, 0.0
      %vm1495 = vcmp.gt.f32.partialorder %v1404, 0.0
      %vm1496 = vcmp.gt.f32.partialorder %v1406, 0.0
      %vm1497 = vcmp.gt.f32.partialorder %v1408, 0.0
      %vm1498 = vcmp.gt.f32.partialorder %v1410, 0.0
      %vm1499 = vcmp.gt.f32.partialorder %v1412, 0.0
      %vm1500 = vcmp.gt.f32.partialorder %v1414, 0.0
      %vm1501 = vcmp.gt.f32.partialorder %v1416, 0.0
      %vm1502 = vcmp.gt.f32.partialorder %v1418, 0.0
      %vm1503 = vcmp.gt.f32.partialorder %v1420, 0.0
      %vm1504 = vcmp.gt.f32.partialorder %v1422, 0.0
      %vm1505 = vcmp.gt.f32.partialorder %v1424, 0.0
      %v1506 = vstv %s1346
      %v1507 = vmul.f32 %v1506, %v1394
      %v1508 = vmul.f32 %v1506, %v1396
      %v1509 = vmul.f32 %v1506, %v1398
      %v1510 = vmul.f32 %v1506, %v1400
      %v1511 = vmul.f32 %v1506, %v1402
      %v1512 = vmul.f32 %v1506, %v1404
      %v1513 = vmul.f32 %v1506, %v1406
      %v1514 = vmul.f32 %v1506, %v1408
      %v1515 = vmul.f32 %v1506, %v1410
      %v1516 = vmul.f32 %v1506, %v1412
      %v1517 = vmul.f32 %v1506, %v1414
      %v1518 = vmul.f32 %v1506, %v1416
      %v1519 = vmul.f32 %v1506, %v1418
      %v1520 = vmul.f32 %v1506, %v1420
      %v1521 = vmul.f32 %v1506, %v1422
      %v1522 = vmul.f32 %v1506, %v1424
      %v1523 = vsel %vm1490, %v1394, %v1507
      %v1524 = vsel %vm1491, %v1396, %v1508
      %v1525 = vsel %vm1492, %v1398, %v1509
      %v1526 = vsel %vm1493, %v1400, %v1510
      %v1527 = vsel %vm1494, %v1402, %v1511
      %v1528 = vsel %vm1495, %v1404, %v1512
      %v1529 = vsel %vm1496, %v1406, %v1513
      %v1530 = vsel %vm1497, %v1408, %v1514
      %v1531 = vsel %vm1498, %v1410, %v1515
      %v1532 = vsel %vm1499, %v1412, %v1516
      %v1533 = vsel %vm1500, %v1414, %v1517
      %v1534 = vsel %vm1501, %v1416, %v1518
      %v1535 = vsel %vm1502, %v1418, %v1519
      %v1536 = vsel %vm1503, %v1420, %v1520
      %v1537 = vsel %vm1504, %v1422, %v1521
      %v1538 = vsel %vm1505, %v1424, %v1522
      %vm1539 = vcmp.gt.f32.partialorder %v1395, 0.0
      %vm1540 = vcmp.gt.f32.partialorder %v1397, 0.0
      %vm1541 = vcmp.gt.f32.partialorder %v1399, 0.0
      %vm1542 = vcmp.gt.f32.partialorder %v1401, 0.0
      %vm1543 = vcmp.gt.f32.partialorder %v1403, 0.0
      %vm1544 = vcmp.gt.f32.partialorder %v1405, 0.0
      %vm1545 = vcmp.gt.f32.partialorder %v1407, 0.0
      %vm1546 = vcmp.gt.f32.partialorder %v1409, 0.0
      %vm1547 = vcmp.gt.f32.partialorder %v1411, 0.0
      %vm1548 = vcmp.gt.f32.partialorder %v1413, 0.0
      %vm1549 = vcmp.gt.f32.partialorder %v1415, 0.0
      %vm1550 = vcmp.gt.f32.partialorder %v1417, 0.0
      %vm1551 = vcmp.gt.f32.partialorder %v1419, 0.0
      %vm1552 = vcmp.gt.f32.partialorder %v1421, 0.0
      %vm1553 = vcmp.gt.f32.partialorder %v1423, 0.0
      %vm1554 = vcmp.gt.f32.partialorder %v1425, 0.0
      %v1555 = vmul.f32 %v1506, %v1395
      %v1556 = vmul.f32 %v1506, %v1397
      %v1557 = vmul.f32 %v1506, %v1399
      %v1558 = vmul.f32 %v1506, %v1401
      %v1559 = vmul.f32 %v1506, %v1403
      %v1560 = vmul.f32 %v1506, %v1405
      %v1561 = vmul.f32 %v1506, %v1407
      %v1562 = vmul.f32 %v1506, %v1409
      %v1563 = vmul.f32 %v1506, %v1411
      %v1564 = vmul.f32 %v1506, %v1413
      %v1565 = vmul.f32 %v1506, %v1415
      %v1566 = vmul.f32 %v1506, %v1417
      %v1567 = vmul.f32 %v1506, %v1419
      %v1568 = vmul.f32 %v1506, %v1421
      %v1569 = vmul.f32 %v1506, %v1423
      %v1570 = vmul.f32 %v1506, %v1425
      %v1571 = vsel %vm1539, %v1395, %v1555
      %v1572 = vsel %vm1540, %v1397, %v1556
      %v1573 = vsel %vm1541, %v1399, %v1557
      %v1574 = vsel %vm1542, %v1401, %v1558
      %v1575 = vsel %vm1543, %v1403, %v1559
      %v1576 = vsel %vm1544, %v1405, %v1560
      %v1577 = vsel %vm1545, %v1407, %v1561
      %v1578 = vsel %vm1546, %v1409, %v1562
      %v1579 = vsel %vm1547, %v1411, %v1563
      %v1580 = vsel %vm1548, %v1413, %v1564
      %v1581 = vsel %vm1549, %v1415, %v1565
      %v1582 = vsel %vm1550, %v1417, %v1566
      %v1583 = vsel %vm1551, %v1419, %v1567
      %v1584 = vsel %vm1552, %v1421, %v1568
      %v1585 = vsel %vm1553, %v1423, %v1569
      %v1586 = vsel %vm1554, %v1425, %v1570
      %vm1587 = vcmp.gt.f32.partialorder %v1458, 0.0
      %vm1588 = vcmp.gt.f32.partialorder %v1460, 0.0
      %vm1589 = vcmp.gt.f32.partialorder %v1462, 0.0
      %vm1590 = vcmp.gt.f32.partialorder %v1464, 0.0
      %vm1591 = vcmp.gt.f32.partialorder %v1466, 0.0
      %vm1592 = vcmp.gt.f32.partialorder %v1468, 0.0
      %vm1593 = vcmp.gt.f32.partialorder %v1470, 0.0
      %vm1594 = vcmp.gt.f32.partialorder %v1472, 0.0
      %vm1595 = vcmp.gt.f32.partialorder %v1474, 0.0
      %vm1596 = vcmp.gt.f32.partialorder %v1476, 0.0
      %vm1597 = vcmp.gt.f32.partialorder %v1478, 0.0
      %vm1598 = vcmp.gt.f32.partialorder %v1480, 0.0
      %vm1599 = vcmp.gt.f32.partialorder %v1482, 0.0
      %vm1600 = vcmp.gt.f32.partialorder %v1484, 0.0
      %vm1601 = vcmp.gt.f32.partialorder %v1486, 0.0
      %vm1602 = vcmp.gt.f32.partialorder %v1488, 0.0
      %v1603 = vmul.f32 %v1506, %v1458
      %v1604 = vmul.f32 %v1506, %v1460
      %v1605 = vmul.f32 %v1506, %v1462
      %v1606 = vmul.f32 %v1506, %v1464
      %v1607 = vmul.f32 %v1506, %v1466
      %v1608 = vmul.f32 %v1506, %v1468
      %v1609 = vmul.f32 %v1506, %v1470
      %v1610 = vmul.f32 %v1506, %v1472
      %v1611 = vmul.f32 %v1506, %v1474
      %v1612 = vmul.f32 %v1506, %v1476
      %v1613 = vmul.f32 %v1506, %v1478
      %v1614 = vmul.f32 %v1506, %v1480
      %v1615 = vmul.f32 %v1506, %v1482
      %v1616 = vmul.f32 %v1506, %v1484
      %v1617 = vmul.f32 %v1506, %v1486
      %v1618 = vmul.f32 %v1506, %v1488
      %v1619 = vsel %vm1587, %v1458, %v1603
      %v1620 = vsel %vm1588, %v1460, %v1604
      %v1621 = vsel %vm1589, %v1462, %v1605
      %v1622 = vsel %vm1590, %v1464, %v1606
      %v1623 = vsel %vm1591, %v1466, %v1607
      %v1624 = vsel %vm1592, %v1468, %v1608
      %v1625 = vsel %vm1593, %v1470, %v1609
      %v1626 = vsel %vm1594, %v1472, %v1610
      %v1627 = vsel %vm1595, %v1474, %v1611
      %v1628 = vsel %vm1596, %v1476, %v1612
      %v1629 = vsel %vm1597, %v1478, %v1613
      %v1630 = vsel %vm1598, %v1480, %v1614
      %v1631 = vsel %vm1599, %v1482, %v1615
      %v1632 = vsel %vm1600, %v1484, %v1616
      %v1633 = vsel %vm1601, %v1486, %v1617
      %v1634 = vsel %vm1602, %v1488, %v1618
      %vm1635 = vcmp.gt.f32.partialorder %v1459, 0.0
      %vm1636 = vcmp.gt.f32.partialorder %v1461, 0.0
      %vm1637 = vcmp.gt.f32.partialorder %v1463, 0.0
      %vm1638 = vcmp.gt.f32.partialorder %v1465, 0.0
      %vm1639 = vcmp.gt.f32.partialorder %v1467, 0.0
      %vm1640 = vcmp.gt.f32.partialorder %v1469, 0.0
      %vm1641 = vcmp.gt.f32.partialorder %v1471, 0.0
      %vm1642 = vcmp.gt.f32.partialorder %v1473, 0.0
      %vm1643 = vcmp.gt.f32.partialorder %v1475, 0.0
      %vm1644 = vcmp.gt.f32.partialorder %v1477, 0.0
      %vm1645 = vcmp.gt.f32.partialorder %v1479, 0.0
      %vm1646 = vcmp.gt.f32.partialorder %v1481, 0.0
      %vm1647 = vcmp.gt.f32.partialorder %v1483, 0.0
      %vm1648 = vcmp.gt.f32.partialorder %v1485, 0.0
      %vm1649 = vcmp.gt.f32.partialorder %v1487, 0.0
      %vm1650 = vcmp.gt.f32.partialorder %v1489, 0.0
      %v1651 = vmul.f32 %v1506, %v1459
      %v1652 = vmul.f32 %v1506, %v1461
      %v1653 = vmul.f32 %v1506, %v1463
      %v1654 = vmul.f32 %v1506, %v1465
      %v1655 = vmul.f32 %v1506, %v1467
      %v1656 = vmul.f32 %v1506, %v1469
      %v1657 = vmul.f32 %v1506, %v1471
      %v1658 = vmul.f32 %v1506, %v1473
      %v1659 = vmul.f32 %v1506, %v1475
      %v1660 = vmul.f32 %v1506, %v1477
      %v1661 = vmul.f32 %v1506, %v1479
      %v1662 = vmul.f32 %v1506, %v1481
      %v1663 = vmul.f32 %v1506, %v1483
      %v1664 = vmul.f32 %v1506, %v1485
      %v1665 = vmul.f32 %v1506, %v1487
      %v1666 = vmul.f32 %v1506, %v1489
      %v1667 = vsel %vm1635, %v1459, %v1651
      %v1668 = vsel %vm1636, %v1461, %v1652
      %v1669 = vsel %vm1637, %v1463, %v1653
      %v1670 = vsel %vm1638, %v1465, %v1654
      %v1671 = vsel %vm1639, %v1467, %v1655
      %v1672 = vsel %vm1640, %v1469, %v1656
      %v1673 = vsel %vm1641, %v1471, %v1657
      %v1674 = vsel %vm1642, %v1473, %v1658
      %v1675 = vsel %vm1643, %v1475, %v1659
      %v1676 = vsel %vm1644, %v1477, %v1660
      %v1677 = vsel %vm1645, %v1479, %v1661
      %v1678 = vsel %vm1646, %v1481, %v1662
      %v1679 = vsel %vm1647, %v1483, %v1663
      %v1680 = vsel %vm1648, %v1485, %v1664
      %v1681 = vsel %vm1649, %v1487, %v1665
      %v1682 = vsel %vm1650, %v1489, %v1666
      %v1683 = vadd.f32 %v1523, %v1524
      %v1684 = vadd.f32 %v1683, %v1525
      %v1685 = vadd.f32 %v1684, %v1526
      %v1686 = vadd.f32 %v1685, %v1527
      %v1687 = vadd.f32 %v1686, %v1528
      %v1688 = vadd.f32 %v1687, %v1529
      %v1689 = vadd.f32 %v1688, %v1530
      %v1690 = vadd.f32 %v1689, %v1531
      %v1691 = vadd.f32 %v1690, %v1532
      %v1692 = vadd.f32 %v1691, %v1533
      %v1693 = vadd.f32 %v1692, %v1534
      %v1694 = vadd.f32 %v1693, %v1535
      %v1695 = vadd.f32 %v1694, %v1536
      %v1696 = vadd.f32 %v1695, %v1537
      %v1697 = vadd.f32 %v1696, %v1538
      %v1698 = vrot.slane %v1697, 4
      %v1699 = vadd.f32 %v1697, %v1698
      %v1700 = vrot.slane %v1699, 2
      %v1701 = vadd.f32 %v1699, %v1700
      %v1702 = vrot.slane %v1701, 1
      %v1703 = vadd.f32 %v1701, %v1702
      %v1704 = vrcp.pop 128.0
      %v1705 = vmul.f32 %v1703, %v1704
      %v1706 = vsub.f32 0.0, %v1705
      %v1707 = vmul.f32 %v1706, 1.442695
      %v1708 = vpow.pop %v1707
      %v1709 = vadd.f32 %v1708, 1.0
      %v1710 = vrcp.pop %v1709
      %v1711 = vld [vmem:[%s6] sm:$0xff]
      %v1712 = vld [vmem:[%s6 + $0x8] sm:$0xff]
      %v1713 = vld [vmem:[%s6 + $0x10] sm:$0xff]
      %v1714 = vld [vmem:[%s6 + $0x18] sm:$0xff]
      %v1715 = vld [vmem:[%s6 + $0x20] sm:$0xff]
      %v1716 = vld [vmem:[%s6 + $0x28] sm:$0xff]
      %v1717 = vld [vmem:[%s6 + $0x30] sm:$0xff]
      %v1718 = vld [vmem:[%s6 + $0x38] sm:$0xff]
      %v1719 = vld [vmem:[%s6 + $0x40] sm:$0xff]
      %v1720 = vld [vmem:[%s6 + $0x48] sm:$0xff]
      %v1721 = vld [vmem:[%s6 + $0x50] sm:$0xff]
      %v1722 = vld [vmem:[%s6 + $0x58] sm:$0xff]
      %v1723 = vld [vmem:[%s6 + $0x60] sm:$0xff]
      %v1724 = vld [vmem:[%s6 + $0x68] sm:$0xff]
      %v1725 = vld [vmem:[%s6 + $0x70] sm:$0xff]
      %v1726 = vld [vmem:[%s6 + $0x78] sm:$0xff]
      %v1727 = vld [vmem:[%s7] sm:$0x1]
      %v1729 = vlaneseq
      %v1730 = vshrl.u32 %v1729, 7
      %v1731 = vsub.s32 0, %v1730
      %v1732 = vrot.slane %v1727, %v1731
      %1734 = vmatprep.subr.mxu0 0.0
      %1735 = vmatpush1.msra.mxu0 %v1711
      %1736 = vmatprep.subr.mxu0 0.0
      %1737 = vmatpush1.msra.mxu0 %v1712
      %1738 = vmatprep.subr.mxu0 0.0
      %1739 = vmatpush1.msra.mxu0 %v1713
      %1740 = vmatprep.subr.mxu0 0.0
      %1741 = vmatpush1.msra.mxu0 %v1714
      %1742 = vmatprep.subr.mxu0 0.0
      %1743 = vmatpush1.msra.mxu0 %v1715
      %1744 = vmatprep.subr.mxu0 0.0
      %1745 = vmatpush1.msra.mxu0 %v1716
      %1746 = vmatprep.subr.mxu0 0.0
      %1747 = vmatpush1.msra.mxu0 %v1717
      %1748 = vmatprep.subr.mxu0 0.0
      %1749 = vmatpush1.msra.mxu0 %v1718
      %1750 = vmatprep.subr.mxu0 0.0
      %1751 = vmatpush1.msra.mxu0 %v1719
      %1752 = vmatprep.subr.mxu0 0.0
      %1753 = vmatpush1.msra.mxu0 %v1720
      %1754 = vmatprep.subr.mxu0 0.0
      %1755 = vmatpush1.msra.mxu0 %v1721
      %1756 = vmatprep.subr.mxu0 0.0
      %1757 = vmatpush1.msra.mxu0 %v1722
      %1758 = vmatprep.subr.mxu0 0.0
      %1759 = vmatpush1.msra.mxu0 %v1723
      %1760 = vmatprep.subr.mxu0 0.0
      %1761 = vmatpush1.msra.mxu0 %v1724
      %1762 = vmatprep.subr.mxu0 0.0
      %1763 = vmatpush1.msra.mxu0 %v1725
      %1764 = vmatprep.subr.mxu0 0.0
      %1765 = vmatpush1.msra.mxu0 %v1726
      %1766 = vmatprep.subr.mxu0 0.0
      %1767 = vmatpush1.msra.mxu0 0.0
      %1768 = vmatprep.subr.mxu0 0.0
      %1769 = vmatpush1.msra.mxu0 0.0
      %1770 = vmatprep.subr.mxu0 0.0
      %1771 = vmatpush1.msra.mxu0 0.0
      %1772 = vmatprep.subr.mxu0 0.0
      %1773 = vmatpush1.msra.mxu0 0.0
      %1774 = vmatprep.subr.mxu0 0.0
      %1775 = vmatpush1.msra.mxu0 0.0
      %1776 = vmatprep.subr.mxu0 0.0
      %1777 = vmatpush1.msra.mxu0 0.0
      %1778 = vmatprep.subr.mxu0 0.0
      %1779 = vmatpush1.msra.mxu0 0.0
      %1780 = vmatprep.subr.mxu0 0.0
      %1781 = vmatpush1.msra.mxu0 0.0
      %1782 = vmatprep.subr.mxu0 0.0
      %1783 = vmatpush1.msra.mxu0 0.0
      %1784 = vmatprep.subr.mxu0 0.0
      %1785 = vmatpush1.msra.mxu0 0.0
      %1786 = vmatprep.subr.mxu0 0.0
      %1787 = vmatpush1.msra.mxu0 0.0
      %1788 = vmatprep.subr.mxu0 0.0
      %1789 = vmatpush1.msra.mxu0 0.0
      %1790 = vmatprep.subr.mxu0 0.0
      %1791 = vmatpush1.msra.mxu0 0.0
      %1792 = vmatprep.subr.mxu0 0.0
      %1793 = vmatpush1.msra.mxu0 0.0
      %1794 = vmatprep.subr.mxu0 0.0
      %1795 = vmatpush1.msra.mxu0 0.0
      %1796 = vmatprep.subr.mxu0 0.0
      %1797 = vmatpush1.msra.mxu0 0.0
      %1798 = vmatprep.mubr.f32.mxu0 0.0
      %1799 = vmatmul.mubr.f32.gmra.mrb[0].mxu0 %v1394
      %v1800 = vpop.f32.mrb[0].mxu0
      %v1801 = vadd.f32 %v1732, %v1800
      %v1802 = vpop.f32.mrb[0].mxu0
      %1803 = vmatprep.mubr.f32.mxu0 0.0
      %1804 = vmatmul.mubr.f32.gmra.mrb[0].mxu0 %v1396
      %v1805 = vpop.f32.mrb[0].mxu0
      %v1806 = vadd.f32 %v1732, %v1805
      %v1807 = vpop.f32.mrb[0].mxu0
      %1808 = vmatprep.mubr.f32.mxu0 0.0
      %1809 = vmatmul.mubr.f32.gmra.mrb[0].mxu0 %v1398
      %v1810 = vpop.f32.mrb[0].mxu0
      %v1811 = vadd.f32 %v1732, %v1810
      %v1812 = vpop.f32.mrb[0].mxu0
      %1813 = vmatprep.mubr.f32.mxu0 0.0
      %1814 = vmatmul.mubr.f32.gmra.mrb[0].mxu0 %v1400
      %v1815 = vpop.f32.mrb[0].mxu0
      %v1816 = vadd.f32 %v1732, %v1815
      %v1817 = vpop.f32.mrb[0].mxu0
      %1818 = vmatprep.mubr.f32.mxu0 0.0
      %1819 = vmatmul.mubr.f32.gmra.mrb[0].mxu0 %v1402
      %v1820 = vpop.f32.mrb[0].mxu0
      %v1821 = vadd.f32 %v1732, %v1820
      %v1822 = vpop.f32.mrb[0].mxu0
      %1823 = vmatprep.mubr.f32.mxu0 0.0
      %1824 = vmatmul.mubr.f32.gmra.mrb[0].mxu0 %v1404
      %v1825 = vpop.f32.mrb[0].mxu0
      %v1826 = vadd.f32 %v1732, %v1825
      %v1827 = vpop.f32.mrb[0].mxu0
      %1828 = vmatprep.mubr.f32.mxu0 0.0
      %1829 = vmatmul.mubr.f32.gmra.mrb[0].mxu0 %v1406
      %v1830 = vpop.f32.mrb[0].mxu0
      %v1831 = vadd.f32 %v1732, %v1830
      %v1832 = vpop.f32.mrb[0].mxu0
      %1833 = vmatprep.mubr.f32.mxu0 0.0
      %1834 = vmatmul.mubr.f32.gmra.mrb[0].mxu0 %v1408
      %v1835 = vpop.f32.mrb[0].mxu0
      %v1836 = vadd.f32 %v1732, %v1835
      %v1837 = vpop.f32.mrb[0].mxu0
      %1838 = vmatprep.mubr.f32.mxu0 0.0
      %1839 = vmatmul.mubr.f32.gmra.mrb[0].mxu0 %v1410
      %v1840 = vpop.f32.mrb[0].mxu0
      %v1841 = vadd.f32 %v1732, %v1840
      %v1842 = vpop.f32.mrb[0].mxu0
      %1843 = vmatprep.mubr.f32.mxu0 0.0
      %1844 = vmatmul.mubr.f32.gmra.mrb[0].mxu0 %v1412
      %v1845 = vpop.f32.mrb[0].mxu0
      %v1846 = vadd.f32 %v1732, %v1845
      %v1847 = vpop.f32.mrb[0].mxu0
      %1848 = vmatprep.mubr.f32.mxu0 0.0
      %1849 = vmatmul.mubr.f32.gmra.mrb[0].mxu0 %v1414
      %v1850 = vpop.f32.mrb[0].mxu0
      %v1851 = vadd.f32 %v1732, %v1850
      %v1852 = vpop.f32.mrb[0].mxu0
      %1853 = vmatprep.mubr.f32.mxu0 0.0
      %1854 = vmatmul.mubr.f32.gmra.mrb[0].mxu0 %v1416
      %v1855 = vpop.f32.mrb[0].mxu0
      %v1856 = vadd.f32 %v1732, %v1855
      %v1857 = vpop.f32.mrb[0].mxu0
      %1858 = vmatprep.mubr.f32.mxu0 0.0
      %1859 = vmatmul.mubr.f32.gmra.mrb[0].mxu0 %v1418
      %v1860 = vpop.f32.mrb[0].mxu0
      %v1861 = vadd.f32 %v1732, %v1860
      %v1862 = vpop.f32.mrb[0].mxu0
      %1863 = vmatprep.mubr.f32.mxu0 0.0
      %1864 = vmatmul.mubr.f32.gmra.mrb[0].mxu0 %v1420
      %v1865 = vpop.f32.mrb[0].mxu0
      %v1866 = vadd.f32 %v1732, %v1865
      %v1867 = vpop.f32.mrb[0].mxu0
      %1868 = vmatprep.mubr.f32.mxu0 0.0
      %1869 = vmatmul.mubr.f32.gmra.mrb[0].mxu0 %v1422
      %v1870 = vpop.f32.mrb[0].mxu0
      %v1871 = vadd.f32 %v1732, %v1870
      %v1872 = vpop.f32.mrb[0].mxu0
      %1873 = vmatprep.mubr.f32.mxu0 0.0
      %1874 = vmatmul.mubr.f32.gmra.mrb[0].mxu0 %v1424
      %v1875 = vpop.f32.mrb[0].mxu0
      %v1876 = vadd.f32 %v1732, %v1875
      %v1877 = vpop.f32.mrb[0].mxu0
      %1878 = vdwg.mxu0
      %vm1879 = vcmp.gt.f32.partialorder %v1801, 0.0
      %vm1880 = vcmp.gt.f32.partialorder %v1806, 0.0
      %vm1881 = vcmp.gt.f32.partialorder %v1811, 0.0
      %vm1882 = vcmp.gt.f32.partialorder %v1816, 0.0
      %vm1883 = vcmp.gt.f32.partialorder %v1821, 0.0
      %vm1884 = vcmp.gt.f32.partialorder %v1826, 0.0
      %vm1885 = vcmp.gt.f32.partialorder %v1831, 0.0
      %vm1886 = vcmp.gt.f32.partialorder %v1836, 0.0
      %vm1887 = vcmp.gt.f32.partialorder %v1841, 0.0
      %vm1888 = vcmp.gt.f32.partialorder %v1846, 0.0
      %vm1889 = vcmp.gt.f32.partialorder %v1851, 0.0
      %vm1890 = vcmp.gt.f32.partialorder %v1856, 0.0
      %vm1891 = vcmp.gt.f32.partialorder %v1861, 0.0
      %vm1892 = vcmp.gt.f32.partialorder %v1866, 0.0
      %vm1893 = vcmp.gt.f32.partialorder %v1871, 0.0
      %vm1894 = vcmp.gt.f32.partialorder %v1876, 0.0
      %v1895 = vstv %s1347
      %v1896 = vmul.f32 %v1895, %v1801
      %v1897 = vmul.f32 %v1895, %v1806
      %v1898 = vmul.f32 %v1895, %v1811
      %v1899 = vmul.f32 %v1895, %v1816
      %v1900 = vmul.f32 %v1895, %v1821
      %v1901 = vmul.f32 %v1895, %v1826
      %v1902 = vmul.f32 %v1895, %v1831
      %v1903 = vmul.f32 %v1895, %v1836
      %v1904 = vmul.f32 %v1895, %v1841
      %v1905 = vmul.f32 %v1895, %v1846
      %v1906 = vmul.f32 %v1895, %v1851
      %v1907 = vmul.f32 %v1895, %v1856
      %v1908 = vmul.f32 %v1895, %v1861
      %v1909 = vmul.f32 %v1895, %v1866
      %v1910 = vmul.f32 %v1895, %v1871
      %v1911 = vmul.f32 %v1895, %v1876
      %v1912 = vsel %vm1879, %v1801, %v1896
      %v1913 = vsel %vm1880, %v1806, %v1897
      %v1914 = vsel %vm1881, %v1811, %v1898
      %v1915 = vsel %vm1882, %v1816, %v1899
      %v1916 = vsel %vm1883, %v1821, %v1900
      %v1917 = vsel %vm1884, %v1826, %v1901
      %v1918 = vsel %vm1885, %v1831, %v1902
      %v1919 = vsel %vm1886, %v1836, %v1903
      %v1920 = vsel %vm1887, %v1841, %v1904
      %v1921 = vsel %vm1888, %v1846, %v1905
      %v1922 = vsel %vm1889, %v1851, %v1906
      %v1923 = vsel %vm1890, %v1856, %v1907
      %v1924 = vsel %vm1891, %v1861, %v1908
      %v1925 = vsel %vm1892, %v1866, %v1909
      %v1926 = vsel %vm1893, %v1871, %v1910
      %v1927 = vsel %vm1894, %v1876, %v1911
      %v1928 = vld [vmem:[%s8] sm:$0xff]
      %v1929 = vld [vmem:[%s8 + $0x8] sm:$0xff]
      %v1930 = vld [vmem:[%s8 + $0x10] sm:$0xff]
      %v1931 = vld [vmem:[%s8 + $0x18] sm:$0xff]
      %v1932 = vld [vmem:[%s8 + $0x20] sm:$0xff]
      %v1933 = vld [vmem:[%s8 + $0x28] sm:$0xff]
      %v1934 = vld [vmem:[%s8 + $0x30] sm:$0xff]
      %v1935 = vld [vmem:[%s8 + $0x38] sm:$0xff]
      %v1936 = vld [vmem:[%s8 + $0x40] sm:$0xff]
      %v1937 = vld [vmem:[%s8 + $0x48] sm:$0xff]
      %v1938 = vld [vmem:[%s8 + $0x50] sm:$0xff]
      %v1939 = vld [vmem:[%s8 + $0x58] sm:$0xff]
      %v1940 = vld [vmem:[%s8 + $0x60] sm:$0xff]
      %v1941 = vld [vmem:[%s8 + $0x68] sm:$0xff]
      %v1942 = vld [vmem:[%s8 + $0x70] sm:$0xff]
      %v1943 = vld [vmem:[%s8 + $0x78] sm:$0xff]
      %v1944 = vld [vmem:[%s9] sm:$0x1]
      %v1946 = vlaneseq
      %v1947 = vshrl.u32 %v1946, 7
      %v1948 = vsub.s32 0, %v1947
      %v1949 = vrot.slane %v1944, %v1948
      %1951 = vmatprep.subr.mxu0 0.0
      %1952 = vmatpush1.msra.mxu0 %v1928
      %1953 = vmatprep.subr.mxu0 0.0
      %1954 = vmatpush1.msra.mxu0 %v1929
      %1955 = vmatprep.subr.mxu0 0.0
      %1956 = vmatpush1.msra.mxu0 %v1930
      %1957 = vmatprep.subr.mxu0 0.0
      %1958 = vmatpush1.msra.mxu0 %v1931
      %1959 = vmatprep.subr.mxu0 0.0
      %1960 = vmatpush1.msra.mxu0 %v1932
      %1961 = vmatprep.subr.mxu0 0.0
      %1962 = vmatpush1.msra.mxu0 %v1933
      %1963 = vmatprep.subr.mxu0 0.0
      %1964 = vmatpush1.msra.mxu0 %v1934
      %1965 = vmatprep.subr.mxu0 0.0
      %1966 = vmatpush1.msra.mxu0 %v1935
      %1967 = vmatprep.subr.mxu0 0.0
      %1968 = vmatpush1.msra.mxu0 %v1936
      %1969 = vmatprep.subr.mxu0 0.0
      %1970 = vmatpush1.msra.mxu0 %v1937
      %1971 = vmatprep.subr.mxu0 0.0
      %1972 = vmatpush1.msra.mxu0 %v1938
      %1973 = vmatprep.subr.mxu0 0.0
      %1974 = vmatpush1.msra.mxu0 %v1939
      %1975 = vmatprep.subr.mxu0 0.0
      %1976 = vmatpush1.msra.mxu0 %v1940
      %1977 = vmatprep.subr.mxu0 0.0
      %1978 = vmatpush1.msra.mxu0 %v1941
      %1979 = vmatprep.subr.mxu0 0.0
      %1980 = vmatpush1.msra.mxu0 %v1942
      %1981 = vmatprep.subr.mxu0 0.0
      %1982 = vmatpush1.msra.mxu0 %v1943
      %1983 = vmatprep.subr.mxu0 0.0
      %1984 = vmatpush1.msra.mxu0 0.0
      %1985 = vmatprep.subr.mxu0 0.0
      %1986 = vmatpush1.msra.mxu0 0.0
      %1987 = vmatprep.subr.mxu0 0.0
      %1988 = vmatpush1.msra.mxu0 0.0
      %1989 = vmatprep.subr.mxu0 0.0
      %1990 = vmatpush1.msra.mxu0 0.0
      %1991 = vmatprep.subr.mxu0 0.0
      %1992 = vmatpush1.msra.mxu0 0.0
      %1993 = vmatprep.subr.mxu0 0.0
      %1994 = vmatpush1.msra.mxu0 0.0
      %1995 = vmatprep.subr.mxu0 0.0
      %1996 = vmatpush1.msra.mxu0 0.0
      %1997 = vmatprep.subr.mxu0 0.0
      %1998 = vmatpush1.msra.mxu0 0.0
      %1999 = vmatprep.subr.mxu0 0.0
      %2000 = vmatpush1.msra.mxu0 0.0
      %2001 = vmatprep.subr.mxu0 0.0
      %2002 = vmatpush1.msra.mxu0 0.0
      %2003 = vmatprep.subr.mxu0 0.0
      %2004 = vmatpush1.msra.mxu0 0.0
      %2005 = vmatprep.subr.mxu0 0.0
      %2006 = vmatpush1.msra.mxu0 0.0
      %2007 = vmatprep.subr.mxu0 0.0
      %2008 = vmatpush1.msra.mxu0 0.0
      %2009 = vmatprep.subr.mxu0 0.0
      %2010 = vmatpush1.msra.mxu0 0.0
      %2011 = vmatprep.subr.mxu0 0.0
      %2012 = vmatpush1.msra.mxu0 0.0
      %2013 = vmatprep.subr.mxu0 0.0
      %2014 = vmatpush1.msra.mxu0 0.0
      %2015 = vmatprep.mubr.f32.mxu0 0.0
      %2016 = vmatmul.mubr.f32.gmra.mrb[0].mxu0 %v1912
      %v2017 = vpop.f32.mrb[0].mxu0
      %v2018 = vadd.f32 %v1949, %v2017
      %v2019 = vpop.f32.mrb[0].mxu0
      %2020 = vmatprep.mubr.f32.mxu0 0.0
      %2021 = vmatmul.mubr.f32.gmra.mrb[0].mxu0 %v1913
      %v2022 = vpop.f32.mrb[0].mxu0
      %v2023 = vadd.f32 %v1949, %v2022
      %v2024 = vpop.f32.mrb[0].mxu0
      %2025 = vmatprep.mubr.f32.mxu0 0.0
      %2026 = vmatmul.mubr.f32.gmra.mrb[0].mxu0 %v1914
      %v2027 = vpop.f32.mrb[0].mxu0
      %v2028 = vadd.f32 %v1949, %v2027
      %v2029 = vpop.f32.mrb[0].mxu0
      %2030 = vmatprep.mubr.f32.mxu0 0.0
      %2031 = vmatmul.mubr.f32.gmra.mrb[0].mxu0 %v1915
      %v2032 = vpop.f32.mrb[0].mxu0
      %v2033 = vadd.f32 %v1949, %v2032
      %v2034 = vpop.f32.mrb[0].mxu0
      %2035 = vmatprep.mubr.f32.mxu0 0.0
      %2036 = vmatmul.mubr.f32.gmra.mrb[0].mxu0 %v1916
      %v2037 = vpop.f32.mrb[0].mxu0
      %v2038 = vadd.f32 %v1949, %v2037
      %v2039 = vpop.f32.mrb[0].mxu0
      %2040 = vmatprep.mubr.f32.mxu0 0.0
      %2041 = vmatmul.mubr.f32.gmra.mrb[0].mxu0 %v1917
      %v2042 = vpop.f32.mrb[0].mxu0
      %v2043 = vadd.f32 %v1949, %v2042
      %v2044 = vpop.f32.mrb[0].mxu0
      %2045 = vmatprep.mubr.f32.mxu0 0.0
      %2046 = vmatmul.mubr.f32.gmra.mrb[0].mxu0 %v1918
      %v2047 = vpop.f32.mrb[0].mxu0
      %v2048 = vadd.f32 %v1949, %v2047
      %v2049 = vpop.f32.mrb[0].mxu0
      %2050 = vmatprep.mubr.f32.mxu0 0.0
      %2051 = vmatmul.mubr.f32.gmra.mrb[0].mxu0 %v1919
      %v2052 = vpop.f32.mrb[0].mxu0
      %v2053 = vadd.f32 %v1949, %v2052
      %v2054 = vpop.f32.mrb[0].mxu0
      %2055 = vmatprep.mubr.f32.mxu0 0.0
      %2056 = vmatmul.mubr.f32.gmra.mrb[0].mxu0 %v1920
      %v2057 = vpop.f32.mrb[0].mxu0
      %v2058 = vadd.f32 %v1949, %v2057
      %v2059 = vpop.f32.mrb[0].mxu0
      %2060 = vmatprep.mubr.f32.mxu0 0.0
      %2061 = vmatmul.mubr.f32.gmra.mrb[0].mxu0 %v1921
      %v2062 = vpop.f32.mrb[0].mxu0
      %v2063 = vadd.f32 %v1949, %v2062
      %v2064 = vpop.f32.mrb[0].mxu0
      %2065 = vmatprep.mubr.f32.mxu0 0.0
      %2066 = vmatmul.mubr.f32.gmra.mrb[0].mxu0 %v1922
      %v2067 = vpop.f32.mrb[0].mxu0
      %v2068 = vadd.f32 %v1949, %v2067
      %v2069 = vpop.f32.mrb[0].mxu0
      %2070 = vmatprep.mubr.f32.mxu0 0.0
      %2071 = vmatmul.mubr.f32.gmra.mrb[0].mxu0 %v1923
      %v2072 = vpop.f32.mrb[0].mxu0
      %v2073 = vadd.f32 %v1949, %v2072
      %v2074 = vpop.f32.mrb[0].mxu0
      %2075 = vmatprep.mubr.f32.mxu0 0.0
      %2076 = vmatmul.mubr.f32.gmra.mrb[0].mxu0 %v1924
      %v2077 = vpop.f32.mrb[0].mxu0
      %v2078 = vadd.f32 %v1949, %v2077
      %v2079 = vpop.f32.mrb[0].mxu0
      %2080 = vmatprep.mubr.f32.mxu0 0.0
      %2081 = vmatmul.mubr.f32.gmra.mrb[0].mxu0 %v1925
      %v2082 = vpop.f32.mrb[0].mxu0
      %v2083 = vadd.f32 %v1949, %v2082
      %v2084 = vpop.f32.mrb[0].mxu0
      %2085 = vmatprep.mubr.f32.mxu0 0.0
      %2086 = vmatmul.mubr.f32.gmra.mrb[0].mxu0 %v1926
      %v2087 = vpop.f32.mrb[0].mxu0
      %v2088 = vadd.f32 %v1949, %v2087
      %v2089 = vpop.f32.mrb[0].mxu0
      %2090 = vmatprep.mubr.f32.mxu0 0.0
      %2091 = vmatmul.mubr.f32.gmra.mrb[0].mxu0 %v1927
      %v2092 = vpop.f32.mrb[0].mxu0
      %v2093 = vadd.f32 %v1949, %v2092
      %v2094 = vpop.f32.mrb[0].mxu0
      %2095 = vdwg.mxu0
      %v2096 = vld [vmem:[%s10] sm:$0xff]
      %v2097 = vld [vmem:[%s10 + $0x8] sm:$0xff]
      %v2098 = vld [vmem:[%s10 + $0x10] sm:$0xff]
      %v2099 = vld [vmem:[%s10 + $0x18] sm:$0xff]
      %v2100 = vld [vmem:[%s10 + $0x20] sm:$0xff]
      %v2101 = vld [vmem:[%s10 + $0x28] sm:$0xff]
      %v2102 = vld [vmem:[%s10 + $0x30] sm:$0xff]
      %v2103 = vld [vmem:[%s10 + $0x38] sm:$0xff]
      %v2104 = vld [vmem:[%s10 + $0x40] sm:$0xff]
      %v2105 = vld [vmem:[%s10 + $0x48] sm:$0xff]
      %v2106 = vld [vmem:[%s10 + $0x50] sm:$0xff]
      %v2107 = vld [vmem:[%s10 + $0x58] sm:$0xff]
      %v2108 = vld [vmem:[%s10 + $0x60] sm:$0xff]
      %v2109 = vld [vmem:[%s10 + $0x68] sm:$0xff]
      %v2110 = vld [vmem:[%s10 + $0x70] sm:$0xff]
      %v2111 = vld [vmem:[%s10 + $0x78] sm:$0xff]
      %2112 = vmatprep.subr.mxu0 0.0
      %2113 = vmatpush1.msra.mxu0 %v2096
      %2114 = vmatprep.subr.mxu0 0.0
      %2115 = vmatpush1.msra.mxu0 %v2097
      %2116 = vmatprep.subr.mxu0 0.0
      %2117 = vmatpush1.msra.mxu0 %v2098
      %2118 = vmatprep.subr.mxu0 0.0
      %2119 = vmatpush1.msra.mxu0 %v2099
      %2120 = vmatprep.subr.mxu0 0.0
      %2121 = vmatpush1.msra.mxu0 %v2100
      %2122 = vmatprep.subr.mxu0 0.0
      %2123 = vmatpush1.msra.mxu0 %v2101
      %2124 = vmatprep.subr.mxu0 0.0
      %2125 = vmatpush1.msra.mxu0 %v2102
      %2126 = vmatprep.subr.mxu0 0.0
      %2127 = vmatpush1.msra.mxu0 %v2103
      %2128 = vmatprep.subr.mxu0 0.0
      %2129 = vmatpush1.msra.mxu0 %v2104
      %2130 = vmatprep.subr.mxu0 0.0
      %2131 = vmatpush1.msra.mxu0 %v2105
      %2132 = vmatprep.subr.mxu0 0.0
      %2133 = vmatpush1.msra.mxu0 %v2106
      %2134 = vmatprep.subr.mxu0 0.0
      %2135 = vmatpush1.msra.mxu0 %v2107
      %2136 = vmatprep.subr.mxu0 0.0
      %2137 = vmatpush1.msra.mxu0 %v2108
      %2138 = vmatprep.subr.mxu0 0.0
      %2139 = vmatpush1.msra.mxu0 %v2109
      %2140 = vmatprep.subr.mxu0 0.0
      %2141 = vmatpush1.msra.mxu0 %v2110
      %2142 = vmatprep.subr.mxu0 0.0
      %2143 = vmatpush1.msra.mxu0 %v2111
      %2144 = vmatprep.subr.mxu0 0.0
      %2145 = vmatpush1.msra.mxu0 0.0
      %2146 = vmatprep.subr.mxu0 0.0
      %2147 = vmatpush1.msra.mxu0 0.0
      %2148 = vmatprep.subr.mxu0 0.0
      %2149 = vmatpush1.msra.mxu0 0.0
      %2150 = vmatprep.subr.mxu0 0.0
      %2151 = vmatpush1.msra.mxu0 0.0
      %2152 = vmatprep.subr.mxu0 0.0
      %2153 = vmatpush1.msra.mxu0 0.0
      %2154 = vmatprep.subr.mxu0 0.0
      %2155 = vmatpush1.msra.mxu0 0.0
      %2156 = vmatprep.subr.mxu0 0.0
      %2157 = vmatpush1.msra.mxu0 0.0
      %2158 = vmatprep.subr.mxu0 0.0
      %2159 = vmatpush1.msra.mxu0 0.0
      %2160 = vmatprep.subr.mxu0 0.0
      %2161 = vmatpush1.msra.mxu0 0.0
      %2162 = vmatprep.subr.mxu0 0.0
      %2163 = vmatpush1.msra.mxu0 0.0
      %2164 = vmatprep.subr.mxu0 0.0
      %2165 = vmatpush1.msra.mxu0 0.0
      %2166 = vmatprep.subr.mxu0 0.0
      %2167 = vmatpush1.msra.mxu0 0.0
      %2168 = vmatprep.subr.mxu0 0.0
      %2169 = vmatpush1.msra.mxu0 0.0
      %2170 = vmatprep.subr.mxu0 0.0
      %2171 = vmatpush1.msra.mxu0 0.0
      %2172 = vmatprep.subr.mxu0 0.0
      %2173 = vmatpush1.msra.mxu0 0.0
      %2174 = vmatprep.subr.mxu0 0.0
      %2175 = vmatpush1.msra.mxu0 0.0
      %2176 = vmatprep.mubr.f32.mxu0 0.0
      %2177 = vmatmul.mubr.f32.gmra.mrb[0].mxu0 %v2018
      %v2178 = vpop.f32.mrb[0].mxu0
      %v2179 = vadd.f32 0.0, %v2178
      %v2180 = vpop.f32.mrb[0].mxu0
      %2181 = vmatprep.mubr.f32.mxu0 0.0
      %2182 = vmatmul.mubr.f32.gmra.mrb[0].mxu0 %v2023
      %v2183 = vpop.f32.mrb[0].mxu0
      %v2184 = vadd.f32 0.0, %v2183
      %v2185 = vpop.f32.mrb[0].mxu0
      %2186 = vmatprep.mubr.f32.mxu0 0.0
      %2187 = vmatmul.mubr.f32.gmra.mrb[0].mxu0 %v2028
      %v2188 = vpop.f32.mrb[0].mxu0
      %v2189 = vadd.f32 0.0, %v2188
      %v2190 = vpop.f32.mrb[0].mxu0
      %2191 = vmatprep.mubr.f32.mxu0 0.0
      %2192 = vmatmul.mubr.f32.gmra.mrb[0].mxu0 %v2033
      %v2193 = vpop.f32.mrb[0].mxu0
      %v2194 = vadd.f32 0.0, %v2193
      %v2195 = vpop.f32.mrb[0].mxu0
      %2196 = vmatprep.mubr.f32.mxu0 0.0
      %2197 = vmatmul.mubr.f32.gmra.mrb[0].mxu0 %v2038
      %v2198 = vpop.f32.mrb[0].mxu0
      %v2199 = vadd.f32 0.0, %v2198
      %v2200 = vpop.f32.mrb[0].mxu0
      %2201 = vmatprep.mubr.f32.mxu0 0.0
      %2202 = vmatmul.mubr.f32.gmra.mrb[0].mxu0 %v2043
      %v2203 = vpop.f32.mrb[0].mxu0
      %v2204 = vadd.f32 0.0, %v2203
      %v2205 = vpop.f32.mrb[0].mxu0
      %2206 = vmatprep.mubr.f32.mxu0 0.0
      %2207 = vmatmul.mubr.f32.gmra.mrb[0].mxu0 %v2048
      %v2208 = vpop.f32.mrb[0].mxu0
      %v2209 = vadd.f32 0.0, %v2208
      %v2210 = vpop.f32.mrb[0].mxu0
      %2211 = vmatprep.mubr.f32.mxu0 0.0
      %2212 = vmatmul.mubr.f32.gmra.mrb[0].mxu0 %v2053
      %v2213 = vpop.f32.mrb[0].mxu0
      %v2214 = vadd.f32 0.0, %v2213
      %v2215 = vpop.f32.mrb[0].mxu0
      %2216 = vmatprep.mubr.f32.mxu0 0.0
      %2217 = vmatmul.mubr.f32.gmra.mrb[0].mxu0 %v2058
      %v2218 = vpop.f32.mrb[0].mxu0
      %v2219 = vadd.f32 0.0, %v2218
      %v2220 = vpop.f32.mrb[0].mxu0
      %2221 = vmatprep.mubr.f32.mxu0 0.0
      %2222 = vmatmul.mubr.f32.gmra.mrb[0].mxu0 %v2063
      %v2223 = vpop.f32.mrb[0].mxu0
      %v2224 = vadd.f32 0.0, %v2223
      %v2225 = vpop.f32.mrb[0].mxu0
      %2226 = vmatprep.mubr.f32.mxu0 0.0
      %2227 = vmatmul.mubr.f32.gmra.mrb[0].mxu0 %v2068
      %v2228 = vpop.f32.mrb[0].mxu0
      %v2229 = vadd.f32 0.0, %v2228
      %v2230 = vpop.f32.mrb[0].mxu0
      %2231 = vmatprep.mubr.f32.mxu0 0.0
      %2232 = vmatmul.mubr.f32.gmra.mrb[0].mxu0 %v2073
      %v2233 = vpop.f32.mrb[0].mxu0
      %v2234 = vadd.f32 0.0, %v2233
      %v2235 = vpop.f32.mrb[0].mxu0
      %2236 = vmatprep.mubr.f32.mxu0 0.0
      %2237 = vmatmul.mubr.f32.gmra.mrb[0].mxu0 %v2078
      %v2238 = vpop.f32.mrb[0].mxu0
      %v2239 = vadd.f32 0.0, %v2238
      %v2240 = vpop.f32.mrb[0].mxu0
      %2241 = vmatprep.mubr.f32.mxu0 0.0
      %2242 = vmatmul.mubr.f32.gmra.mrb[0].mxu0 %v2083
      %v2243 = vpop.f32.mrb[0].mxu0
      %v2244 = vadd.f32 0.0, %v2243
      %v2245 = vpop.f32.mrb[0].mxu0
      %2246 = vmatprep.mubr.f32.mxu0 0.0
      %2247 = vmatmul.mubr.f32.gmra.mrb[0].mxu0 %v2088
      %v2248 = vpop.f32.mrb[0].mxu0
      %v2249 = vadd.f32 0.0, %v2248
      %v2250 = vpop.f32.mrb[0].mxu0
      %2251 = vmatprep.mubr.f32.mxu0 0.0
      %2252 = vmatmul.mubr.f32.gmra.mrb[0].mxu0 %v2093
      %v2253 = vpop.f32.mrb[0].mxu0
      %v2254 = vadd.f32 0.0, %v2253
      %v2255 = vpop.f32.mrb[0].mxu0
      %2256 = vdwg.mxu0
      %v2257 = vmul.f32 %v1619, %v2179
      %v2258 = vmul.f32 %v1620, %v2184
      %v2259 = vmul.f32 %v1621, %v2189
      %v2260 = vmul.f32 %v1622, %v2194
      %v2261 = vmul.f32 %v1623, %v2199
      %v2262 = vmul.f32 %v1624, %v2204
      %v2263 = vmul.f32 %v1625, %v2209
      %v2264 = vmul.f32 %v1626, %v2214
      %v2265 = vmul.f32 %v1627, %v2219
      %v2266 = vmul.f32 %v1628, %v2224
      %v2267 = vmul.f32 %v1629, %v2229
      %v2268 = vmul.f32 %v1630, %v2234
      %v2269 = vmul.f32 %v1631, %v2239
      %v2270 = vmul.f32 %v1632, %v2244
      %v2271 = vmul.f32 %v1633, %v2249
      %v2272 = vmul.f32 %v1634, %v2254
      %2273 = vadd.xlane.f32.xlu0 %v2257
      %v2274 = vpop.xlane.xlu0 %2273
      %2275 = vadd.xlane.f32.xlu0 %v2258
      %v2276 = vpop.xlane.xlu0 %2275
      %2277 = vadd.xlane.f32.xlu0 %v2259
      %v2278 = vpop.xlane.xlu0 %2277
      %2279 = vadd.xlane.f32.xlu0 %v2260
      %v2280 = vpop.xlane.xlu0 %2279
      %2281 = vadd.xlane.f32.xlu0 %v2261
      %v2282 = vpop.xlane.xlu0 %2281
      %2283 = vadd.xlane.f32.xlu0 %v2262
      %v2284 = vpop.xlane.xlu0 %2283
      %2285 = vadd.xlane.f32.xlu0 %v2263
      %v2286 = vpop.xlane.xlu0 %2285
      %2287 = vadd.xlane.f32.xlu0 %v2264
      %v2288 = vpop.xlane.xlu0 %2287
      %2289 = vadd.xlane.f32.xlu0 %v2265
      %v2290 = vpop.xlane.xlu0 %2289
      %2291 = vadd.xlane.f32.xlu0 %v2266
      %v2292 = vpop.xlane.xlu0 %2291
      %2293 = vadd.xlane.f32.xlu0 %v2267
      %v2294 = vpop.xlane.xlu0 %2293
      %2295 = vadd.xlane.f32.xlu0 %v2268
      %v2296 = vpop.xlane.xlu0 %2295
      %2297 = vadd.xlane.f32.xlu0 %v2269
      %v2298 = vpop.xlane.xlu0 %2297
      %2299 = vadd.xlane.f32.xlu0 %v2270
      %v2300 = vpop.xlane.xlu0 %2299
      %2301 = vadd.xlane.f32.xlu0 %v2271
      %v2302 = vpop.xlane.xlu0 %2301
      %2303 = vadd.xlane.f32.xlu0 %v2272
      %v2304 = vpop.xlane.xlu0 %2303
      %v2305 = vstv %s1348
      %v2306 = vadd.f32 %v2274, %v2305
      %v2307 = vadd.f32 %v2276, %v2305
      %v2308 = vadd.f32 %v2278, %v2305
      %v2309 = vadd.f32 %v2280, %v2305
      %v2310 = vadd.f32 %v2282, %v2305
      %v2311 = vadd.f32 %v2284, %v2305
      %v2312 = vadd.f32 %v2286, %v2305
      %v2313 = vadd.f32 %v2288, %v2305
      %v2314 = vadd.f32 %v2290, %v2305
      %v2315 = vadd.f32 %v2292, %v2305
      %v2316 = vadd.f32 %v2294, %v2305
      %v2317 = vadd.f32 %v2296, %v2305
      %v2318 = vadd.f32 %v2298, %v2305
      %v2319 = vadd.f32 %v2300, %v2305
      %v2320 = vadd.f32 %v2302, %v2305
      %v2321 = vadd.f32 %v2304, %v2305
      %v2322 = vmul.f32 %v1667, %v2179
      %v2323 = vmul.f32 %v1668, %v2184
      %v2324 = vmul.f32 %v1669, %v2189
      %v2325 = vmul.f32 %v1670, %v2194
      %v2326 = vmul.f32 %v1671, %v2199
      %v2327 = vmul.f32 %v1672, %v2204
      %v2328 = vmul.f32 %v1673, %v2209
      %v2329 = vmul.f32 %v1674, %v2214
      %v2330 = vmul.f32 %v1675, %v2219
      %v2331 = vmul.f32 %v1676, %v2224
      %v2332 = vmul.f32 %v1677, %v2229
      %v2333 = vmul.f32 %v1678, %v2234
      %v2334 = vmul.f32 %v1679, %v2239
      %v2335 = vmul.f32 %v1680, %v2244
      %v2336 = vmul.f32 %v1681, %v2249
      %v2337 = vmul.f32 %v1682, %v2254
      %2338 = vadd.xlane.f32.xlu0 %v2322
      %v2339 = vpop.xlane.xlu0 %2338
      %2340 = vadd.xlane.f32.xlu0 %v2323
      %v2341 = vpop.xlane.xlu0 %2340
      %2342 = vadd.xlane.f32.xlu0 %v2324
      %v2343 = vpop.xlane.xlu0 %2342
      %2344 = vadd.xlane.f32.xlu0 %v2325
      %v2345 = vpop.xlane.xlu0 %2344
      %2346 = vadd.xlane.f32.xlu0 %v2326
      %v2347 = vpop.xlane.xlu0 %2346
      %2348 = vadd.xlane.f32.xlu0 %v2327
      %v2349 = vpop.xlane.xlu0 %2348
      %2350 = vadd.xlane.f32.xlu0 %v2328
      %v2351 = vpop.xlane.xlu0 %2350
      %2352 = vadd.xlane.f32.xlu0 %v2329
      %v2353 = vpop.xlane.xlu0 %2352
      %2354 = vadd.xlane.f32.xlu0 %v2330
      %v2355 = vpop.xlane.xlu0 %2354
      %2356 = vadd.xlane.f32.xlu0 %v2331
      %v2357 = vpop.xlane.xlu0 %2356
      %2358 = vadd.xlane.f32.xlu0 %v2332
      %v2359 = vpop.xlane.xlu0 %2358
      %2360 = vadd.xlane.f32.xlu0 %v2333
      %v2361 = vpop.xlane.xlu0 %2360
      %2362 = vadd.xlane.f32.xlu0 %v2334
      %v2363 = vpop.xlane.xlu0 %2362
      %2364 = vadd.xlane.f32.xlu0 %v2335
      %v2365 = vpop.xlane.xlu0 %2364
      %2366 = vadd.xlane.f32.xlu0 %v2336
      %v2367 = vpop.xlane.xlu0 %2366
      %2368 = vadd.xlane.f32.xlu0 %v2337
      %v2369 = vpop.xlane.xlu0 %2368
      %v2370 = vadd.f32 %v2339, %v2305
      %v2371 = vadd.f32 %v2341, %v2305
      %v2372 = vadd.f32 %v2343, %v2305
      %v2373 = vadd.f32 %v2345, %v2305
      %v2374 = vadd.f32 %v2347, %v2305
      %v2375 = vadd.f32 %v2349, %v2305
      %v2376 = vadd.f32 %v2351, %v2305
      %v2377 = vadd.f32 %v2353, %v2305
      %v2378 = vadd.f32 %v2355, %v2305
      %v2379 = vadd.f32 %v2357, %v2305
      %v2380 = vadd.f32 %v2359, %v2305
      %v2381 = vadd.f32 %v2361, %v2305
      %v2382 = vadd.f32 %v2363, %v2305
      %v2383 = vadd.f32 %v2365, %v2305
      %v2384 = vadd.f32 %v2367, %v2305
      %v2385 = vadd.f32 %v2369, %v2305
      %v2386 = vld [vmem:[%s11] sm:$0xff]
      %v2387 = vld [vmem:[%s11 + $0x8] sm:$0xff]
      %v2388 = vld [vmem:[%s11 + $0x10] sm:$0xff]
      %v2389 = vld [vmem:[%s11 + $0x18] sm:$0xff]
      %v2390 = vld [vmem:[%s11 + $0x20] sm:$0xff]
      %v2391 = vld [vmem:[%s11 + $0x28] sm:$0xff]
      %v2392 = vld [vmem:[%s11 + $0x30] sm:$0xff]
      %v2393 = vld [vmem:[%s11 + $0x38] sm:$0xff]
      %v2394 = vld [vmem:[%s11 + $0x40] sm:$0xff]
      %v2395 = vld [vmem:[%s11 + $0x48] sm:$0xff]
      %v2396 = vld [vmem:[%s11 + $0x50] sm:$0xff]
      %v2397 = vld [vmem:[%s11 + $0x58] sm:$0xff]
      %v2398 = vld [vmem:[%s11 + $0x60] sm:$0xff]
      %v2399 = vld [vmem:[%s11 + $0x68] sm:$0xff]
      %v2400 = vld [vmem:[%s11 + $0x70] sm:$0xff]
      %v2401 = vld [vmem:[%s11 + $0x78] sm:$0xff]
      %2402 = vmatprep.subr.mxu0 0.0
      %2403 = vmatpush1.msra.mxu0 %v2386
      %2404 = vmatprep.subr.mxu0 0.0
      %2405 = vmatpush1.msra.mxu0 %v2387
      %2406 = vmatprep.subr.mxu0 0.0
      %2407 = vmatpush1.msra.mxu0 %v2388
      %2408 = vmatprep.subr.mxu0 0.0
      %2409 = vmatpush1.msra.mxu0 %v2389
      %2410 = vmatprep.subr.mxu0 0.0
      %2411 = vmatpush1.msra.mxu0 %v2390
      %2412 = vmatprep.subr.mxu0 0.0
      %2413 = vmatpush1.msra.mxu0 %v2391
      %2414 = vmatprep.subr.mxu0 0.0
      %2415 = vmatpush1.msra.mxu0 %v2392
      %2416 = vmatprep.subr.mxu0 0.0
      %2417 = vmatpush1.msra.mxu0 %v2393
      %2418 = vmatprep.subr.mxu0 0.0
      %2419 = vmatpush1.msra.mxu0 %v2394
      %2420 = vmatprep.subr.mxu0 0.0
      %2421 = vmatpush1.msra.mxu0 %v2395
      %2422 = vmatprep.subr.mxu0 0.0
      %2423 = vmatpush1.msra.mxu0 %v2396
      %2424 = vmatprep.subr.mxu0 0.0
      %2425 = vmatpush1.msra.mxu0 %v2397
      %2426 = vmatprep.subr.mxu0 0.0
      %2427 = vmatpush1.msra.mxu0 %v2398
      %2428 = vmatprep.subr.mxu0 0.0
      %2429 = vmatpush1.msra.mxu0 %v2399
      %2430 = vmatprep.subr.mxu0 0.0
      %2431 = vmatpush1.msra.mxu0 %v2400
      %2432 = vmatprep.subr.mxu0 0.0
      %2433 = vmatpush1.msra.mxu0 %v2401
      %2434 = vmatprep.subr.mxu0 0.0
      %2435 = vmatpush1.msra.mxu0 0.0
      %2436 = vmatprep.subr.mxu0 0.0
      %2437 = vmatpush1.msra.mxu0 0.0
      %2438 = vmatprep.subr.mxu0 0.0
      %2439 = vmatpush1.msra.mxu0 0.0
      %2440 = vmatprep.subr.mxu0 0.0
      %2441 = vmatpush1.msra.mxu0 0.0
      %2442 = vmatprep.subr.mxu0 0.0
      %2443 = vmatpush1.msra.mxu0 0.0
      %2444 = vmatprep.subr.mxu0 0.0
      %2445 = vmatpush1.msra.mxu0 0.0
      %2446 = vmatprep.subr.mxu0 0.0
      %2447 = vmatpush1.msra.mxu0 0.0
      %2448 = vmatprep.subr.mxu0 0.0
      %2449 = vmatpush1.msra.mxu0 0.0
      %2450 = vmatprep.subr.mxu0 0.0
      %2451 = vmatpush1.msra.mxu0 0.0
      %2452 = vmatprep.subr.mxu0 0.0
      %2453 = vmatpush1.msra.mxu0 0.0
      %2454 = vmatprep.subr.mxu0 0.0
      %2455 = vmatpush1.msra.mxu0 0.0
      %2456 = vmatprep.subr.mxu0 0.0
      %2457 = vmatpush1.msra.mxu0 0.0
      %2458 = vmatprep.subr.mxu0 0.0
      %2459 = vmatpush1.msra.mxu0 0.0
      %2460 = vmatprep.subr.mxu0 0.0
      %2461 = vmatpush1.msra.mxu0 0.0
      %2462 = vmatprep.subr.mxu0 0.0
      %2463 = vmatpush1.msra.mxu0 0.0
      %2464 = vmatprep.subr.mxu0 0.0
      %2465 = vmatpush1.msra.mxu0 0.0
      %2466 = vmatprep.mubr.f32.mxu0 0.0
      %2467 = vmatmul.mubr.f32.gmra.mrb[0].mxu0 %v1710
      %v2468 = vpop.f32.mrb[0].mxu0
      %v2469 = vadd.f32 0.0, %v2468
      %v2470 = vpop.f32.mrb[0].mxu0
      %2471 = vdwg.mxu0
      %v2472 = vlaneseq
      %v2473 = vshrl.u32 %v2472, 7
      %v2474 = vsub.s32 0, %v2473
      %v2475 = vrot.slane %v2469, %v2474
      %v2476 = vmul.f32 %v1523, %v2475
      %v2477 = vmul.f32 %v1524, %v2475
      %v2478 = vmul.f32 %v1525, %v2475
      %v2479 = vmul.f32 %v1526, %v2475
      %v2480 = vmul.f32 %v1527, %v2475
      %v2481 = vmul.f32 %v1528, %v2475
      %v2482 = vmul.f32 %v1529, %v2475
      %v2483 = vmul.f32 %v1530, %v2475
      %v2484 = vmul.f32 %v1531, %v2475
      %v2485 = vmul.f32 %v1532, %v2475
      %v2486 = vmul.f32 %v1533, %v2475
      %v2487 = vmul.f32 %v1534, %v2475
      %v2488 = vmul.f32 %v1535, %v2475
      %v2489 = vmul.f32 %v1536, %v2475
      %v2490 = vmul.f32 %v1537, %v2475
      %v2491 = vmul.f32 %v1538, %v2475
      %2492 = vadd.xlane.f32.xlu0 %v2476
      %v2493 = vpop.xlane.xlu0 %2492
      %2494 = vadd.xlane.f32.xlu0 %v2477
      %v2495 = vpop.xlane.xlu0 %2494
      %2496 = vadd.xlane.f32.xlu0 %v2478
      %v2497 = vpop.xlane.xlu0 %2496
      %2498 = vadd.xlane.f32.xlu0 %v2479
      %v2499 = vpop.xlane.xlu0 %2498
      %2500 = vadd.xlane.f32.xlu0 %v2480
      %v2501 = vpop.xlane.xlu0 %2500
      %2502 = vadd.xlane.f32.xlu0 %v2481
      %v2503 = vpop.xlane.xlu0 %2502
      %2504 = vadd.xlane.f32.xlu0 %v2482
      %v2505 = vpop.xlane.xlu0 %2504
      %2506 = vadd.xlane.f32.xlu0 %v2483
      %v2507 = vpop.xlane.xlu0 %2506
      %2508 = vadd.xlane.f32.xlu0 %v2484
      %v2509 = vpop.xlane.xlu0 %2508
      %2510 = vadd.xlane.f32.xlu0 %v2485
      %v2511 = vpop.xlane.xlu0 %2510
      %2512 = vadd.xlane.f32.xlu0 %v2486
      %v2513 = vpop.xlane.xlu0 %2512
      %2514 = vadd.xlane.f32.xlu0 %v2487
      %v2515 = vpop.xlane.xlu0 %2514
      %2516 = vadd.xlane.f32.xlu0 %v2488
      %v2517 = vpop.xlane.xlu0 %2516
      %2518 = vadd.xlane.f32.xlu0 %v2489
      %v2519 = vpop.xlane.xlu0 %2518
      %2520 = vadd.xlane.f32.xlu0 %v2490
      %v2521 = vpop.xlane.xlu0 %2520
      %2522 = vadd.xlane.f32.xlu0 %v2491
      %v2523 = vpop.xlane.xlu0 %2522
      %v2524 = vstv %s1349
      %v2525 = vadd.f32 %v2493, %v2524
      %v2526 = vadd.f32 %v2495, %v2524
      %v2527 = vadd.f32 %v2497, %v2524
      %v2528 = vadd.f32 %v2499, %v2524
      %v2529 = vadd.f32 %v2501, %v2524
      %v2530 = vadd.f32 %v2503, %v2524
      %v2531 = vadd.f32 %v2505, %v2524
      %v2532 = vadd.f32 %v2507, %v2524
      %v2533 = vadd.f32 %v2509, %v2524
      %v2534 = vadd.f32 %v2511, %v2524
      %v2535 = vadd.f32 %v2513, %v2524
      %v2536 = vadd.f32 %v2515, %v2524
      %v2537 = vadd.f32 %v2517, %v2524
      %v2538 = vadd.f32 %v2519, %v2524
      %v2539 = vadd.f32 %v2521, %v2524
      %v2540 = vadd.f32 %v2523, %v2524
      %v2541 = vmul.f32 %v1571, %v2475
      %v2542 = vmul.f32 %v1572, %v2475
      %v2543 = vmul.f32 %v1573, %v2475
      %v2544 = vmul.f32 %v1574, %v2475
      %v2545 = vmul.f32 %v1575, %v2475
      %v2546 = vmul.f32 %v1576, %v2475
      %v2547 = vmul.f32 %v1577, %v2475
      %v2548 = vmul.f32 %v1578, %v2475
      %v2549 = vmul.f32 %v1579, %v2475
      %v2550 = vmul.f32 %v1580, %v2475
      %v2551 = vmul.f32 %v1581, %v2475
      %v2552 = vmul.f32 %v1582, %v2475
      %v2553 = vmul.f32 %v1583, %v2475
      %v2554 = vmul.f32 %v1584, %v2475
      %v2555 = vmul.f32 %v1585, %v2475
      %v2556 = vmul.f32 %v1586, %v2475
      %2557 = vadd.xlane.f32.xlu0 %v2541
      %v2558 = vpop.xlane.xlu0 %2557
      %2559 = vadd.xlane.f32.xlu0 %v2542
      %v2560 = vpop.xlane.xlu0 %2559
      %2561 = vadd.xlane.f32.xlu0 %v2543
      %v2562 = vpop.xlane.xlu0 %2561
      %2563 = vadd.xlane.f32.xlu0 %v2544
      %v2564 = vpop.xlane.xlu0 %2563
      %2565 = vadd.xlane.f32.xlu0 %v2545
      %v2566 = vpop.xlane.xlu0 %2565
      %2567 = vadd.xlane.f32.xlu0 %v2546
      %v2568 = vpop.xlane.xlu0 %2567
      %2569 = vadd.xlane.f32.xlu0 %v2547
      %v2570 = vpop.xlane.xlu0 %2569
      %2571 = vadd.xlane.f32.xlu0 %v2548
      %v2572 = vpop.xlane.xlu0 %2571
      %2573 = vadd.xlane.f32.xlu0 %v2549
      %v2574 = vpop.xlane.xlu0 %2573
      %2575 = vadd.xlane.f32.xlu0 %v2550
      %v2576 = vpop.xlane.xlu0 %2575
      %2577 = vadd.xlane.f32.xlu0 %v2551
      %v2578 = vpop.xlane.xlu0 %2577
      %2579 = vadd.xlane.f32.xlu0 %v2552
      %v2580 = vpop.xlane.xlu0 %2579
      %2581 = vadd.xlane.f32.xlu0 %v2553
      %v2582 = vpop.xlane.xlu0 %2581
      %2583 = vadd.xlane.f32.xlu0 %v2554
      %v2584 = vpop.xlane.xlu0 %2583
      %2585 = vadd.xlane.f32.xlu0 %v2555
      %v2586 = vpop.xlane.xlu0 %2585
      %2587 = vadd.xlane.f32.xlu0 %v2556
      %v2588 = vpop.xlane.xlu0 %2587
      %v2589 = vadd.f32 %v2558, %v2524
      %v2590 = vadd.f32 %v2560, %v2524
      %v2591 = vadd.f32 %v2562, %v2524
      %v2592 = vadd.f32 %v2564, %v2524
      %v2593 = vadd.f32 %v2566, %v2524
      %v2594 = vadd.f32 %v2568, %v2524
      %v2595 = vadd.f32 %v2570, %v2524
      %v2596 = vadd.f32 %v2572, %v2524
      %v2597 = vadd.f32 %v2574, %v2524
      %v2598 = vadd.f32 %v2576, %v2524
      %v2599 = vadd.f32 %v2578, %v2524
      %v2600 = vadd.f32 %v2580, %v2524
      %v2601 = vadd.f32 %v2582, %v2524
      %v2602 = vadd.f32 %v2584, %v2524
      %v2603 = vadd.f32 %v2586, %v2524
      %v2604 = vadd.f32 %v2588, %v2524
      %v2605 = vmax.f32 %v2306, 0.0
      %v2606 = vmax.f32 %v2307, 0.0
      %v2607 = vmax.f32 %v2308, 0.0
      %v2608 = vmax.f32 %v2309, 0.0
      %v2609 = vmax.f32 %v2310, 0.0
      %v2610 = vmax.f32 %v2311, 0.0
      %v2611 = vmax.f32 %v2312, 0.0
      %v2612 = vmax.f32 %v2313, 0.0
      %v2613 = vmax.f32 %v2314, 0.0
      %v2614 = vmax.f32 %v2315, 0.0
      %v2615 = vmax.f32 %v2316, 0.0
      %v2616 = vmax.f32 %v2317, 0.0
      %v2617 = vmax.f32 %v2318, 0.0
      %v2618 = vmax.f32 %v2319, 0.0
      %v2619 = vmax.f32 %v2320, 0.0
      %v2620 = vmax.f32 %v2321, 0.0
      %v2621 = vsub.f32 %v2605, %v2306
      %v2622 = vsub.f32 %v2606, %v2307
      %v2623 = vsub.f32 %v2607, %v2308
      %v2624 = vsub.f32 %v2608, %v2309
      %v2625 = vsub.f32 %v2609, %v2310
      %v2626 = vsub.f32 %v2610, %v2311
      %v2627 = vsub.f32 %v2611, %v2312
      %v2628 = vsub.f32 %v2612, %v2313
      %v2629 = vsub.f32 %v2613, %v2314
      %v2630 = vsub.f32 %v2614, %v2315
      %v2631 = vsub.f32 %v2615, %v2316
      %v2632 = vsub.f32 %v2616, %v2317
      %v2633 = vsub.f32 %v2617, %v2318
      %v2634 = vsub.f32 %v2618, %v2319
      %v2635 = vsub.f32 %v2619, %v2320
      %v2636 = vsub.f32 %v2620, %v2321
      %v2637 = vand.u32 2147483647, %v2306
      %v2638 = vand.u32 2147483647, %v2307
      %v2639 = vand.u32 2147483647, %v2308
      %v2640 = vand.u32 2147483647, %v2309
      %v2641 = vand.u32 2147483647, %v2310
      %v2642 = vand.u32 2147483647, %v2311
      %v2643 = vand.u32 2147483647, %v2312
      %v2644 = vand.u32 2147483647, %v2313
      %v2645 = vand.u32 2147483647, %v2314
      %v2646 = vand.u32 2147483647, %v2315
      %v2647 = vand.u32 2147483647, %v2316
      %v2648 = vand.u32 2147483647, %v2317
      %v2649 = vand.u32 2147483647, %v2318
      %v2650 = vand.u32 2147483647, %v2319
      %v2651 = vand.u32 2147483647, %v2320
      %v2652 = vand.u32 2147483647, %v2321
      %v2653 = vsub.f32 0.0, %v2637
      %v2654 = vsub.f32 0.0, %v2638
      %v2655 = vsub.f32 0.0, %v2639
      %v2656 = vsub.f32 0.0, %v2640
      %v2657 = vsub.f32 0.0, %v2641
      %v2658 = vsub.f32 0.0, %v2642
      %v2659 = vsub.f32 0.0, %v2643
      %v2660 = vsub.f32 0.0, %v2644
      %v2661 = vsub.f32 0.0, %v2645
      %v2662 = vsub.f32 0.0, %v2646
      %v2663 = vsub.f32 0.0, %v2647
      %v2664 = vsub.f32 0.0, %v2648
      %v2665 = vsub.f32 0.0, %v2649
      %v2666 = vsub.f32 0.0, %v2650
      %v2667 = vsub.f32 0.0, %v2651
      %v2668 = vsub.f32 0.0, %v2652
      %v2669 = vmul.f32 %v2653, 1.442695
      %v2670 = vpow.pop %v2669
      %v2671 = vmul.f32 %v2654, 1.442695
      %v2672 = vpow.pop %v2671
      %v2673 = vmul.f32 %v2655, 1.442695
      %v2674 = vpow.pop %v2673
      %v2675 = vmul.f32 %v2656, 1.442695
      %v2676 = vpow.pop %v2675
      %v2677 = vmul.f32 %v2657, 1.442695
      %v2678 = vpow.pop %v2677
      %v2679 = vmul.f32 %v2658, 1.442695
      %v2680 = vpow.pop %v2679
      %v2681 = vmul.f32 %v2659, 1.442695
      %v2682 = vpow.pop %v2681
      %v2683 = vmul.f32 %v2660, 1.442695
      %v2684 = vpow.pop %v2683
      %v2685 = vmul.f32 %v2661, 1.442695
      %v2686 = vpow.pop %v2685
      %v2687 = vmul.f32 %v2662, 1.442695
      %v2688 = vpow.pop %v2687
      %v2689 = vmul.f32 %v2663, 1.442695
      %v2690 = vpow.pop %v2689
      %v2691 = vmul.f32 %v2664, 1.442695
      %v2692 = vpow.pop %v2691
      %v2693 = vmul.f32 %v2665, 1.442695
      %v2694 = vpow.pop %v2693
      %v2695 = vmul.f32 %v2666, 1.442695
      %v2696 = vpow.pop %v2695
      %v2697 = vmul.f32 %v2667, 1.442695
      %v2698 = vpow.pop %v2697
      %v2699 = vmul.f32 %v2668, 1.442695
      %v2700 = vpow.pop %v2699
      %v2701 = vadd.f32 %v2670, 1.0
      %v2702 = vadd.f32 %v2672, 1.0
      %v2703 = vadd.f32 %v2674, 1.0
      %v2704 = vadd.f32 %v2676, 1.0
      %v2705 = vadd.f32 %v2678, 1.0
      %v2706 = vadd.f32 %v2680, 1.0
      %v2707 = vadd.f32 %v2682, 1.0
      %v2708 = vadd.f32 %v2684, 1.0
      %v2709 = vadd.f32 %v2686, 1.0
      %v2710 = vadd.f32 %v2688, 1.0
      %v2711 = vadd.f32 %v2690, 1.0
      %v2712 = vadd.f32 %v2692, 1.0
      %v2713 = vadd.f32 %v2694, 1.0
      %v2714 = vadd.f32 %v2696, 1.0
      %v2715 = vadd.f32 %v2698, 1.0
      %v2716 = vadd.f32 %v2700, 1.0
      %v2717 = vlog2.pop %v2701
      %v2718 = vmul.f32 %v2717, 0.6931472
      %v2719 = vlog2.pop %v2702
      %v2720 = vmul.f32 %v2719, 0.6931472
      %v2721 = vlog2.pop %v2703
      %v2722 = vmul.f32 %v2721, 0.6931472
      %v2723 = vlog2.pop %v2704
      %v2724 = vmul.f32 %v2723, 0.6931472
      %v2725 = vlog2.pop %v2705
      %v2726 = vmul.f32 %v2725, 0.6931472
      %v2727 = vlog2.pop %v2706
      %v2728 = vmul.f32 %v2727, 0.6931472
      %v2729 = vlog2.pop %v2707
      %v2730 = vmul.f32 %v2729, 0.6931472
      %v2731 = vlog2.pop %v2708
      %v2732 = vmul.f32 %v2731, 0.6931472
      %v2733 = vlog2.pop %v2709
      %v2734 = vmul.f32 %v2733, 0.6931472
      %v2735 = vlog2.pop %v2710
      %v2736 = vmul.f32 %v2735, 0.6931472
      %v2737 = vlog2.pop %v2711
      %v2738 = vmul.f32 %v2737, 0.6931472
      %v2739 = vlog2.pop %v2712
      %v2740 = vmul.f32 %v2739, 0.6931472
      %v2741 = vlog2.pop %v2713
      %v2742 = vmul.f32 %v2741, 0.6931472
      %v2743 = vlog2.pop %v2714
      %v2744 = vmul.f32 %v2743, 0.6931472
      %v2745 = vlog2.pop %v2715
      %v2746 = vmul.f32 %v2745, 0.6931472
      %v2747 = vlog2.pop %v2716
      %v2748 = vmul.f32 %v2747, 0.6931472
      %v2749 = vadd.f32 %v2621, %v2718
      %v2750 = vadd.f32 %v2622, %v2720
      %v2751 = vadd.f32 %v2623, %v2722
      %v2752 = vadd.f32 %v2624, %v2724
      %v2753 = vadd.f32 %v2625, %v2726
      %v2754 = vadd.f32 %v2626, %v2728
      %v2755 = vadd.f32 %v2627, %v2730
      %v2756 = vadd.f32 %v2628, %v2732
      %v2757 = vadd.f32 %v2629, %v2734
      %v2758 = vadd.f32 %v2630, %v2736
      %v2759 = vadd.f32 %v2631, %v2738
      %v2760 = vadd.f32 %v2632, %v2740
      %v2761 = vadd.f32 %v2633, %v2742
      %v2762 = vadd.f32 %v2634, %v2744
      %v2763 = vadd.f32 %v2635, %v2746
      %v2764 = vadd.f32 %v2636, %v2748
      %v2765 = vadd.f32 %v2749, %v2750
      %v2766 = vadd.f32 %v2765, %v2751
      %v2767 = vadd.f32 %v2766, %v2752
      %v2768 = vadd.f32 %v2767, %v2753
      %v2769 = vadd.f32 %v2768, %v2754
      %v2770 = vadd.f32 %v2769, %v2755
      %v2771 = vadd.f32 %v2770, %v2756
      %v2772 = vadd.f32 %v2771, %v2757
      %v2773 = vadd.f32 %v2772, %v2758
      %v2774 = vadd.f32 %v2773, %v2759
      %v2775 = vadd.f32 %v2774, %v2760
      %v2776 = vadd.f32 %v2775, %v2761
      %v2777 = vadd.f32 %v2776, %v2762
      %v2778 = vadd.f32 %v2777, %v2763
      %v2779 = vadd.f32 %v2778, %v2764
      %v2780 = vrot.slane %v2779, 4
      %v2781 = vadd.f32 %v2779, %v2780
      %v2782 = vrot.slane %v2781, 2
      %v2783 = vadd.f32 %v2781, %v2782
      %v2784 = vrot.slane %v2783, 1
      %v2785 = vadd.f32 %v2783, %v2784
      %v2786 = vmax.f32 %v2370, 0.0
      %v2787 = vmax.f32 %v2371, 0.0
      %v2788 = vmax.f32 %v2372, 0.0
      %v2789 = vmax.f32 %v2373, 0.0
      %v2790 = vmax.f32 %v2374, 0.0
      %v2791 = vmax.f32 %v2375, 0.0
      %v2792 = vmax.f32 %v2376, 0.0
      %v2793 = vmax.f32 %v2377, 0.0
      %v2794 = vmax.f32 %v2378, 0.0
      %v2795 = vmax.f32 %v2379, 0.0
      %v2796 = vmax.f32 %v2380, 0.0
      %v2797 = vmax.f32 %v2381, 0.0
      %v2798 = vmax.f32 %v2382, 0.0
      %v2799 = vmax.f32 %v2383, 0.0
      %v2800 = vmax.f32 %v2384, 0.0
      %v2801 = vmax.f32 %v2385, 0.0
      %v2802 = vmul.f32 %v2370, 0.0
      %v2803 = vmul.f32 %v2371, 0.0
      %v2804 = vmul.f32 %v2372, 0.0
      %v2805 = vmul.f32 %v2373, 0.0
      %v2806 = vmul.f32 %v2374, 0.0
      %v2807 = vmul.f32 %v2375, 0.0
      %v2808 = vmul.f32 %v2376, 0.0
      %v2809 = vmul.f32 %v2377, 0.0
      %v2810 = vmul.f32 %v2378, 0.0
      %v2811 = vmul.f32 %v2379, 0.0
      %v2812 = vmul.f32 %v2380, 0.0
      %v2813 = vmul.f32 %v2381, 0.0
      %v2814 = vmul.f32 %v2382, 0.0
      %v2815 = vmul.f32 %v2383, 0.0
      %v2816 = vmul.f32 %v2384, 0.0
      %v2817 = vmul.f32 %v2385, 0.0
      %v2818 = vsub.f32 %v2786, %v2802
      %v2819 = vsub.f32 %v2787, %v2803
      %v2820 = vsub.f32 %v2788, %v2804
      %v2821 = vsub.f32 %v2789, %v2805
      %v2822 = vsub.f32 %v2790, %v2806
      %v2823 = vsub.f32 %v2791, %v2807
      %v2824 = vsub.f32 %v2792, %v2808
      %v2825 = vsub.f32 %v2793, %v2809
      %v2826 = vsub.f32 %v2794, %v2810
      %v2827 = vsub.f32 %v2795, %v2811
      %v2828 = vsub.f32 %v2796, %v2812
      %v2829 = vsub.f32 %v2797, %v2813
      %v2830 = vsub.f32 %v2798, %v2814
      %v2831 = vsub.f32 %v2799, %v2815
      %v2832 = vsub.f32 %v2800, %v2816
      %v2833 = vsub.f32 %v2801, %v2817
      %v2834 = vand.u32 2147483647, %v2370
      %v2835 = vand.u32 2147483647, %v2371
      %v2836 = vand.u32 2147483647, %v2372
      %v2837 = vand.u32 2147483647, %v2373
      %v2838 = vand.u32 2147483647, %v2374
      %v2839 = vand.u32 2147483647, %v2375
      %v2840 = vand.u32 2147483647, %v2376
      %v2841 = vand.u32 2147483647, %v2377
      %v2842 = vand.u32 2147483647, %v2378
      %v2843 = vand.u32 2147483647, %v2379
      %v2844 = vand.u32 2147483647, %v2380
      %v2845 = vand.u32 2147483647, %v2381
      %v2846 = vand.u32 2147483647, %v2382
      %v2847 = vand.u32 2147483647, %v2383
      %v2848 = vand.u32 2147483647, %v2384
      %v2849 = vand.u32 2147483647, %v2385
      %v2850 = vsub.f32 0.0, %v2834
      %v2851 = vsub.f32 0.0, %v2835
      %v2852 = vsub.f32 0.0, %v2836
      %v2853 = vsub.f32 0.0, %v2837
      %v2854 = vsub.f32 0.0, %v2838
      %v2855 = vsub.f32 0.0, %v2839
      %v2856 = vsub.f32 0.0, %v2840
      %v2857 = vsub.f32 0.0, %v2841
      %v2858 = vsub.f32 0.0, %v2842
      %v2859 = vsub.f32 0.0, %v2843
      %v2860 = vsub.f32 0.0, %v2844
      %v2861 = vsub.f32 0.0, %v2845
      %v2862 = vsub.f32 0.0, %v2846
      %v2863 = vsub.f32 0.0, %v2847
      %v2864 = vsub.f32 0.0, %v2848
      %v2865 = vsub.f32 0.0, %v2849
      %v2866 = vmul.f32 %v2850, 1.442695
      %v2867 = vpow.pop %v2866
      %v2868 = vmul.f32 %v2851, 1.442695
      %v2869 = vpow.pop %v2868
      %v2870 = vmul.f32 %v2852, 1.442695
      %v2871 = vpow.pop %v2870
      %v2872 = vmul.f32 %v2853, 1.442695
      %v2873 = vpow.pop %v2872
      %v2874 = vmul.f32 %v2854, 1.442695
      %v2875 = vpow.pop %v2874
      %v2876 = vmul.f32 %v2855, 1.442695
      %v2877 = vpow.pop %v2876
      %v2878 = vmul.f32 %v2856, 1.442695
      %v2879 = vpow.pop %v2878
      %v2880 = vmul.f32 %v2857, 1.442695
      %v2881 = vpow.pop %v2880
      %v2882 = vmul.f32 %v2858, 1.442695
      %v2883 = vpow.pop %v2882
      %v2884 = vmul.f32 %v2859, 1.442695
      %v2885 = vpow.pop %v2884
      %v2886 = vmul.f32 %v2860, 1.442695
      %v2887 = vpow.pop %v2886
      %v2888 = vmul.f32 %v2861, 1.442695
      %v2889 = vpow.pop %v2888
      %v2890 = vmul.f32 %v2862, 1.442695
      %v2891 = vpow.pop %v2890
      %v2892 = vmul.f32 %v2863, 1.442695
      %v2893 = vpow.pop %v2892
      %v2894 = vmul.f32 %v2864, 1.442695
      %v2895 = vpow.pop %v2894
      %v2896 = vmul.f32 %v2865, 1.442695
      %v2897 = vpow.pop %v2896
      %v2898 = vadd.f32 %v2867, 1.0
      %v2899 = vadd.f32 %v2869, 1.0
      %v2900 = vadd.f32 %v2871, 1.0
      %v2901 = vadd.f32 %v2873, 1.0
      %v2902 = vadd.f32 %v2875, 1.0
      %v2903 = vadd.f32 %v2877, 1.0
      %v2904 = vadd.f32 %v2879, 1.0
      %v2905 = vadd.f32 %v2881, 1.0
      %v2906 = vadd.f32 %v2883, 1.0
      %v2907 = vadd.f32 %v2885, 1.0
      %v2908 = vadd.f32 %v2887, 1.0
      %v2909 = vadd.f32 %v2889, 1.0
      %v2910 = vadd.f32 %v2891, 1.0
      %v2911 = vadd.f32 %v2893, 1.0
      %v2912 = vadd.f32 %v2895, 1.0
      %v2913 = vadd.f32 %v2897, 1.0
      %v2914 = vlog2.pop %v2898
      %v2915 = vmul.f32 %v2914, 0.6931472
      %v2916 = vlog2.pop %v2899
      %v2917 = vmul.f32 %v2916, 0.6931472
      %v2918 = vlog2.pop %v2900
      %v2919 = vmul.f32 %v2918, 0.6931472
      %v2920 = vlog2.pop %v2901
      %v2921 = vmul.f32 %v2920, 0.6931472
      %v2922 = vlog2.pop %v2902
      %v2923 = vmul.f32 %v2922, 0.6931472
      %v2924 = vlog2.pop %v2903
      %v2925 = vmul.f32 %v2924, 0.6931472
      %v2926 = vlog2.pop %v2904
      %v2927 = vmul.f32 %v2926, 0.6931472
      %v2928 = vlog2.pop %v2905
      %v2929 = vmul.f32 %v2928, 0.6931472
      %v2930 = vlog2.pop %v2906
      %v2931 = vmul.f32 %v2930, 0.6931472
      %v2932 = vlog2.pop %v2907
      %v2933 = vmul.f32 %v2932, 0.6931472
      %v2934 = vlog2.pop %v2908
      %v2935 = vmul.f32 %v2934, 0.6931472
      %v2936 = vlog2.pop %v2909
      %v2937 = vmul.f32 %v2936, 0.6931472
      %v2938 = vlog2.pop %v2910
      %v2939 = vmul.f32 %v2938, 0.6931472
      %v2940 = vlog2.pop %v2911
      %v2941 = vmul.f32 %v2940, 0.6931472
      %v2942 = vlog2.pop %v2912
      %v2943 = vmul.f32 %v2942, 0.6931472
      %v2944 = vlog2.pop %v2913
      %v2945 = vmul.f32 %v2944, 0.6931472
      %v2946 = vadd.f32 %v2818, %v2915
      %v2947 = vadd.f32 %v2819, %v2917
      %v2948 = vadd.f32 %v2820, %v2919
      %v2949 = vadd.f32 %v2821, %v2921
      %v2950 = vadd.f32 %v2822, %v2923
      %v2951 = vadd.f32 %v2823, %v2925
      %v2952 = vadd.f32 %v2824, %v2927
      %v2953 = vadd.f32 %v2825, %v2929
      %v2954 = vadd.f32 %v2826, %v2931
      %v2955 = vadd.f32 %v2827, %v2933
      %v2956 = vadd.f32 %v2828, %v2935
      %v2957 = vadd.f32 %v2829, %v2937
      %v2958 = vadd.f32 %v2830, %v2939
      %v2959 = vadd.f32 %v2831, %v2941
      %v2960 = vadd.f32 %v2832, %v2943
      %v2961 = vadd.f32 %v2833, %v2945
      %v2962 = vadd.f32 %v2946, %v2947
      %v2963 = vadd.f32 %v2962, %v2948
      %v2964 = vadd.f32 %v2963, %v2949
      %v2965 = vadd.f32 %v2964, %v2950
      %v2966 = vadd.f32 %v2965, %v2951
      %v2967 = vadd.f32 %v2966, %v2952
      %v2968 = vadd.f32 %v2967, %v2953
      %v2969 = vadd.f32 %v2968, %v2954
      %v2970 = vadd.f32 %v2969, %v2955
      %v2971 = vadd.f32 %v2970, %v2956
      %v2972 = vadd.f32 %v2971, %v2957
      %v2973 = vadd.f32 %v2972, %v2958
      %v2974 = vadd.f32 %v2973, %v2959
      %v2975 = vadd.f32 %v2974, %v2960
      %v2976 = vadd.f32 %v2975, %v2961
      %v2977 = vrot.slane %v2976, 4
      %v2978 = vadd.f32 %v2976, %v2977
      %v2979 = vrot.slane %v2978, 2
      %v2980 = vadd.f32 %v2978, %v2979
      %v2981 = vrot.slane %v2980, 1
      %v2982 = vadd.f32 %v2980, %v2981
      %v2983 = vadd.f32 %v2785, %v2982
      %v2984 = vmul.f32 %v2983, 0.00390625
      %v2985 = vmax.f32 %v2525, 0.0
      %v2986 = vmax.f32 %v2526, 0.0
      %v2987 = vmax.f32 %v2527, 0.0
      %v2988 = vmax.f32 %v2528, 0.0
      %v2989 = vmax.f32 %v2529, 0.0
      %v2990 = vmax.f32 %v2530, 0.0
      %v2991 = vmax.f32 %v2531, 0.0
      %v2992 = vmax.f32 %v2532, 0.0
      %v2993 = vmax.f32 %v2533, 0.0
      %v2994 = vmax.f32 %v2534, 0.0
      %v2995 = vmax.f32 %v2535, 0.0
      %v2996 = vmax.f32 %v2536, 0.0
      %v2997 = vmax.f32 %v2537, 0.0
      %v2998 = vmax.f32 %v2538, 0.0
      %v2999 = vmax.f32 %v2539, 0.0
      %v3000 = vmax.f32 %v2540, 0.0
      %v3001 = vsub.f32 %v2985, %v2525
      %v3002 = vsub.f32 %v2986, %v2526
      %v3003 = vsub.f32 %v2987, %v2527
      %v3004 = vsub.f32 %v2988, %v2528
      %v3005 = vsub.f32 %v2989, %v2529
      %v3006 = vsub.f32 %v2990, %v2530
      %v3007 = vsub.f32 %v2991, %v2531
      %v3008 = vsub.f32 %v2992, %v2532
      %v3009 = vsub.f32 %v2993, %v2533
      %v3010 = vsub.f32 %v2994, %v2534
      %v3011 = vsub.f32 %v2995, %v2535
      %v3012 = vsub.f32 %v2996, %v2536
      %v3013 = vsub.f32 %v2997, %v2537
      %v3014 = vsub.f32 %v2998, %v2538
      %v3015 = vsub.f32 %v2999, %v2539
      %v3016 = vsub.f32 %v3000, %v2540
      %v3017 = vand.u32 2147483647, %v2525
      %v3018 = vand.u32 2147483647, %v2526
      %v3019 = vand.u32 2147483647, %v2527
      %v3020 = vand.u32 2147483647, %v2528
      %v3021 = vand.u32 2147483647, %v2529
      %v3022 = vand.u32 2147483647, %v2530
      %v3023 = vand.u32 2147483647, %v2531
      %v3024 = vand.u32 2147483647, %v2532
      %v3025 = vand.u32 2147483647, %v2533
      %v3026 = vand.u32 2147483647, %v2534
      %v3027 = vand.u32 2147483647, %v2535
      %v3028 = vand.u32 2147483647, %v2536
      %v3029 = vand.u32 2147483647, %v2537
      %v3030 = vand.u32 2147483647, %v2538
      %v3031 = vand.u32 2147483647, %v2539
      %v3032 = vand.u32 2147483647, %v2540
      %v3033 = vsub.f32 0.0, %v3017
      %v3034 = vsub.f32 0.0, %v3018
      %v3035 = vsub.f32 0.0, %v3019
      %v3036 = vsub.f32 0.0, %v3020
      %v3037 = vsub.f32 0.0, %v3021
      %v3038 = vsub.f32 0.0, %v3022
      %v3039 = vsub.f32 0.0, %v3023
      %v3040 = vsub.f32 0.0, %v3024
      %v3041 = vsub.f32 0.0, %v3025
      %v3042 = vsub.f32 0.0, %v3026
      %v3043 = vsub.f32 0.0, %v3027
      %v3044 = vsub.f32 0.0, %v3028
      %v3045 = vsub.f32 0.0, %v3029
      %v3046 = vsub.f32 0.0, %v3030
      %v3047 = vsub.f32 0.0, %v3031
      %v3048 = vsub.f32 0.0, %v3032
      %v3049 = vmul.f32 %v3033, 1.442695
      %v3050 = vpow.pop %v3049
      %v3051 = vmul.f32 %v3034, 1.442695
      %v3052 = vpow.pop %v3051
      %v3053 = vmul.f32 %v3035, 1.442695
      %v3054 = vpow.pop %v3053
      %v3055 = vmul.f32 %v3036, 1.442695
      %v3056 = vpow.pop %v3055
      %v3057 = vmul.f32 %v3037, 1.442695
      %v3058 = vpow.pop %v3057
      %v3059 = vmul.f32 %v3038, 1.442695
      %v3060 = vpow.pop %v3059
      %v3061 = vmul.f32 %v3039, 1.442695
      %v3062 = vpow.pop %v3061
      %v3063 = vmul.f32 %v3040, 1.442695
      %v3064 = vpow.pop %v3063
      %v3065 = vmul.f32 %v3041, 1.442695
      %v3066 = vpow.pop %v3065
      %v3067 = vmul.f32 %v3042, 1.442695
      %v3068 = vpow.pop %v3067
      %v3069 = vmul.f32 %v3043, 1.442695
      %v3070 = vpow.pop %v3069
      %v3071 = vmul.f32 %v3044, 1.442695
      %v3072 = vpow.pop %v3071
      %v3073 = vmul.f32 %v3045, 1.442695
      %v3074 = vpow.pop %v3073
      %v3075 = vmul.f32 %v3046, 1.442695
      %v3076 = vpow.pop %v3075
      %v3077 = vmul.f32 %v3047, 1.442695
      %v3078 = vpow.pop %v3077
      %v3079 = vmul.f32 %v3048, 1.442695
      %v3080 = vpow.pop %v3079
      %v3081 = vadd.f32 %v3050, 1.0
      %v3082 = vadd.f32 %v3052, 1.0
      %v3083 = vadd.f32 %v3054, 1.0
      %v3084 = vadd.f32 %v3056, 1.0
      %v3085 = vadd.f32 %v3058, 1.0
      %v3086 = vadd.f32 %v3060, 1.0
      %v3087 = vadd.f32 %v3062, 1.0
      %v3088 = vadd.f32 %v3064, 1.0
      %v3089 = vadd.f32 %v3066, 1.0
      %v3090 = vadd.f32 %v3068, 1.0
      %v3091 = vadd.f32 %v3070, 1.0
      %v3092 = vadd.f32 %v3072, 1.0
      %v3093 = vadd.f32 %v3074, 1.0
      %v3094 = vadd.f32 %v3076, 1.0
      %v3095 = vadd.f32 %v3078, 1.0
      %v3096 = vadd.f32 %v3080, 1.0
      %v3097 = vlog2.pop %v3081
      %v3098 = vmul.f32 %v3097, 0.6931472
      %v3099 = vlog2.pop %v3082
      %v3100 = vmul.f32 %v3099, 0.6931472
      %v3101 = vlog2.pop %v3083
      %v3102 = vmul.f32 %v3101, 0.6931472
      %v3103 = vlog2.pop %v3084
      %v3104 = vmul.f32 %v3103, 0.6931472
      %v3105 = vlog2.pop %v3085
      %v3106 = vmul.f32 %v3105, 0.6931472
      %v3107 = vlog2.pop %v3086
      %v3108 = vmul.f32 %v3107, 0.6931472
      %v3109 = vlog2.pop %v3087
      %v3110 = vmul.f32 %v3109, 0.6931472
      %v3111 = vlog2.pop %v3088
      %v3112 = vmul.f32 %v3111, 0.6931472
      %v3113 = vlog2.pop %v3089
      %v3114 = vmul.f32 %v3113, 0.6931472
      %v3115 = vlog2.pop %v3090
      %v3116 = vmul.f32 %v3115, 0.6931472
      %v3117 = vlog2.pop %v3091
      %v3118 = vmul.f32 %v3117, 0.6931472
      %v3119 = vlog2.pop %v3092
      %v3120 = vmul.f32 %v3119, 0.6931472
      %v3121 = vlog2.pop %v3093
      %v3122 = vmul.f32 %v3121, 0.6931472
      %v3123 = vlog2.pop %v3094
      %v3124 = vmul.f32 %v3123, 0.6931472
      %v3125 = vlog2.pop %v3095
      %v3126 = vmul.f32 %v3125, 0.6931472
      %v3127 = vlog2.pop %v3096
      %v3128 = vmul.f32 %v3127, 0.6931472
      %v3129 = vadd.f32 %v3001, %v3098
      %v3130 = vadd.f32 %v3002, %v3100
      %v3131 = vadd.f32 %v3003, %v3102
      %v3132 = vadd.f32 %v3004, %v3104
      %v3133 = vadd.f32 %v3005, %v3106
      %v3134 = vadd.f32 %v3006, %v3108
      %v3135 = vadd.f32 %v3007, %v3110
      %v3136 = vadd.f32 %v3008, %v3112
      %v3137 = vadd.f32 %v3009, %v3114
      %v3138 = vadd.f32 %v3010, %v3116
      %v3139 = vadd.f32 %v3011, %v3118
      %v3140 = vadd.f32 %v3012, %v3120
      %v3141 = vadd.f32 %v3013, %v3122
      %v3142 = vadd.f32 %v3014, %v3124
      %v3143 = vadd.f32 %v3015, %v3126
      %v3144 = vadd.f32 %v3016, %v3128
      %v3145 = vadd.f32 %v3129, %v3130
      %v3146 = vadd.f32 %v3145, %v3131
      %v3147 = vadd.f32 %v3146, %v3132
      %v3148 = vadd.f32 %v3147, %v3133
      %v3149 = vadd.f32 %v3148, %v3134
      %v3150 = vadd.f32 %v3149, %v3135
      %v3151 = vadd.f32 %v3150, %v3136
      %v3152 = vadd.f32 %v3151, %v3137
      %v3153 = vadd.f32 %v3152, %v3138
      %v3154 = vadd.f32 %v3153, %v3139
      %v3155 = vadd.f32 %v3154, %v3140
      %v3156 = vadd.f32 %v3155, %v3141
      %v3157 = vadd.f32 %v3156, %v3142
      %v3158 = vadd.f32 %v3157, %v3143
      %v3159 = vadd.f32 %v3158, %v3144
      %v3160 = vrot.slane %v3159, 4
      %v3161 = vadd.f32 %v3159, %v3160
      %v3162 = vrot.slane %v3161, 2
      %v3163 = vadd.f32 %v3161, %v3162
      %v3164 = vrot.slane %v3163, 1
      %v3165 = vadd.f32 %v3163, %v3164
      %v3166 = vmax.f32 %v2589, 0.0
      %v3167 = vmax.f32 %v2590, 0.0
      %v3168 = vmax.f32 %v2591, 0.0
      %v3169 = vmax.f32 %v2592, 0.0
      %v3170 = vmax.f32 %v2593, 0.0
      %v3171 = vmax.f32 %v2594, 0.0
      %v3172 = vmax.f32 %v2595, 0.0
      %v3173 = vmax.f32 %v2596, 0.0
      %v3174 = vmax.f32 %v2597, 0.0
      %v3175 = vmax.f32 %v2598, 0.0
      %v3176 = vmax.f32 %v2599, 0.0
      %v3177 = vmax.f32 %v2600, 0.0
      %v3178 = vmax.f32 %v2601, 0.0
      %v3179 = vmax.f32 %v2602, 0.0
      %v3180 = vmax.f32 %v2603, 0.0
      %v3181 = vmax.f32 %v2604, 0.0
      %v3182 = vmul.f32 %v2589, 0.0
      %v3183 = vmul.f32 %v2590, 0.0
      %v3184 = vmul.f32 %v2591, 0.0
      %v3185 = vmul.f32 %v2592, 0.0
      %v3186 = vmul.f32 %v2593, 0.0
      %v3187 = vmul.f32 %v2594, 0.0
      %v3188 = vmul.f32 %v2595, 0.0
      %v3189 = vmul.f32 %v2596, 0.0
      %v3190 = vmul.f32 %v2597, 0.0
      %v3191 = vmul.f32 %v2598, 0.0
      %v3192 = vmul.f32 %v2599, 0.0
      %v3193 = vmul.f32 %v2600, 0.0
      %v3194 = vmul.f32 %v2601, 0.0
      %v3195 = vmul.f32 %v2602, 0.0
      %v3196 = vmul.f32 %v2603, 0.0
      %v3197 = vmul.f32 %v2604, 0.0
      %v3198 = vsub.f32 %v3166, %v3182
      %v3199 = vsub.f32 %v3167, %v3183
      %v3200 = vsub.f32 %v3168, %v3184
      %v3201 = vsub.f32 %v3169, %v3185
      %v3202 = vsub.f32 %v3170, %v3186
      %v3203 = vsub.f32 %v3171, %v3187
      %v3204 = vsub.f32 %v3172, %v3188
      %v3205 = vsub.f32 %v3173, %v3189
      %v3206 = vsub.f32 %v3174, %v3190
      %v3207 = vsub.f32 %v3175, %v3191
      %v3208 = vsub.f32 %v3176, %v3192
      %v3209 = vsub.f32 %v3177, %v3193
      %v3210 = vsub.f32 %v3178, %v3194
      %v3211 = vsub.f32 %v3179, %v3195
      %v3212 = vsub.f32 %v3180, %v3196
      %v3213 = vsub.f32 %v3181, %v3197
      %v3214 = vand.u32 2147483647, %v2589
      %v3215 = vand.u32 2147483647, %v2590
      %v3216 = vand.u32 2147483647, %v2591
      %v3217 = vand.u32 2147483647, %v2592
      %v3218 = vand.u32 2147483647, %v2593
      %v3219 = vand.u32 2147483647, %v2594
      %v3220 = vand.u32 2147483647, %v2595
      %v3221 = vand.u32 2147483647, %v2596
      %v3222 = vand.u32 2147483647, %v2597
      %v3223 = vand.u32 2147483647, %v2598
      %v3224 = vand.u32 2147483647, %v2599
      %v3225 = vand.u32 2147483647, %v2600
      %v3226 = vand.u32 2147483647, %v2601
      %v3227 = vand.u32 2147483647, %v2602
      %v3228 = vand.u32 2147483647, %v2603
      %v3229 = vand.u32 2147483647, %v2604
      %v3230 = vsub.f32 0.0, %v3214
      %v3231 = vsub.f32 0.0, %v3215
      %v3232 = vsub.f32 0.0, %v3216
      %v3233 = vsub.f32 0.0, %v3217
      %v3234 = vsub.f32 0.0, %v3218
      %v3235 = vsub.f32 0.0, %v3219
      %v3236 = vsub.f32 0.0, %v3220
      %v3237 = vsub.f32 0.0, %v3221
      %v3238 = vsub.f32 0.0, %v3222
      %v3239 = vsub.f32 0.0, %v3223
      %v3240 = vsub.f32 0.0, %v3224
      %v3241 = vsub.f32 0.0, %v3225
      %v3242 = vsub.f32 0.0, %v3226
      %v3243 = vsub.f32 0.0, %v3227
      %v3244 = vsub.f32 0.0, %v3228
      %v3245 = vsub.f32 0.0, %v3229
      %v3246 = vmul.f32 %v3230, 1.442695
      %v3247 = vpow.pop %v3246
      %v3248 = vmul.f32 %v3231, 1.442695
      %v3249 = vpow.pop %v3248
      %v3250 = vmul.f32 %v3232, 1.442695
      %v3251 = vpow.pop %v3250
      %v3252 = vmul.f32 %v3233, 1.442695
      %v3253 = vpow.pop %v3252
      %v3254 = vmul.f32 %v3234, 1.442695
      %v3255 = vpow.pop %v3254
      %v3256 = vmul.f32 %v3235, 1.442695
      %v3257 = vpow.pop %v3256
      %v3258 = vmul.f32 %v3236, 1.442695
      %v3259 = vpow.pop %v3258
      %v3260 = vmul.f32 %v3237, 1.442695
      %v3261 = vpow.pop %v3260
      %v3262 = vmul.f32 %v3238, 1.442695
      %v3263 = vpow.pop %v3262
      %v3264 = vmul.f32 %v3239, 1.442695
      %v3265 = vpow.pop %v3264
      %v3266 = vmul.f32 %v3240, 1.442695
      %v3267 = vpow.pop %v3266
      %v3268 = vmul.f32 %v3241, 1.442695
      %v3269 = vpow.pop %v3268
      %v3270 = vmul.f32 %v3242, 1.442695
      %v3271 = vpow.pop %v3270
      %v3272 = vmul.f32 %v3243, 1.442695
      %v3273 = vpow.pop %v3272
      %v3274 = vmul.f32 %v3244, 1.442695
      %v3275 = vpow.pop %v3274
      %v3276 = vmul.f32 %v3245, 1.442695
      %v3277 = vpow.pop %v3276
      %v3278 = vadd.f32 %v3247, 1.0
      %v3279 = vadd.f32 %v3249, 1.0
      %v3280 = vadd.f32 %v3251, 1.0
      %v3281 = vadd.f32 %v3253, 1.0
      %v3282 = vadd.f32 %v3255, 1.0
      %v3283 = vadd.f32 %v3257, 1.0
      %v3284 = vadd.f32 %v3259, 1.0
      %v3285 = vadd.f32 %v3261, 1.0
      %v3286 = vadd.f32 %v3263, 1.0
      %v3287 = vadd.f32 %v3265, 1.0
      %v3288 = vadd.f32 %v3267, 1.0
      %v3289 = vadd.f32 %v3269, 1.0
      %v3290 = vadd.f32 %v3271, 1.0
      %v3291 = vadd.f32 %v3273, 1.0
      %v3292 = vadd.f32 %v3275, 1.0
      %v3293 = vadd.f32 %v3277, 1.0
      %v3294 = vlog2.pop %v3278
      %v3295 = vmul.f32 %v3294, 0.6931472
      %v3296 = vlog2.pop %v3279
      %v3297 = vmul.f32 %v3296, 0.6931472
      %v3298 = vlog2.pop %v3280
      %v3299 = vmul.f32 %v3298, 0.6931472
      %v3300 = vlog2.pop %v3281
      %v3301 = vmul.f32 %v3300, 0.6931472
      %v3302 = vlog2.pop %v3282
      %v3303 = vmul.f32 %v3302, 0.6931472
      %v3304 = vlog2.pop %v3283
      %v3305 = vmul.f32 %v3304, 0.6931472
      %v3306 = vlog2.pop %v3284
      %v3307 = vmul.f32 %v3306, 0.6931472
      %v3308 = vlog2.pop %v3285
      %v3309 = vmul.f32 %v3308, 0.6931472
      %v3310 = vlog2.pop %v3286
      %v3311 = vmul.f32 %v3310, 0.6931472
      %v3312 = vlog2.pop %v3287
      %v3313 = vmul.f32 %v3312, 0.6931472
      %v3314 = vlog2.pop %v3288
      %v3315 = vmul.f32 %v3314, 0.6931472
      %v3316 = vlog2.pop %v3289
      %v3317 = vmul.f32 %v3316, 0.6931472
      %v3318 = vlog2.pop %v3290
      %v3319 = vmul.f32 %v3318, 0.6931472
      %v3320 = vlog2.pop %v3291
      %v3321 = vmul.f32 %v3320, 0.6931472
      %v3322 = vlog2.pop %v3292
      %v3323 = vmul.f32 %v3322, 0.6931472
      %v3324 = vlog2.pop %v3293
      %v3325 = vmul.f32 %v3324, 0.6931472
      %v3326 = vadd.f32 %v3198, %v3295
      %v3327 = vadd.f32 %v3199, %v3297
      %v3328 = vadd.f32 %v3200, %v3299
      %v3329 = vadd.f32 %v3201, %v3301
      %v3330 = vadd.f32 %v3202, %v3303
      %v3331 = vadd.f32 %v3203, %v3305
      %v3332 = vadd.f32 %v3204, %v3307
      %v3333 = vadd.f32 %v3205, %v3309
      %v3334 = vadd.f32 %v3206, %v3311
      %v3335 = vadd.f32 %v3207, %v3313
      %v3336 = vadd.f32 %v3208, %v3315
      %v3337 = vadd.f32 %v3209, %v3317
      %v3338 = vadd.f32 %v3210, %v3319
      %v3339 = vadd.f32 %v3211, %v3321
      %v3340 = vadd.f32 %v3212, %v3323
      %v3341 = vadd.f32 %v3213, %v3325
      %v3342 = vadd.f32 %v3326, %v3327
      %v3343 = vadd.f32 %v3342, %v3328
      %v3344 = vadd.f32 %v3343, %v3329
      %v3345 = vadd.f32 %v3344, %v3330
      %v3346 = vadd.f32 %v3345, %v3331
      %v3347 = vadd.f32 %v3346, %v3332
      %v3348 = vadd.f32 %v3347, %v3333
      %v3349 = vadd.f32 %v3348, %v3334
      %v3350 = vadd.f32 %v3349, %v3335
      %v3351 = vadd.f32 %v3350, %v3336
      %v3352 = vadd.f32 %v3351, %v3337
      %v3353 = vadd.f32 %v3352, %v3338
      %v3354 = vadd.f32 %v3353, %v3339
      %v3355 = vadd.f32 %v3354, %v3340
      %v3356 = vadd.f32 %v3355, %v3341
      %v3357 = vrot.slane %v3356, 4
      %v3358 = vadd.f32 %v3356, %v3357
      %v3359 = vrot.slane %v3358, 2
      %v3360 = vadd.f32 %v3358, %v3359
      %v3361 = vrot.slane %v3360, 1
      %v3362 = vadd.f32 %v3360, %v3361
      %v3363 = vadd.f32 %v3165, %v3362
      %v3364 = vmul.f32 %v3363, 0.00390625
      %v3365 = vsub.f32 %v1619, %v1523
      %v3366 = vsub.f32 %v1620, %v1524
      %v3367 = vsub.f32 %v1621, %v1525
      %v3368 = vsub.f32 %v1622, %v1526
      %v3369 = vsub.f32 %v1623, %v1527
      %v3370 = vsub.f32 %v1624, %v1528
      %v3371 = vsub.f32 %v1625, %v1529
      %v3372 = vsub.f32 %v1626, %v1530
      %v3373 = vsub.f32 %v1627, %v1531
      %v3374 = vsub.f32 %v1628, %v1532
      %v3375 = vsub.f32 %v1629, %v1533
      %v3376 = vsub.f32 %v1630, %v1534
      %v3377 = vsub.f32 %v1631, %v1535
      %v3378 = vsub.f32 %v1632, %v1536
      %v3379 = vsub.f32 %v1633, %v1537
      %v3380 = vsub.f32 %v1634, %v1538
      %v3381 = vmul.f32 %v3365, %v3365
      %v3382 = vmul.f32 %v3366, %v3366
      %v3383 = vmul.f32 %v3367, %v3367
      %v3384 = vmul.f32 %v3368, %v3368
      %v3385 = vmul.f32 %v3369, %v3369
      %v3386 = vmul.f32 %v3370, %v3370
      %v3387 = vmul.f32 %v3371, %v3371
      %v3388 = vmul.f32 %v3372, %v3372
      %v3389 = vmul.f32 %v3373, %v3373
      %v3390 = vmul.f32 %v3374, %v3374
      %v3391 = vmul.f32 %v3375, %v3375
      %v3392 = vmul.f32 %v3376, %v3376
      %v3393 = vmul.f32 %v3377, %v3377
      %v3394 = vmul.f32 %v3378, %v3378
      %v3395 = vmul.f32 %v3379, %v3379
      %v3396 = vmul.f32 %v3380, %v3380
      %3397 = vadd.xlane.f32.xlu0 %v3381
      %v3398 = vpop.xlane.xlu0 %3397
      %3399 = vadd.xlane.f32.xlu0 %v3382
      %v3400 = vpop.xlane.xlu0 %3399
      %3401 = vadd.xlane.f32.xlu0 %v3383
      %v3402 = vpop.xlane.xlu0 %3401
      %3403 = vadd.xlane.f32.xlu0 %v3384
      %v3404 = vpop.xlane.xlu0 %3403
      %3405 = vadd.xlane.f32.xlu0 %v3385
      %v3406 = vpop.xlane.xlu0 %3405
      %3407 = vadd.xlane.f32.xlu0 %v3386
      %v3408 = vpop.xlane.xlu0 %3407
      %3409 = vadd.xlane.f32.xlu0 %v3387
      %v3410 = vpop.xlane.xlu0 %3409
      %3411 = vadd.xlane.f32.xlu0 %v3388
      %v3412 = vpop.xlane.xlu0 %3411
      %3413 = vadd.xlane.f32.xlu0 %v3389
      %v3414 = vpop.xlane.xlu0 %3413
      %3415 = vadd.xlane.f32.xlu0 %v3390
      %v3416 = vpop.xlane.xlu0 %3415
      %3417 = vadd.xlane.f32.xlu0 %v3391
      %v3418 = vpop.xlane.xlu0 %3417
      %3419 = vadd.xlane.f32.xlu0 %v3392
      %v3420 = vpop.xlane.xlu0 %3419
      %3421 = vadd.xlane.f32.xlu0 %v3393
      %v3422 = vpop.xlane.xlu0 %3421
      %3423 = vadd.xlane.f32.xlu0 %v3394
      %v3424 = vpop.xlane.xlu0 %3423
      %3425 = vadd.xlane.f32.xlu0 %v3395
      %v3426 = vpop.xlane.xlu0 %3425
      %3427 = vadd.xlane.f32.xlu0 %v3396
      %v3428 = vpop.xlane.xlu0 %3427
      %v3429 = vadd.f32 %v3398, %v3400
      %v3430 = vadd.f32 %v3429, %v3402
      %v3431 = vadd.f32 %v3430, %v3404
      %v3432 = vadd.f32 %v3431, %v3406
      %v3433 = vadd.f32 %v3432, %v3408
      %v3434 = vadd.f32 %v3433, %v3410
      %v3435 = vadd.f32 %v3434, %v3412
      %v3436 = vadd.f32 %v3435, %v3414
      %v3437 = vadd.f32 %v3436, %v3416
      %v3438 = vadd.f32 %v3437, %v3418
      %v3439 = vadd.f32 %v3438, %v3420
      %v3440 = vadd.f32 %v3439, %v3422
      %v3441 = vadd.f32 %v3440, %v3424
      %v3442 = vadd.f32 %v3441, %v3426
      %v3443 = vadd.f32 %v3442, %v3428
      %v3444 = vrot.slane %v3443, 4
      %v3445 = vadd.f32 %v3443, %v3444
      %v3446 = vrot.slane %v3445, 2
      %v3447 = vadd.f32 %v3445, %v3446
      %v3448 = vrot.slane %v3447, 1
      %v3449 = vadd.f32 %v3447, %v3448
      %v3450 = vmul.f32 %v3449, 0.0078125
      %v3451 = vlaneseq
      %v3452 = vand.u32 %v3451, 127
      %vm3453 = vcmp.eq.s32.totalorder %v3452, 0
      %vm3454 = vcmp.eq.s32.totalorder %v3452, 1
      %v3455 = vsel %vm3454, %v3364, %v3450
      %v3456 = vsel %vm3453, %v2984, %v3455
      %vm3457 = vcmask 16384
      %3458 = vst.msk [vmem:[%s12] sm:$0x1] %vm3457, %v3456
    $region61: #{rgib_forward.1} parent=1 // pred_fallthru
      _
    // Predicated region
    $region62: #{rgib_forward.1} parent=1 // pred_check
      _
    $region63: #{rgib_forward.1} parent=1 // pred_check_branch
      %3460 = sbr.rel (0) target = $region65
    $region64: #{rgib_forward.1} parent=1 // pred_region
      _
    $region65: #{rgib_forward.1} parent=1 // pred_fallthru
      _
    // Predicated region
    $region66: #{rgib_forward.1} parent=1 // pred_check
      _
    $region67: #{rgib_forward.1} parent=1 // pred_check_branch
      %3462 = sbr.rel (0) target = $region69
    $region68: #{rgib_forward.1} parent=1 // pred_region
      _
    $region69: #{rgib_forward.1} parent=1 // pred_fallthru
      _
    %3463 = vsyncpa [#allocation5], 1

</llo_original>
